<compile_context>
chip_gen: v7x
topology: tpu7x:2x2x1
jax: 0.10.0
libtpu: 0.0.40
codegen_flags: <defaults>
</compile_context>

<pallas_src>
import functools

import numpy as np
import jax
import jax.numpy as jnp
from jax.experimental import pallas as pl
from jax.experimental.pallas import tpu as pltpu

HIDDEN = 32  # predict branch hidden width (fixed by the module: Conv2d(C, 32, 1))


# ----------------------------- Pallas kernel ------------------------------ #
def _dsm_kernel(C, H, W,
                x_ref,                      # (C*H, W)   bf16: channel planes on sublanes
                wcat_ref,                   # ((C+32)*C,) f32 SMEM: [Wr ; bn_scale*W1] flat
                bnb_ref,                    # (32,)      f32 SMEM: folded BN bias
                w2_ref,                     # (32,)      f32 SMEM: predict conv2 weights
                uy_ref, uxt_ref,            # (Hout,H), (W,Wout) f32: upsample row/col mats
                ay_ref, axt_ref,            # (H,H), (W,W) f32: composed down∘up attn mats
                shad_ref,                   # (Hout, Wout) f32 out
                out_ref):                   # (C*H, W)     f32 out
    # Load once, compute in f32 (v5e has no bf16 VPU/EUP path).
    x = x_ref[...].astype(jnp.float32)                       # (C*H, W)
    planes = [x[c * H:(c + 1) * H, :] for c in range(C)]     # C x (H, W)

    # ---- fused 1x1 convs: refine (rows 0..C-1) + predict conv1 (rows C..C+31) ----
    # K = C = 4 contraction as scalar-x-plane VPU MACs; keeps the (H, W) layout.
    x1 = []
    for o in range(C):
        acc = wcat_ref[o * C] * planes[0]
        for c in range(1, C):
            acc = acc + wcat_ref[o * C + c] * planes[c]
        x1.append(acc)                                       # refine(x) channel o

    # predict: conv1 -> BN(eval, folded) -> ReLU -> conv2(32->1) accumulated on VPU
    s = jnp.zeros((H, W), jnp.float32)
    for o in range(HIDDEN):
        base = (C + o) * C
        acc = wcat_ref[base] * planes[0]
        for c in range(1, C):
            acc = acc + wcat_ref[base + c] * planes[c]
        h = jnp.maximum(acc + bnb_ref[o], 0.0)
        s = s + w2_ref[o] * h                                # (H, W) score map

    # ---- attention: sigmoid(down(up(s))) with the resamples pre-composed:
    #      attn = sigmoid(Ay @ S @ Ax^T), Ay = Dy@Uy (H,H), Ax^T = Ux^T@Dx^T (W,W)
    a = jnp.dot(ay_ref[...], s, preferred_element_type=jnp.float32)      # (H, W)
    a = jnp.dot(a, axt_ref[...], preferred_element_type=jnp.float32)     # (H, W)
    attn = jax.nn.sigmoid(a)

    # ---- separable bilinear upsample (align_corners=False): shad = Uy @ S @ Ux^T
    t = jnp.dot(uy_ref[...], s, preferred_element_type=jnp.float32)      # (Hout, W)
    shad_ref[...] = jnp.dot(t, uxt_ref[...], preferred_element_type=jnp.float32)

    # ---- residual: out = x + refine(x) * attn  (attn broadcasts over channels)
    for c in range(C):
        out_ref[c * H:(c + 1) * H, :] = planes[c] + x1[c] * attn


# ------------------------- bilinear matrix helpers ------------------------ #
def _bilinear_matrix(in_size, out_size):
    """1-D bilinear interpolation matrix, PyTorch align_corners=False semantics."""
    m = np.zeros((out_size, in_size), dtype=np.float64)
    ratio = in_size / out_size
    for d in range(out_size):
        src = (d + 0.5) * ratio - 0.5
        src = max(src, 0.0)
        i0 = min(int(np.floor(src)), in_size - 1)
        i1 = min(i0 + 1, in_size - 1)
        lam = src - i0
        m[d, i0] += 1.0 - lam
        m[d, i1] += lam
    return m


# -------------------------------- wrapper --------------------------------- #
def dsm_forward(x_nchw, params, scale):
    N, C, H, W = x_nchw.shape
    Hout, Wout = H * scale, W * scale

    # NCHW -> (N, C*H, W): free reshape, channel planes stacked on the sublane dim,
    # W on the lane dim.  bf16 input halves HBM read traffic; compute stays f32.
    x_chw = x_nchw.reshape(N, C * H, W).astype(jnp.bfloat16)

    # Fold BatchNorm (eval mode) into the first predict conv; fuse with refine.
    eps = 1e-5
    bn_scale = params["gamma"] / jnp.sqrt(params["var"] + eps)              # (32,)
    w1_eff = bn_scale[:, None] * params["W1"]                               # (32, C)
    bn_bias = (params["beta"] - params["mean"] * bn_scale).astype(jnp.float32)
    wcat = jnp.concatenate([params["Wr"], w1_eff], axis=0).astype(jnp.float32)  # (C+32, C)
    wcat_flat = wcat.reshape(-1)                                            # 1-D -> tiny SMEM
    w2 = params["W2"].reshape(HIDDEN).astype(jnp.float32)                   # (32,)

    # 1-D separable resize matrices (float64 on host, cast to f32).
    uy_np = _bilinear_matrix(H, Hout)            # (Hout, H)
    ux_np = _bilinear_matrix(W, Wout)            # (Wout, W)
    dy_np = _bilinear_matrix(Hout, H)            # (H, Hout)
    dx_np = _bilinear_matrix(Wout, W)            # (W, Wout)

    uy = jnp.asarray(uy_np, jnp.float32)                       # (Hout, H)
    uxt = jnp.asarray(ux_np.T, jnp.float32)                    # (W, Wout)
    # Pre-compose the attention path's down∘up resample (exact linear composition).
    ay = jnp.asarray(dy_np @ uy_np, jnp.float32)               # (H, H)
    axt = jnp.asarray(ux_np.T @ dx_np.T, jnp.float32)          # (W, W)

    kernel = functools.partial(_dsm_kernel, C, H, W)
    smem = pl.BlockSpec(memory_space=pltpu.MemorySpace.SMEM)

    shad_flat, out_flat = pl.pallas_call(
        kernel,
        out_shape=(
            jax.ShapeDtypeStruct((N, Hout, Wout), jnp.float32),
            jax.ShapeDtypeStruct((N, C * H, W), jnp.float32),
        ),
        grid=(N,),
        in_specs=[
            pl.BlockSpec((None, C * H, W), lambda n: (n, 0, 0)),   # x (bf16, pipelined)
            smem,                                                  # wcat (flat, resident)
            smem,                                                  # bn bias
            smem,                                                  # w2
            pl.BlockSpec((Hout, H), lambda n: (0, 0)),             # Uy   (resident)
            pl.BlockSpec((W, Wout), lambda n: (0, 0)),             # Ux^T
            pl.BlockSpec((H, H), lambda n: (0, 0)),                # Ay = Dy@Uy
            pl.BlockSpec((W, W), lambda n: (0, 0)),                # Ax^T = Ux^T@Dx^T
        ],
        out_specs=(
            pl.BlockSpec((None, Hout, Wout), lambda n: (n, 0, 0)),  # shad
            pl.BlockSpec((None, C * H, W), lambda n: (n, 0, 0)),    # out
        ),
        compiler_params=pltpu.CompilerParams(dimension_semantics=("parallel",)),
    )(x_chw, wcat_flat, bn_bias, w2, uy, uxt, ay, axt)

    shad = shad_flat.reshape(N, 1, Hout, Wout)
    out = out_flat.reshape(N, C, H, W)
    return shad, out


# ------------------------------ reference --------------------------------- #
def dsm_reference(x_nchw, params, scale):
    """Pure-JAX f32 reference of the same forward pass (for numerics check)."""
    N, C, H, W = x_nchw.shape
    Hout, Wout = H * scale, W * scale
    hp = jax.lax.Precision.HIGHEST
    x = x_nchw.astype(jnp.float32)

    eps = 1e-5
    bn_scale = params["gamma"] / jnp.sqrt(params["var"] + eps)
    bn_bias = params["beta"] - params["mean"] * bn_scale

    x1 = jnp.einsum("oc,nchw->nohw", params["Wr"], x, precision=hp)
    h = jnp.maximum(
        jnp.einsum("oc,nchw->nohw", params["W1"], x, precision=hp)
        * bn_scale[None, :, None, None] + bn_bias[None, :, None, None], 0.0)
    s = jnp.einsum("oh,nhxy->noxy", params["W2"], h, precision=hp)          # (N,1,H,W)

    uy = jnp.asarray(_bilinear_matrix(H, Hout), jnp.float32)
    ux = jnp.asarray(_bilinear_matrix(W, Wout), jnp.float32)
    dy = jnp.asarray(_bilinear_matrix(Hout, H), jnp.float32)
    dx = jnp.asarray(_bilinear_matrix(Wout, W), jnp.float32)

    shad = jnp.einsum("ph,nchw,qw->ncpq", uy, s, ux, precision=hp)          # (N,1,Hout,Wout)
    attn = jax.nn.sigmoid(jnp.einsum("hp,ncpq,wq->nchw", dy, shad, dx, precision=hp))
    out = x + x1 * attn
    return shad, out


# --------------------------------- main ------------------------------------ #
if __name__ == "__main__":
    N, C, H, W = 2, 4, 16, 16
    scale = 2

    key = jax.random.PRNGKey(0)
    kx, k1, k2, k3, k4, k5, k6, k7 = jax.random.split(key, 8)

    x = jax.random.normal(kx, (N, C, H, W), dtype=jnp.float32)

    params = {
        "Wr": 0.3 * jax.random.normal(k1, (C, C), dtype=jnp.float32),        # refine 1x1
        "W1": 0.3 * jax.random.normal(k2, (HIDDEN, C), dtype=jnp.float32),   # predict conv1
        "W2": 0.3 * jax.random.normal(k3, (1, HIDDEN), dtype=jnp.float32),   # predict conv2
        "gamma": 1.0 + 0.1 * jax.random.normal(k4, (HIDDEN,), dtype=jnp.float32),
        "beta": 0.1 * jax.random.normal(k5, (HIDDEN,), dtype=jnp.float32),
        "mean": 0.1 * jax.random.normal(k6, (HIDDEN,), dtype=jnp.float32),
        "var": 1.0 + 0.2 * jax.random.uniform(k7, (HIDDEN,), dtype=jnp.float32),
    }

    shad, out = jax.jit(dsm_forward, static_argnums=2)(x, params, scale)
    jax.block_until_ready((shad, out))

    # The wrapper deliberately quantizes x to bf16 (HBM-traffic optimization);
    # compare against the f32 reference evaluated on the same bf16-quantized
    # input so the check isolates kernel correctness.
    x_q = x.astype(jnp.bfloat16).astype(jnp.float32)
    shad_ref, out_ref = dsm_reference(x_q, params, scale)
    np.testing.assert_allclose(np.asarray(shad), np.asarray(shad_ref), rtol=1e-2, atol=1e-2)
    np.testing.assert_allclose(np.asarray(out), np.asarray(out_ref), rtol=1e-2, atol=1e-2)

    assert shad.shape == (N, 1, H * scale, W * scale)
    assert out.shape == (N, C, H, W)
    print("KERNEL_OK")
</pallas_src>

<mosaic_0001>
module attributes {stable_mosaic.version = 11 : i64} {
  func.func @_dsm_kernel(%arg0: i32, %arg1: memref<1x64x16xbf16, #tpu.memory_space<vmem>>, %arg2: memref<144xf32, #tpu.memory_space<smem>>, %arg3: memref<32xf32, #tpu.memory_space<smem>>, %arg4: memref<32xf32, #tpu.memory_space<smem>>, %arg5: memref<32x16xf32, #tpu.memory_space<vmem>>, %arg6: memref<16x32xf32, #tpu.memory_space<vmem>>, %arg7: memref<16x16xf32, #tpu.memory_space<vmem>>, %arg8: memref<16x16xf32, #tpu.memory_space<vmem>>, %arg9: memref<1x32x32xf32, #tpu.memory_space<vmem>>, %arg10: memref<1x64x16xf32, #tpu.memory_space<vmem>>) attributes {dimension_semantics = [#tpu.dimension_semantics<parallel>], iteration_bounds = array<i64: 2>, scalar_prefetch = 0 : i64, scratch_operands = 0 : i64, tpu.core_type = #tpu.core_type<tc>, window_params = [{transform_indices = @transform_0, window_bounds = array<i64: 1, 64, 16>}, {transform_indices = @transform_1, window_bounds = array<i64: 144>}, {transform_indices = @transform_2, window_bounds = array<i64: 32>}, {transform_indices = @transform_3, window_bounds = array<i64: 32>}, {pipeline_mode = #tpu.pipeline_mode<synchronous>, transform_indices = @transform_4, window_bounds = array<i64: 32, 16>}, {pipeline_mode = #tpu.pipeline_mode<synchronous>, transform_indices = @transform_5, window_bounds = array<i64: 16, 32>}, {pipeline_mode = #tpu.pipeline_mode<synchronous>, transform_indices = @transform_6, window_bounds = array<i64: 16, 16>}, {pipeline_mode = #tpu.pipeline_mode<synchronous>, transform_indices = @transform_7, window_bounds = array<i64: 16, 16>}, {transform_indices = @transform_8, window_bounds = array<i64: 1, 32, 32>}, {transform_indices = @transform_9, window_bounds = array<i64: 1, 64, 16>}]} {
    %c0 = arith.constant 0 : index
    %c0_0 = arith.constant 0 : index
    %c0_1 = arith.constant 0 : index
    %0 = vector.load %arg1[%c0, %c0_0, %c0_1] : memref<1x64x16xbf16, #tpu.memory_space<vmem>>, vector<1x64x16xbf16>
    %1 = vector.shape_cast %0 : vector<1x64x16xbf16> to vector<64x16xbf16>
    %2 = arith.extf %1 : vector<64x16xbf16> to vector<64x16xf32>
    %3 = vector.extract_strided_slice %2 {offsets = [0, 0], sizes = [16, 16], strides = [1, 1]} : vector<64x16xf32> to vector<16x16xf32>
    %4 = vector.extract_strided_slice %2 {offsets = [16, 0], sizes = [16, 16], strides = [1, 1]} : vector<64x16xf32> to vector<16x16xf32>
    %5 = vector.extract_strided_slice %2 {offsets = [32, 0], sizes = [16, 16], strides = [1, 1]} : vector<64x16xf32> to vector<16x16xf32>
    %6 = vector.extract_strided_slice %2 {offsets = [48, 0], sizes = [16, 16], strides = [1, 1]} : vector<64x16xf32> to vector<16x16xf32>
    %c0_2 = arith.constant 0 : index
    %7 = memref.load %arg2[%c0_2] : memref<144xf32, #tpu.memory_space<smem>>
    %8 = vector.broadcast %7 : f32 to vector<16x16xf32>
    %9 = arith.mulf %8, %3 : vector<16x16xf32>
    %c1 = arith.constant 1 : index
    %10 = memref.load %arg2[%c1] : memref<144xf32, #tpu.memory_space<smem>>
    %11 = vector.broadcast %10 : f32 to vector<16x16xf32>
    %12 = arith.mulf %11, %4 : vector<16x16xf32>
    %13 = arith.addf %9, %12 : vector<16x16xf32>
    %c2 = arith.constant 2 : index
    %14 = memref.load %arg2[%c2] : memref<144xf32, #tpu.memory_space<smem>>
    %15 = vector.broadcast %14 : f32 to vector<16x16xf32>
    %16 = arith.mulf %15, %5 : vector<16x16xf32>
    %17 = arith.addf %13, %16 : vector<16x16xf32>
    %c3 = arith.constant 3 : index
    %18 = memref.load %arg2[%c3] : memref<144xf32, #tpu.memory_space<smem>>
    %19 = vector.broadcast %18 : f32 to vector<16x16xf32>
    %20 = arith.mulf %19, %6 : vector<16x16xf32>
    %21 = arith.addf %17, %20 : vector<16x16xf32>
    %c4 = arith.constant 4 : index
    %22 = memref.load %arg2[%c4] : memref<144xf32, #tpu.memory_space<smem>>
    %23 = vector.broadcast %22 : f32 to vector<16x16xf32>
    %24 = arith.mulf %23, %3 : vector<16x16xf32>
    %c5 = arith.constant 5 : index
    %25 = memref.load %arg2[%c5] : memref<144xf32, #tpu.memory_space<smem>>
    %26 = vector.broadcast %25 : f32 to vector<16x16xf32>
    %27 = arith.mulf %26, %4 : vector<16x16xf32>
    %28 = arith.addf %24, %27 : vector<16x16xf32>
    %c6 = arith.constant 6 : index
    %29 = memref.load %arg2[%c6] : memref<144xf32, #tpu.memory_space<smem>>
    %30 = vector.broadcast %29 : f32 to vector<16x16xf32>
    %31 = arith.mulf %30, %5 : vector<16x16xf32>
    %32 = arith.addf %28, %31 : vector<16x16xf32>
    %c7 = arith.constant 7 : index
    %33 = memref.load %arg2[%c7] : memref<144xf32, #tpu.memory_space<smem>>
    %34 = vector.broadcast %33 : f32 to vector<16x16xf32>
    %35 = arith.mulf %34, %6 : vector<16x16xf32>
    %36 = arith.addf %32, %35 : vector<16x16xf32>
    %c8 = arith.constant 8 : index
    %37 = memref.load %arg2[%c8] : memref<144xf32, #tpu.memory_space<smem>>
    %38 = vector.broadcast %37 : f32 to vector<16x16xf32>
    %39 = arith.mulf %38, %3 : vector<16x16xf32>
    %c9 = arith.constant 9 : index
    %40 = memref.load %arg2[%c9] : memref<144xf32, #tpu.memory_space<smem>>
    %41 = vector.broadcast %40 : f32 to vector<16x16xf32>
    %42 = arith.mulf %41, %4 : vector<16x16xf32>
    %43 = arith.addf %39, %42 : vector<16x16xf32>
    %c10 = arith.constant 10 : index
    %44 = memref.load %arg2[%c10] : memref<144xf32, #tpu.memory_space<smem>>
    %45 = vector.broadcast %44 : f32 to vector<16x16xf32>
    %46 = arith.mulf %45, %5 : vector<16x16xf32>
    %47 = arith.addf %43, %46 : vector<16x16xf32>
    %c11 = arith.constant 11 : index
    %48 = memref.load %arg2[%c11] : memref<144xf32, #tpu.memory_space<smem>>
    %49 = vector.broadcast %48 : f32 to vector<16x16xf32>
    %50 = arith.mulf %49, %6 : vector<16x16xf32>
    %51 = arith.addf %47, %50 : vector<16x16xf32>
    %c12 = arith.constant 12 : index
    %52 = memref.load %arg2[%c12] : memref<144xf32, #tpu.memory_space<smem>>
    %53 = vector.broadcast %52 : f32 to vector<16x16xf32>
    %54 = arith.mulf %53, %3 : vector<16x16xf32>
    %c13 = arith.constant 13 : index
    %55 = memref.load %arg2[%c13] : memref<144xf32, #tpu.memory_space<smem>>
    %56 = vector.broadcast %55 : f32 to vector<16x16xf32>
    %57 = arith.mulf %56, %4 : vector<16x16xf32>
    %58 = arith.addf %54, %57 : vector<16x16xf32>
    %c14 = arith.constant 14 : index
    %59 = memref.load %arg2[%c14] : memref<144xf32, #tpu.memory_space<smem>>
    %60 = vector.broadcast %59 : f32 to vector<16x16xf32>
    %61 = arith.mulf %60, %5 : vector<16x16xf32>
    %62 = arith.addf %58, %61 : vector<16x16xf32>
    %c15 = arith.constant 15 : index
    %63 = memref.load %arg2[%c15] : memref<144xf32, #tpu.memory_space<smem>>
    %64 = vector.broadcast %63 : f32 to vector<16x16xf32>
    %65 = arith.mulf %64, %6 : vector<16x16xf32>
    %66 = arith.addf %62, %65 : vector<16x16xf32>
    %cst = arith.constant 0.000000e+00 : f32
    %67 = vector.broadcast %cst : f32 to vector<16x16xf32>
    %c16 = arith.constant 16 : index
    %68 = memref.load %arg2[%c16] : memref<144xf32, #tpu.memory_space<smem>>
    %69 = vector.broadcast %68 : f32 to vector<16x16xf32>
    %70 = arith.mulf %69, %3 : vector<16x16xf32>
    %c17 = arith.constant 17 : index
    %71 = memref.load %arg2[%c17] : memref<144xf32, #tpu.memory_space<smem>>
    %72 = vector.broadcast %71 : f32 to vector<16x16xf32>
    %73 = arith.mulf %72, %4 : vector<16x16xf32>
    %74 = arith.addf %70, %73 : vector<16x16xf32>
    %c18 = arith.constant 18 : index
    %75 = memref.load %arg2[%c18] : memref<144xf32, #tpu.memory_space<smem>>
    %76 = vector.broadcast %75 : f32 to vector<16x16xf32>
    %77 = arith.mulf %76, %5 : vector<16x16xf32>
    %78 = arith.addf %74, %77 : vector<16x16xf32>
    %c19 = arith.constant 19 : index
    %79 = memref.load %arg2[%c19] : memref<144xf32, #tpu.memory_space<smem>>
    %80 = vector.broadcast %79 : f32 to vector<16x16xf32>
    %81 = arith.mulf %80, %6 : vector<16x16xf32>
    %82 = arith.addf %78, %81 : vector<16x16xf32>
    %c0_3 = arith.constant 0 : index
    %83 = memref.load %arg3[%c0_3] : memref<32xf32, #tpu.memory_space<smem>>
    %84 = vector.broadcast %83 : f32 to vector<16x16xf32>
    %85 = arith.addf %82, %84 : vector<16x16xf32>
    %cst_4 = arith.constant 0.000000e+00 : f32
    %86 = vector.broadcast %cst_4 : f32 to vector<16x16xf32>
    %87 = arith.maximumf %85, %86 : vector<16x16xf32>
    %c0_5 = arith.constant 0 : index
    %88 = memref.load %arg4[%c0_5] : memref<32xf32, #tpu.memory_space<smem>>
    %89 = vector.broadcast %88 : f32 to vector<16x16xf32>
    %90 = arith.mulf %89, %87 : vector<16x16xf32>
    %91 = arith.addf %67, %90 : vector<16x16xf32>
    %c20 = arith.constant 20 : index
    %92 = memref.load %arg2[%c20] : memref<144xf32, #tpu.memory_space<smem>>
    %93 = vector.broadcast %92 : f32 to vector<16x16xf32>
    %94 = arith.mulf %93, %3 : vector<16x16xf32>
    %c21 = arith.constant 21 : index
    %95 = memref.load %arg2[%c21] : memref<144xf32, #tpu.memory_space<smem>>
    %96 = vector.broadcast %95 : f32 to vector<16x16xf32>
    %97 = arith.mulf %96, %4 : vector<16x16xf32>
    %98 = arith.addf %94, %97 : vector<16x16xf32>
    %c22 = arith.constant 22 : index
    %99 = memref.load %arg2[%c22] : memref<144xf32, #tpu.memory_space<smem>>
    %100 = vector.broadcast %99 : f32 to vector<16x16xf32>
    %101 = arith.mulf %100, %5 : vector<16x16xf32>
    %102 = arith.addf %98, %101 : vector<16x16xf32>
    %c23 = arith.constant 23 : index
    %103 = memref.load %arg2[%c23] : memref<144xf32, #tpu.memory_space<smem>>
    %104 = vector.broadcast %103 : f32 to vector<16x16xf32>
    %105 = arith.mulf %104, %6 : vector<16x16xf32>
    %106 = arith.addf %102, %105 : vector<16x16xf32>
    %c1_6 = arith.constant 1 : index
    %107 = memref.load %arg3[%c1_6] : memref<32xf32, #tpu.memory_space<smem>>
    %108 = vector.broadcast %107 : f32 to vector<16x16xf32>
    %109 = arith.addf %106, %108 : vector<16x16xf32>
    %cst_7 = arith.constant 0.000000e+00 : f32
    %110 = vector.broadcast %cst_7 : f32 to vector<16x16xf32>
    %111 = arith.maximumf %109, %110 : vector<16x16xf32>
    %c1_8 = arith.constant 1 : index
    %112 = memref.load %arg4[%c1_8] : memref<32xf32, #tpu.memory_space<smem>>
    %113 = vector.broadcast %112 : f32 to vector<16x16xf32>
    %114 = arith.mulf %113, %111 : vector<16x16xf32>
    %115 = arith.addf %91, %114 : vector<16x16xf32>
    %c24 = arith.constant 24 : index
    %116 = memref.load %arg2[%c24] : memref<144xf32, #tpu.memory_space<smem>>
    %117 = vector.broadcast %116 : f32 to vector<16x16xf32>
    %118 = arith.mulf %117, %3 : vector<16x16xf32>
    %c25 = arith.constant 25 : index
    %119 = memref.load %arg2[%c25] : memref<144xf32, #tpu.memory_space<smem>>
    %120 = vector.broadcast %119 : f32 to vector<16x16xf32>
    %121 = arith.mulf %120, %4 : vector<16x16xf32>
    %122 = arith.addf %118, %121 : vector<16x16xf32>
    %c26 = arith.constant 26 : index
    %123 = memref.load %arg2[%c26] : memref<144xf32, #tpu.memory_space<smem>>
    %124 = vector.broadcast %123 : f32 to vector<16x16xf32>
    %125 = arith.mulf %124, %5 : vector<16x16xf32>
    %126 = arith.addf %122, %125 : vector<16x16xf32>
    %c27 = arith.constant 27 : index
    %127 = memref.load %arg2[%c27] : memref<144xf32, #tpu.memory_space<smem>>
    %128 = vector.broadcast %127 : f32 to vector<16x16xf32>
    %129 = arith.mulf %128, %6 : vector<16x16xf32>
    %130 = arith.addf %126, %129 : vector<16x16xf32>
    %c2_9 = arith.constant 2 : index
    %131 = memref.load %arg3[%c2_9] : memref<32xf32, #tpu.memory_space<smem>>
    %132 = vector.broadcast %131 : f32 to vector<16x16xf32>
    %133 = arith.addf %130, %132 : vector<16x16xf32>
    %cst_10 = arith.constant 0.000000e+00 : f32
    %134 = vector.broadcast %cst_10 : f32 to vector<16x16xf32>
    %135 = arith.maximumf %133, %134 : vector<16x16xf32>
    %c2_11 = arith.constant 2 : index
    %136 = memref.load %arg4[%c2_11] : memref<32xf32, #tpu.memory_space<smem>>
    %137 = vector.broadcast %136 : f32 to vector<16x16xf32>
    %138 = arith.mulf %137, %135 : vector<16x16xf32>
    %139 = arith.addf %115, %138 : vector<16x16xf32>
    %c28 = arith.constant 28 : index
    %140 = memref.load %arg2[%c28] : memref<144xf32, #tpu.memory_space<smem>>
    %141 = vector.broadcast %140 : f32 to vector<16x16xf32>
    %142 = arith.mulf %141, %3 : vector<16x16xf32>
    %c29 = arith.constant 29 : index
    %143 = memref.load %arg2[%c29] : memref<144xf32, #tpu.memory_space<smem>>
    %144 = vector.broadcast %143 : f32 to vector<16x16xf32>
    %145 = arith.mulf %144, %4 : vector<16x16xf32>
    %146 = arith.addf %142, %145 : vector<16x16xf32>
    %c30 = arith.constant 30 : index
    %147 = memref.load %arg2[%c30] : memref<144xf32, #tpu.memory_space<smem>>
    %148 = vector.broadcast %147 : f32 to vector<16x16xf32>
    %149 = arith.mulf %148, %5 : vector<16x16xf32>
    %150 = arith.addf %146, %149 : vector<16x16xf32>
    %c31 = arith.constant 31 : index
    %151 = memref.load %arg2[%c31] : memref<144xf32, #tpu.memory_space<smem>>
    %152 = vector.broadcast %151 : f32 to vector<16x16xf32>
    %153 = arith.mulf %152, %6 : vector<16x16xf32>
    %154 = arith.addf %150, %153 : vector<16x16xf32>
    %c3_12 = arith.constant 3 : index
    %155 = memref.load %arg3[%c3_12] : memref<32xf32, #tpu.memory_space<smem>>
    %156 = vector.broadcast %155 : f32 to vector<16x16xf32>
    %157 = arith.addf %154, %156 : vector<16x16xf32>
    %cst_13 = arith.constant 0.000000e+00 : f32
    %158 = vector.broadcast %cst_13 : f32 to vector<16x16xf32>
    %159 = arith.maximumf %157, %158 : vector<16x16xf32>
    %c3_14 = arith.constant 3 : index
    %160 = memref.load %arg4[%c3_14] : memref<32xf32, #tpu.memory_space<smem>>
    %161 = vector.broadcast %160 : f32 to vector<16x16xf32>
    %162 = arith.mulf %161, %159 : vector<16x16xf32>
    %163 = arith.addf %139, %162 : vector<16x16xf32>
    %c32 = arith.constant 32 : index
    %164 = memref.load %arg2[%c32] : memref<144xf32, #tpu.memory_space<smem>>
    %165 = vector.broadcast %164 : f32 to vector<16x16xf32>
    %166 = arith.mulf %165, %3 : vector<16x16xf32>
    %c33 = arith.constant 33 : index
    %167 = memref.load %arg2[%c33] : memref<144xf32, #tpu.memory_space<smem>>
    %168 = vector.broadcast %167 : f32 to vector<16x16xf32>
    %169 = arith.mulf %168, %4 : vector<16x16xf32>
    %170 = arith.addf %166, %169 : vector<16x16xf32>
    %c34 = arith.constant 34 : index
    %171 = memref.load %arg2[%c34] : memref<144xf32, #tpu.memory_space<smem>>
    %172 = vector.broadcast %171 : f32 to vector<16x16xf32>
    %173 = arith.mulf %172, %5 : vector<16x16xf32>
    %174 = arith.addf %170, %173 : vector<16x16xf32>
    %c35 = arith.constant 35 : index
    %175 = memref.load %arg2[%c35] : memref<144xf32, #tpu.memory_space<smem>>
    %176 = vector.broadcast %175 : f32 to vector<16x16xf32>
    %177 = arith.mulf %176, %6 : vector<16x16xf32>
    %178 = arith.addf %174, %177 : vector<16x16xf32>
    %c4_15 = arith.constant 4 : index
    %179 = memref.load %arg3[%c4_15] : memref<32xf32, #tpu.memory_space<smem>>
    %180 = vector.broadcast %179 : f32 to vector<16x16xf32>
    %181 = arith.addf %178, %180 : vector<16x16xf32>
    %cst_16 = arith.constant 0.000000e+00 : f32
    %182 = vector.broadcast %cst_16 : f32 to vector<16x16xf32>
    %183 = arith.maximumf %181, %182 : vector<16x16xf32>
    %c4_17 = arith.constant 4 : index
    %184 = memref.load %arg4[%c4_17] : memref<32xf32, #tpu.memory_space<smem>>
    %185 = vector.broadcast %184 : f32 to vector<16x16xf32>
    %186 = arith.mulf %185, %183 : vector<16x16xf32>
    %187 = arith.addf %163, %186 : vector<16x16xf32>
    %c36 = arith.constant 36 : index
    %188 = memref.load %arg2[%c36] : memref<144xf32, #tpu.memory_space<smem>>
    %189 = vector.broadcast %188 : f32 to vector<16x16xf32>
    %190 = arith.mulf %189, %3 : vector<16x16xf32>
    %c37 = arith.constant 37 : index
    %191 = memref.load %arg2[%c37] : memref<144xf32, #tpu.memory_space<smem>>
    %192 = vector.broadcast %191 : f32 to vector<16x16xf32>
    %193 = arith.mulf %192, %4 : vector<16x16xf32>
    %194 = arith.addf %190, %193 : vector<16x16xf32>
    %c38 = arith.constant 38 : index
    %195 = memref.load %arg2[%c38] : memref<144xf32, #tpu.memory_space<smem>>
    %196 = vector.broadcast %195 : f32 to vector<16x16xf32>
    %197 = arith.mulf %196, %5 : vector<16x16xf32>
    %198 = arith.addf %194, %197 : vector<16x16xf32>
    %c39 = arith.constant 39 : index
    %199 = memref.load %arg2[%c39] : memref<144xf32, #tpu.memory_space<smem>>
    %200 = vector.broadcast %199 : f32 to vector<16x16xf32>
    %201 = arith.mulf %200, %6 : vector<16x16xf32>
    %202 = arith.addf %198, %201 : vector<16x16xf32>
    %c5_18 = arith.constant 5 : index
    %203 = memref.load %arg3[%c5_18] : memref<32xf32, #tpu.memory_space<smem>>
    %204 = vector.broadcast %203 : f32 to vector<16x16xf32>
    %205 = arith.addf %202, %204 : vector<16x16xf32>
    %cst_19 = arith.constant 0.000000e+00 : f32
    %206 = vector.broadcast %cst_19 : f32 to vector<16x16xf32>
    %207 = arith.maximumf %205, %206 : vector<16x16xf32>
    %c5_20 = arith.constant 5 : index
    %208 = memref.load %arg4[%c5_20] : memref<32xf32, #tpu.memory_space<smem>>
    %209 = vector.broadcast %208 : f32 to vector<16x16xf32>
    %210 = arith.mulf %209, %207 : vector<16x16xf32>
    %211 = arith.addf %187, %210 : vector<16x16xf32>
    %c40 = arith.constant 40 : index
    %212 = memref.load %arg2[%c40] : memref<144xf32, #tpu.memory_space<smem>>
    %213 = vector.broadcast %212 : f32 to vector<16x16xf32>
    %214 = arith.mulf %213, %3 : vector<16x16xf32>
    %c41 = arith.constant 41 : index
    %215 = memref.load %arg2[%c41] : memref<144xf32, #tpu.memory_space<smem>>
    %216 = vector.broadcast %215 : f32 to vector<16x16xf32>
    %217 = arith.mulf %216, %4 : vector<16x16xf32>
    %218 = arith.addf %214, %217 : vector<16x16xf32>
    %c42 = arith.constant 42 : index
    %219 = memref.load %arg2[%c42] : memref<144xf32, #tpu.memory_space<smem>>
    %220 = vector.broadcast %219 : f32 to vector<16x16xf32>
    %221 = arith.mulf %220, %5 : vector<16x16xf32>
    %222 = arith.addf %218, %221 : vector<16x16xf32>
    %c43 = arith.constant 43 : index
    %223 = memref.load %arg2[%c43] : memref<144xf32, #tpu.memory_space<smem>>
    %224 = vector.broadcast %223 : f32 to vector<16x16xf32>
    %225 = arith.mulf %224, %6 : vector<16x16xf32>
    %226 = arith.addf %222, %225 : vector<16x16xf32>
    %c6_21 = arith.constant 6 : index
    %227 = memref.load %arg3[%c6_21] : memref<32xf32, #tpu.memory_space<smem>>
    %228 = vector.broadcast %227 : f32 to vector<16x16xf32>
    %229 = arith.addf %226, %228 : vector<16x16xf32>
    %cst_22 = arith.constant 0.000000e+00 : f32
    %230 = vector.broadcast %cst_22 : f32 to vector<16x16xf32>
    %231 = arith.maximumf %229, %230 : vector<16x16xf32>
    %c6_23 = arith.constant 6 : index
    %232 = memref.load %arg4[%c6_23] : memref<32xf32, #tpu.memory_space<smem>>
    %233 = vector.broadcast %232 : f32 to vector<16x16xf32>
    %234 = arith.mulf %233, %231 : vector<16x16xf32>
    %235 = arith.addf %211, %234 : vector<16x16xf32>
    %c44 = arith.constant 44 : index
    %236 = memref.load %arg2[%c44] : memref<144xf32, #tpu.memory_space<smem>>
    %237 = vector.broadcast %236 : f32 to vector<16x16xf32>
    %238 = arith.mulf %237, %3 : vector<16x16xf32>
    %c45 = arith.constant 45 : index
    %239 = memref.load %arg2[%c45] : memref<144xf32, #tpu.memory_space<smem>>
    %240 = vector.broadcast %239 : f32 to vector<16x16xf32>
    %241 = arith.mulf %240, %4 : vector<16x16xf32>
    %242 = arith.addf %238, %241 : vector<16x16xf32>
    %c46 = arith.constant 46 : index
    %243 = memref.load %arg2[%c46] : memref<144xf32, #tpu.memory_space<smem>>
    %244 = vector.broadcast %243 : f32 to vector<16x16xf32>
    %245 = arith.mulf %244, %5 : vector<16x16xf32>
    %246 = arith.addf %242, %245 : vector<16x16xf32>
    %c47 = arith.constant 47 : index
    %247 = memref.load %arg2[%c47] : memref<144xf32, #tpu.memory_space<smem>>
    %248 = vector.broadcast %247 : f32 to vector<16x16xf32>
    %249 = arith.mulf %248, %6 : vector<16x16xf32>
    %250 = arith.addf %246, %249 : vector<16x16xf32>
    %c7_24 = arith.constant 7 : index
    %251 = memref.load %arg3[%c7_24] : memref<32xf32, #tpu.memory_space<smem>>
    %252 = vector.broadcast %251 : f32 to vector<16x16xf32>
    %253 = arith.addf %250, %252 : vector<16x16xf32>
    %cst_25 = arith.constant 0.000000e+00 : f32
    %254 = vector.broadcast %cst_25 : f32 to vector<16x16xf32>
    %255 = arith.maximumf %253, %254 : vector<16x16xf32>
    %c7_26 = arith.constant 7 : index
    %256 = memref.load %arg4[%c7_26] : memref<32xf32, #tpu.memory_space<smem>>
    %257 = vector.broadcast %256 : f32 to vector<16x16xf32>
    %258 = arith.mulf %257, %255 : vector<16x16xf32>
    %259 = arith.addf %235, %258 : vector<16x16xf32>
    %c48 = arith.constant 48 : index
    %260 = memref.load %arg2[%c48] : memref<144xf32, #tpu.memory_space<smem>>
    %261 = vector.broadcast %260 : f32 to vector<16x16xf32>
    %262 = arith.mulf %261, %3 : vector<16x16xf32>
    %c49 = arith.constant 49 : index
    %263 = memref.load %arg2[%c49] : memref<144xf32, #tpu.memory_space<smem>>
    %264 = vector.broadcast %263 : f32 to vector<16x16xf32>
    %265 = arith.mulf %264, %4 : vector<16x16xf32>
    %266 = arith.addf %262, %265 : vector<16x16xf32>
    %c50 = arith.constant 50 : index
    %267 = memref.load %arg2[%c50] : memref<144xf32, #tpu.memory_space<smem>>
    %268 = vector.broadcast %267 : f32 to vector<16x16xf32>
    %269 = arith.mulf %268, %5 : vector<16x16xf32>
    %270 = arith.addf %266, %269 : vector<16x16xf32>
    %c51 = arith.constant 51 : index
    %271 = memref.load %arg2[%c51] : memref<144xf32, #tpu.memory_space<smem>>
    %272 = vector.broadcast %271 : f32 to vector<16x16xf32>
    %273 = arith.mulf %272, %6 : vector<16x16xf32>
    %274 = arith.addf %270, %273 : vector<16x16xf32>
    %c8_27 = arith.constant 8 : index
    %275 = memref.load %arg3[%c8_27] : memref<32xf32, #tpu.memory_space<smem>>
    %276 = vector.broadcast %275 : f32 to vector<16x16xf32>
    %277 = arith.addf %274, %276 : vector<16x16xf32>
    %cst_28 = arith.constant 0.000000e+00 : f32
    %278 = vector.broadcast %cst_28 : f32 to vector<16x16xf32>
    %279 = arith.maximumf %277, %278 : vector<16x16xf32>
    %c8_29 = arith.constant 8 : index
    %280 = memref.load %arg4[%c8_29] : memref<32xf32, #tpu.memory_space<smem>>
    %281 = vector.broadcast %280 : f32 to vector<16x16xf32>
    %282 = arith.mulf %281, %279 : vector<16x16xf32>
    %283 = arith.addf %259, %282 : vector<16x16xf32>
    %c52 = arith.constant 52 : index
    %284 = memref.load %arg2[%c52] : memref<144xf32, #tpu.memory_space<smem>>
    %285 = vector.broadcast %284 : f32 to vector<16x16xf32>
    %286 = arith.mulf %285, %3 : vector<16x16xf32>
    %c53 = arith.constant 53 : index
    %287 = memref.load %arg2[%c53] : memref<144xf32, #tpu.memory_space<smem>>
    %288 = vector.broadcast %287 : f32 to vector<16x16xf32>
    %289 = arith.mulf %288, %4 : vector<16x16xf32>
    %290 = arith.addf %286, %289 : vector<16x16xf32>
    %c54 = arith.constant 54 : index
    %291 = memref.load %arg2[%c54] : memref<144xf32, #tpu.memory_space<smem>>
    %292 = vector.broadcast %291 : f32 to vector<16x16xf32>
    %293 = arith.mulf %292, %5 : vector<16x16xf32>
    %294 = arith.addf %290, %293 : vector<16x16xf32>
    %c55 = arith.constant 55 : index
    %295 = memref.load %arg2[%c55] : memref<144xf32, #tpu.memory_space<smem>>
    %296 = vector.broadcast %295 : f32 to vector<16x16xf32>
    %297 = arith.mulf %296, %6 : vector<16x16xf32>
    %298 = arith.addf %294, %297 : vector<16x16xf32>
    %c9_30 = arith.constant 9 : index
    %299 = memref.load %arg3[%c9_30] : memref<32xf32, #tpu.memory_space<smem>>
    %300 = vector.broadcast %299 : f32 to vector<16x16xf32>
    %301 = arith.addf %298, %300 : vector<16x16xf32>
    %cst_31 = arith.constant 0.000000e+00 : f32
    %302 = vector.broadcast %cst_31 : f32 to vector<16x16xf32>
    %303 = arith.maximumf %301, %302 : vector<16x16xf32>
    %c9_32 = arith.constant 9 : index
    %304 = memref.load %arg4[%c9_32] : memref<32xf32, #tpu.memory_space<smem>>
    %305 = vector.broadcast %304 : f32 to vector<16x16xf32>
    %306 = arith.mulf %305, %303 : vector<16x16xf32>
    %307 = arith.addf %283, %306 : vector<16x16xf32>
    %c56 = arith.constant 56 : index
    %308 = memref.load %arg2[%c56] : memref<144xf32, #tpu.memory_space<smem>>
    %309 = vector.broadcast %308 : f32 to vector<16x16xf32>
    %310 = arith.mulf %309, %3 : vector<16x16xf32>
    %c57 = arith.constant 57 : index
    %311 = memref.load %arg2[%c57] : memref<144xf32, #tpu.memory_space<smem>>
    %312 = vector.broadcast %311 : f32 to vector<16x16xf32>
    %313 = arith.mulf %312, %4 : vector<16x16xf32>
    %314 = arith.addf %310, %313 : vector<16x16xf32>
    %c58 = arith.constant 58 : index
    %315 = memref.load %arg2[%c58] : memref<144xf32, #tpu.memory_space<smem>>
    %316 = vector.broadcast %315 : f32 to vector<16x16xf32>
    %317 = arith.mulf %316, %5 : vector<16x16xf32>
    %318 = arith.addf %314, %317 : vector<16x16xf32>
    %c59 = arith.constant 59 : index
    %319 = memref.load %arg2[%c59] : memref<144xf32, #tpu.memory_space<smem>>
    %320 = vector.broadcast %319 : f32 to vector<16x16xf32>
    %321 = arith.mulf %320, %6 : vector<16x16xf32>
    %322 = arith.addf %318, %321 : vector<16x16xf32>
    %c10_33 = arith.constant 10 : index
    %323 = memref.load %arg3[%c10_33] : memref<32xf32, #tpu.memory_space<smem>>
    %324 = vector.broadcast %323 : f32 to vector<16x16xf32>
    %325 = arith.addf %322, %324 : vector<16x16xf32>
    %cst_34 = arith.constant 0.000000e+00 : f32
    %326 = vector.broadcast %cst_34 : f32 to vector<16x16xf32>
    %327 = arith.maximumf %325, %326 : vector<16x16xf32>
    %c10_35 = arith.constant 10 : index
    %328 = memref.load %arg4[%c10_35] : memref<32xf32, #tpu.memory_space<smem>>
    %329 = vector.broadcast %328 : f32 to vector<16x16xf32>
    %330 = arith.mulf %329, %327 : vector<16x16xf32>
    %331 = arith.addf %307, %330 : vector<16x16xf32>
    %c60 = arith.constant 60 : index
    %332 = memref.load %arg2[%c60] : memref<144xf32, #tpu.memory_space<smem>>
    %333 = vector.broadcast %332 : f32 to vector<16x16xf32>
    %334 = arith.mulf %333, %3 : vector<16x16xf32>
    %c61 = arith.constant 61 : index
    %335 = memref.load %arg2[%c61] : memref<144xf32, #tpu.memory_space<smem>>
    %336 = vector.broadcast %335 : f32 to vector<16x16xf32>
    %337 = arith.mulf %336, %4 : vector<16x16xf32>
    %338 = arith.addf %334, %337 : vector<16x16xf32>
    %c62 = arith.constant 62 : index
    %339 = memref.load %arg2[%c62] : memref<144xf32, #tpu.memory_space<smem>>
    %340 = vector.broadcast %339 : f32 to vector<16x16xf32>
    %341 = arith.mulf %340, %5 : vector<16x16xf32>
    %342 = arith.addf %338, %341 : vector<16x16xf32>
    %c63 = arith.constant 63 : index
    %343 = memref.load %arg2[%c63] : memref<144xf32, #tpu.memory_space<smem>>
    %344 = vector.broadcast %343 : f32 to vector<16x16xf32>
    %345 = arith.mulf %344, %6 : vector<16x16xf32>
    %346 = arith.addf %342, %345 : vector<16x16xf32>
    %c11_36 = arith.constant 11 : index
    %347 = memref.load %arg3[%c11_36] : memref<32xf32, #tpu.memory_space<smem>>
    %348 = vector.broadcast %347 : f32 to vector<16x16xf32>
    %349 = arith.addf %346, %348 : vector<16x16xf32>
    %cst_37 = arith.constant 0.000000e+00 : f32
    %350 = vector.broadcast %cst_37 : f32 to vector<16x16xf32>
    %351 = arith.maximumf %349, %350 : vector<16x16xf32>
    %c11_38 = arith.constant 11 : index
    %352 = memref.load %arg4[%c11_38] : memref<32xf32, #tpu.memory_space<smem>>
    %353 = vector.broadcast %352 : f32 to vector<16x16xf32>
    %354 = arith.mulf %353, %351 : vector<16x16xf32>
    %355 = arith.addf %331, %354 : vector<16x16xf32>
    %c64 = arith.constant 64 : index
    %356 = memref.load %arg2[%c64] : memref<144xf32, #tpu.memory_space<smem>>
    %357 = vector.broadcast %356 : f32 to vector<16x16xf32>
    %358 = arith.mulf %357, %3 : vector<16x16xf32>
    %c65 = arith.constant 65 : index
    %359 = memref.load %arg2[%c65] : memref<144xf32, #tpu.memory_space<smem>>
    %360 = vector.broadcast %359 : f32 to vector<16x16xf32>
    %361 = arith.mulf %360, %4 : vector<16x16xf32>
    %362 = arith.addf %358, %361 : vector<16x16xf32>
    %c66 = arith.constant 66 : index
    %363 = memref.load %arg2[%c66] : memref<144xf32, #tpu.memory_space<smem>>
    %364 = vector.broadcast %363 : f32 to vector<16x16xf32>
    %365 = arith.mulf %364, %5 : vector<16x16xf32>
    %366 = arith.addf %362, %365 : vector<16x16xf32>
    %c67 = arith.constant 67 : index
    %367 = memref.load %arg2[%c67] : memref<144xf32, #tpu.memory_space<smem>>
    %368 = vector.broadcast %367 : f32 to vector<16x16xf32>
    %369 = arith.mulf %368, %6 : vector<16x16xf32>
    %370 = arith.addf %366, %369 : vector<16x16xf32>
    %c12_39 = arith.constant 12 : index
    %371 = memref.load %arg3[%c12_39] : memref<32xf32, #tpu.memory_space<smem>>
    %372 = vector.broadcast %371 : f32 to vector<16x16xf32>
    %373 = arith.addf %370, %372 : vector<16x16xf32>
    %cst_40 = arith.constant 0.000000e+00 : f32
    %374 = vector.broadcast %cst_40 : f32 to vector<16x16xf32>
    %375 = arith.maximumf %373, %374 : vector<16x16xf32>
    %c12_41 = arith.constant 12 : index
    %376 = memref.load %arg4[%c12_41] : memref<32xf32, #tpu.memory_space<smem>>
    %377 = vector.broadcast %376 : f32 to vector<16x16xf32>
    %378 = arith.mulf %377, %375 : vector<16x16xf32>
    %379 = arith.addf %355, %378 : vector<16x16xf32>
    %c68 = arith.constant 68 : index
    %380 = memref.load %arg2[%c68] : memref<144xf32, #tpu.memory_space<smem>>
    %381 = vector.broadcast %380 : f32 to vector<16x16xf32>
    %382 = arith.mulf %381, %3 : vector<16x16xf32>
    %c69 = arith.constant 69 : index
    %383 = memref.load %arg2[%c69] : memref<144xf32, #tpu.memory_space<smem>>
    %384 = vector.broadcast %383 : f32 to vector<16x16xf32>
    %385 = arith.mulf %384, %4 : vector<16x16xf32>
    %386 = arith.addf %382, %385 : vector<16x16xf32>
    %c70 = arith.constant 70 : index
    %387 = memref.load %arg2[%c70] : memref<144xf32, #tpu.memory_space<smem>>
    %388 = vector.broadcast %387 : f32 to vector<16x16xf32>
    %389 = arith.mulf %388, %5 : vector<16x16xf32>
    %390 = arith.addf %386, %389 : vector<16x16xf32>
    %c71 = arith.constant 71 : index
    %391 = memref.load %arg2[%c71] : memref<144xf32, #tpu.memory_space<smem>>
    %392 = vector.broadcast %391 : f32 to vector<16x16xf32>
    %393 = arith.mulf %392, %6 : vector<16x16xf32>
    %394 = arith.addf %390, %393 : vector<16x16xf32>
    %c13_42 = arith.constant 13 : index
    %395 = memref.load %arg3[%c13_42] : memref<32xf32, #tpu.memory_space<smem>>
    %396 = vector.broadcast %395 : f32 to vector<16x16xf32>
    %397 = arith.addf %394, %396 : vector<16x16xf32>
    %cst_43 = arith.constant 0.000000e+00 : f32
    %398 = vector.broadcast %cst_43 : f32 to vector<16x16xf32>
    %399 = arith.maximumf %397, %398 : vector<16x16xf32>
    %c13_44 = arith.constant 13 : index
    %400 = memref.load %arg4[%c13_44] : memref<32xf32, #tpu.memory_space<smem>>
    %401 = vector.broadcast %400 : f32 to vector<16x16xf32>
    %402 = arith.mulf %401, %399 : vector<16x16xf32>
    %403 = arith.addf %379, %402 : vector<16x16xf32>
    %c72 = arith.constant 72 : index
    %404 = memref.load %arg2[%c72] : memref<144xf32, #tpu.memory_space<smem>>
    %405 = vector.broadcast %404 : f32 to vector<16x16xf32>
    %406 = arith.mulf %405, %3 : vector<16x16xf32>
    %c73 = arith.constant 73 : index
    %407 = memref.load %arg2[%c73] : memref<144xf32, #tpu.memory_space<smem>>
    %408 = vector.broadcast %407 : f32 to vector<16x16xf32>
    %409 = arith.mulf %408, %4 : vector<16x16xf32>
    %410 = arith.addf %406, %409 : vector<16x16xf32>
    %c74 = arith.constant 74 : index
    %411 = memref.load %arg2[%c74] : memref<144xf32, #tpu.memory_space<smem>>
    %412 = vector.broadcast %411 : f32 to vector<16x16xf32>
    %413 = arith.mulf %412, %5 : vector<16x16xf32>
    %414 = arith.addf %410, %413 : vector<16x16xf32>
    %c75 = arith.constant 75 : index
    %415 = memref.load %arg2[%c75] : memref<144xf32, #tpu.memory_space<smem>>
    %416 = vector.broadcast %415 : f32 to vector<16x16xf32>
    %417 = arith.mulf %416, %6 : vector<16x16xf32>
    %418 = arith.addf %414, %417 : vector<16x16xf32>
    %c14_45 = arith.constant 14 : index
    %419 = memref.load %arg3[%c14_45] : memref<32xf32, #tpu.memory_space<smem>>
    %420 = vector.broadcast %419 : f32 to vector<16x16xf32>
    %421 = arith.addf %418, %420 : vector<16x16xf32>
    %cst_46 = arith.constant 0.000000e+00 : f32
    %422 = vector.broadcast %cst_46 : f32 to vector<16x16xf32>
    %423 = arith.maximumf %421, %422 : vector<16x16xf32>
    %c14_47 = arith.constant 14 : index
    %424 = memref.load %arg4[%c14_47] : memref<32xf32, #tpu.memory_space<smem>>
    %425 = vector.broadcast %424 : f32 to vector<16x16xf32>
    %426 = arith.mulf %425, %423 : vector<16x16xf32>
    %427 = arith.addf %403, %426 : vector<16x16xf32>
    %c76 = arith.constant 76 : index
    %428 = memref.load %arg2[%c76] : memref<144xf32, #tpu.memory_space<smem>>
    %429 = vector.broadcast %428 : f32 to vector<16x16xf32>
    %430 = arith.mulf %429, %3 : vector<16x16xf32>
    %c77 = arith.constant 77 : index
    %431 = memref.load %arg2[%c77] : memref<144xf32, #tpu.memory_space<smem>>
    %432 = vector.broadcast %431 : f32 to vector<16x16xf32>
    %433 = arith.mulf %432, %4 : vector<16x16xf32>
    %434 = arith.addf %430, %433 : vector<16x16xf32>
    %c78 = arith.constant 78 : index
    %435 = memref.load %arg2[%c78] : memref<144xf32, #tpu.memory_space<smem>>
    %436 = vector.broadcast %435 : f32 to vector<16x16xf32>
    %437 = arith.mulf %436, %5 : vector<16x16xf32>
    %438 = arith.addf %434, %437 : vector<16x16xf32>
    %c79 = arith.constant 79 : index
    %439 = memref.load %arg2[%c79] : memref<144xf32, #tpu.memory_space<smem>>
    %440 = vector.broadcast %439 : f32 to vector<16x16xf32>
    %441 = arith.mulf %440, %6 : vector<16x16xf32>
    %442 = arith.addf %438, %441 : vector<16x16xf32>
    %c15_48 = arith.constant 15 : index
    %443 = memref.load %arg3[%c15_48] : memref<32xf32, #tpu.memory_space<smem>>
    %444 = vector.broadcast %443 : f32 to vector<16x16xf32>
    %445 = arith.addf %442, %444 : vector<16x16xf32>
    %cst_49 = arith.constant 0.000000e+00 : f32
    %446 = vector.broadcast %cst_49 : f32 to vector<16x16xf32>
    %447 = arith.maximumf %445, %446 : vector<16x16xf32>
    %c15_50 = arith.constant 15 : index
    %448 = memref.load %arg4[%c15_50] : memref<32xf32, #tpu.memory_space<smem>>
    %449 = vector.broadcast %448 : f32 to vector<16x16xf32>
    %450 = arith.mulf %449, %447 : vector<16x16xf32>
    %451 = arith.addf %427, %450 : vector<16x16xf32>
    %c80 = arith.constant 80 : index
    %452 = memref.load %arg2[%c80] : memref<144xf32, #tpu.memory_space<smem>>
    %453 = vector.broadcast %452 : f32 to vector<16x16xf32>
    %454 = arith.mulf %453, %3 : vector<16x16xf32>
    %c81 = arith.constant 81 : index
    %455 = memref.load %arg2[%c81] : memref<144xf32, #tpu.memory_space<smem>>
    %456 = vector.broadcast %455 : f32 to vector<16x16xf32>
    %457 = arith.mulf %456, %4 : vector<16x16xf32>
    %458 = arith.addf %454, %457 : vector<16x16xf32>
    %c82 = arith.constant 82 : index
    %459 = memref.load %arg2[%c82] : memref<144xf32, #tpu.memory_space<smem>>
    %460 = vector.broadcast %459 : f32 to vector<16x16xf32>
    %461 = arith.mulf %460, %5 : vector<16x16xf32>
    %462 = arith.addf %458, %461 : vector<16x16xf32>
    %c83 = arith.constant 83 : index
    %463 = memref.load %arg2[%c83] : memref<144xf32, #tpu.memory_space<smem>>
    %464 = vector.broadcast %463 : f32 to vector<16x16xf32>
    %465 = arith.mulf %464, %6 : vector<16x16xf32>
    %466 = arith.addf %462, %465 : vector<16x16xf32>
    %c16_51 = arith.constant 16 : index
    %467 = memref.load %arg3[%c16_51] : memref<32xf32, #tpu.memory_space<smem>>
    %468 = vector.broadcast %467 : f32 to vector<16x16xf32>
    %469 = arith.addf %466, %468 : vector<16x16xf32>
    %cst_52 = arith.constant 0.000000e+00 : f32
    %470 = vector.broadcast %cst_52 : f32 to vector<16x16xf32>
    %471 = arith.maximumf %469, %470 : vector<16x16xf32>
    %c16_53 = arith.constant 16 : index
    %472 = memref.load %arg4[%c16_53] : memref<32xf32, #tpu.memory_space<smem>>
    %473 = vector.broadcast %472 : f32 to vector<16x16xf32>
    %474 = arith.mulf %473, %471 : vector<16x16xf32>
    %475 = arith.addf %451, %474 : vector<16x16xf32>
    %c84 = arith.constant 84 : index
    %476 = memref.load %arg2[%c84] : memref<144xf32, #tpu.memory_space<smem>>
    %477 = vector.broadcast %476 : f32 to vector<16x16xf32>
    %478 = arith.mulf %477, %3 : vector<16x16xf32>
    %c85 = arith.constant 85 : index
    %479 = memref.load %arg2[%c85] : memref<144xf32, #tpu.memory_space<smem>>
    %480 = vector.broadcast %479 : f32 to vector<16x16xf32>
    %481 = arith.mulf %480, %4 : vector<16x16xf32>
    %482 = arith.addf %478, %481 : vector<16x16xf32>
    %c86 = arith.constant 86 : index
    %483 = memref.load %arg2[%c86] : memref<144xf32, #tpu.memory_space<smem>>
    %484 = vector.broadcast %483 : f32 to vector<16x16xf32>
    %485 = arith.mulf %484, %5 : vector<16x16xf32>
    %486 = arith.addf %482, %485 : vector<16x16xf32>
    %c87 = arith.constant 87 : index
    %487 = memref.load %arg2[%c87] : memref<144xf32, #tpu.memory_space<smem>>
    %488 = vector.broadcast %487 : f32 to vector<16x16xf32>
    %489 = arith.mulf %488, %6 : vector<16x16xf32>
    %490 = arith.addf %486, %489 : vector<16x16xf32>
    %c17_54 = arith.constant 17 : index
    %491 = memref.load %arg3[%c17_54] : memref<32xf32, #tpu.memory_space<smem>>
    %492 = vector.broadcast %491 : f32 to vector<16x16xf32>
    %493 = arith.addf %490, %492 : vector<16x16xf32>
    %cst_55 = arith.constant 0.000000e+00 : f32
    %494 = vector.broadcast %cst_55 : f32 to vector<16x16xf32>
    %495 = arith.maximumf %493, %494 : vector<16x16xf32>
    %c17_56 = arith.constant 17 : index
    %496 = memref.load %arg4[%c17_56] : memref<32xf32, #tpu.memory_space<smem>>
    %497 = vector.broadcast %496 : f32 to vector<16x16xf32>
    %498 = arith.mulf %497, %495 : vector<16x16xf32>
    %499 = arith.addf %475, %498 : vector<16x16xf32>
    %c88 = arith.constant 88 : index
    %500 = memref.load %arg2[%c88] : memref<144xf32, #tpu.memory_space<smem>>
    %501 = vector.broadcast %500 : f32 to vector<16x16xf32>
    %502 = arith.mulf %501, %3 : vector<16x16xf32>
    %c89 = arith.constant 89 : index
    %503 = memref.load %arg2[%c89] : memref<144xf32, #tpu.memory_space<smem>>
    %504 = vector.broadcast %503 : f32 to vector<16x16xf32>
    %505 = arith.mulf %504, %4 : vector<16x16xf32>
    %506 = arith.addf %502, %505 : vector<16x16xf32>
    %c90 = arith.constant 90 : index
    %507 = memref.load %arg2[%c90] : memref<144xf32, #tpu.memory_space<smem>>
    %508 = vector.broadcast %507 : f32 to vector<16x16xf32>
    %509 = arith.mulf %508, %5 : vector<16x16xf32>
    %510 = arith.addf %506, %509 : vector<16x16xf32>
    %c91 = arith.constant 91 : index
    %511 = memref.load %arg2[%c91] : memref<144xf32, #tpu.memory_space<smem>>
    %512 = vector.broadcast %511 : f32 to vector<16x16xf32>
    %513 = arith.mulf %512, %6 : vector<16x16xf32>
    %514 = arith.addf %510, %513 : vector<16x16xf32>
    %c18_57 = arith.constant 18 : index
    %515 = memref.load %arg3[%c18_57] : memref<32xf32, #tpu.memory_space<smem>>
    %516 = vector.broadcast %515 : f32 to vector<16x16xf32>
    %517 = arith.addf %514, %516 : vector<16x16xf32>
    %cst_58 = arith.constant 0.000000e+00 : f32
    %518 = vector.broadcast %cst_58 : f32 to vector<16x16xf32>
    %519 = arith.maximumf %517, %518 : vector<16x16xf32>
    %c18_59 = arith.constant 18 : index
    %520 = memref.load %arg4[%c18_59] : memref<32xf32, #tpu.memory_space<smem>>
    %521 = vector.broadcast %520 : f32 to vector<16x16xf32>
    %522 = arith.mulf %521, %519 : vector<16x16xf32>
    %523 = arith.addf %499, %522 : vector<16x16xf32>
    %c92 = arith.constant 92 : index
    %524 = memref.load %arg2[%c92] : memref<144xf32, #tpu.memory_space<smem>>
    %525 = vector.broadcast %524 : f32 to vector<16x16xf32>
    %526 = arith.mulf %525, %3 : vector<16x16xf32>
    %c93 = arith.constant 93 : index
    %527 = memref.load %arg2[%c93] : memref<144xf32, #tpu.memory_space<smem>>
    %528 = vector.broadcast %527 : f32 to vector<16x16xf32>
    %529 = arith.mulf %528, %4 : vector<16x16xf32>
    %530 = arith.addf %526, %529 : vector<16x16xf32>
    %c94 = arith.constant 94 : index
    %531 = memref.load %arg2[%c94] : memref<144xf32, #tpu.memory_space<smem>>
    %532 = vector.broadcast %531 : f32 to vector<16x16xf32>
    %533 = arith.mulf %532, %5 : vector<16x16xf32>
    %534 = arith.addf %530, %533 : vector<16x16xf32>
    %c95 = arith.constant 95 : index
    %535 = memref.load %arg2[%c95] : memref<144xf32, #tpu.memory_space<smem>>
    %536 = vector.broadcast %535 : f32 to vector<16x16xf32>
    %537 = arith.mulf %536, %6 : vector<16x16xf32>
    %538 = arith.addf %534, %537 : vector<16x16xf32>
    %c19_60 = arith.constant 19 : index
    %539 = memref.load %arg3[%c19_60] : memref<32xf32, #tpu.memory_space<smem>>
    %540 = vector.broadcast %539 : f32 to vector<16x16xf32>
    %541 = arith.addf %538, %540 : vector<16x16xf32>
    %cst_61 = arith.constant 0.000000e+00 : f32
    %542 = vector.broadcast %cst_61 : f32 to vector<16x16xf32>
    %543 = arith.maximumf %541, %542 : vector<16x16xf32>
    %c19_62 = arith.constant 19 : index
    %544 = memref.load %arg4[%c19_62] : memref<32xf32, #tpu.memory_space<smem>>
    %545 = vector.broadcast %544 : f32 to vector<16x16xf32>
    %546 = arith.mulf %545, %543 : vector<16x16xf32>
    %547 = arith.addf %523, %546 : vector<16x16xf32>
    %c96 = arith.constant 96 : index
    %548 = memref.load %arg2[%c96] : memref<144xf32, #tpu.memory_space<smem>>
    %549 = vector.broadcast %548 : f32 to vector<16x16xf32>
    %550 = arith.mulf %549, %3 : vector<16x16xf32>
    %c97 = arith.constant 97 : index
    %551 = memref.load %arg2[%c97] : memref<144xf32, #tpu.memory_space<smem>>
    %552 = vector.broadcast %551 : f32 to vector<16x16xf32>
    %553 = arith.mulf %552, %4 : vector<16x16xf32>
    %554 = arith.addf %550, %553 : vector<16x16xf32>
    %c98 = arith.constant 98 : index
    %555 = memref.load %arg2[%c98] : memref<144xf32, #tpu.memory_space<smem>>
    %556 = vector.broadcast %555 : f32 to vector<16x16xf32>
    %557 = arith.mulf %556, %5 : vector<16x16xf32>
    %558 = arith.addf %554, %557 : vector<16x16xf32>
    %c99 = arith.constant 99 : index
    %559 = memref.load %arg2[%c99] : memref<144xf32, #tpu.memory_space<smem>>
    %560 = vector.broadcast %559 : f32 to vector<16x16xf32>
    %561 = arith.mulf %560, %6 : vector<16x16xf32>
    %562 = arith.addf %558, %561 : vector<16x16xf32>
    %c20_63 = arith.constant 20 : index
    %563 = memref.load %arg3[%c20_63] : memref<32xf32, #tpu.memory_space<smem>>
    %564 = vector.broadcast %563 : f32 to vector<16x16xf32>
    %565 = arith.addf %562, %564 : vector<16x16xf32>
    %cst_64 = arith.constant 0.000000e+00 : f32
    %566 = vector.broadcast %cst_64 : f32 to vector<16x16xf32>
    %567 = arith.maximumf %565, %566 : vector<16x16xf32>
    %c20_65 = arith.constant 20 : index
    %568 = memref.load %arg4[%c20_65] : memref<32xf32, #tpu.memory_space<smem>>
    %569 = vector.broadcast %568 : f32 to vector<16x16xf32>
    %570 = arith.mulf %569, %567 : vector<16x16xf32>
    %571 = arith.addf %547, %570 : vector<16x16xf32>
    %c100 = arith.constant 100 : index
    %572 = memref.load %arg2[%c100] : memref<144xf32, #tpu.memory_space<smem>>
    %573 = vector.broadcast %572 : f32 to vector<16x16xf32>
    %574 = arith.mulf %573, %3 : vector<16x16xf32>
    %c101 = arith.constant 101 : index
    %575 = memref.load %arg2[%c101] : memref<144xf32, #tpu.memory_space<smem>>
    %576 = vector.broadcast %575 : f32 to vector<16x16xf32>
    %577 = arith.mulf %576, %4 : vector<16x16xf32>
    %578 = arith.addf %574, %577 : vector<16x16xf32>
    %c102 = arith.constant 102 : index
    %579 = memref.load %arg2[%c102] : memref<144xf32, #tpu.memory_space<smem>>
    %580 = vector.broadcast %579 : f32 to vector<16x16xf32>
    %581 = arith.mulf %580, %5 : vector<16x16xf32>
    %582 = arith.addf %578, %581 : vector<16x16xf32>
    %c103 = arith.constant 103 : index
    %583 = memref.load %arg2[%c103] : memref<144xf32, #tpu.memory_space<smem>>
    %584 = vector.broadcast %583 : f32 to vector<16x16xf32>
    %585 = arith.mulf %584, %6 : vector<16x16xf32>
    %586 = arith.addf %582, %585 : vector<16x16xf32>
    %c21_66 = arith.constant 21 : index
    %587 = memref.load %arg3[%c21_66] : memref<32xf32, #tpu.memory_space<smem>>
    %588 = vector.broadcast %587 : f32 to vector<16x16xf32>
    %589 = arith.addf %586, %588 : vector<16x16xf32>
    %cst_67 = arith.constant 0.000000e+00 : f32
    %590 = vector.broadcast %cst_67 : f32 to vector<16x16xf32>
    %591 = arith.maximumf %589, %590 : vector<16x16xf32>
    %c21_68 = arith.constant 21 : index
    %592 = memref.load %arg4[%c21_68] : memref<32xf32, #tpu.memory_space<smem>>
    %593 = vector.broadcast %592 : f32 to vector<16x16xf32>
    %594 = arith.mulf %593, %591 : vector<16x16xf32>
    %595 = arith.addf %571, %594 : vector<16x16xf32>
    %c104 = arith.constant 104 : index
    %596 = memref.load %arg2[%c104] : memref<144xf32, #tpu.memory_space<smem>>
    %597 = vector.broadcast %596 : f32 to vector<16x16xf32>
    %598 = arith.mulf %597, %3 : vector<16x16xf32>
    %c105 = arith.constant 105 : index
    %599 = memref.load %arg2[%c105] : memref<144xf32, #tpu.memory_space<smem>>
    %600 = vector.broadcast %599 : f32 to vector<16x16xf32>
    %601 = arith.mulf %600, %4 : vector<16x16xf32>
    %602 = arith.addf %598, %601 : vector<16x16xf32>
    %c106 = arith.constant 106 : index
    %603 = memref.load %arg2[%c106] : memref<144xf32, #tpu.memory_space<smem>>
    %604 = vector.broadcast %603 : f32 to vector<16x16xf32>
    %605 = arith.mulf %604, %5 : vector<16x16xf32>
    %606 = arith.addf %602, %605 : vector<16x16xf32>
    %c107 = arith.constant 107 : index
    %607 = memref.load %arg2[%c107] : memref<144xf32, #tpu.memory_space<smem>>
    %608 = vector.broadcast %607 : f32 to vector<16x16xf32>
    %609 = arith.mulf %608, %6 : vector<16x16xf32>
    %610 = arith.addf %606, %609 : vector<16x16xf32>
    %c22_69 = arith.constant 22 : index
    %611 = memref.load %arg3[%c22_69] : memref<32xf32, #tpu.memory_space<smem>>
    %612 = vector.broadcast %611 : f32 to vector<16x16xf32>
    %613 = arith.addf %610, %612 : vector<16x16xf32>
    %cst_70 = arith.constant 0.000000e+00 : f32
    %614 = vector.broadcast %cst_70 : f32 to vector<16x16xf32>
    %615 = arith.maximumf %613, %614 : vector<16x16xf32>
    %c22_71 = arith.constant 22 : index
    %616 = memref.load %arg4[%c22_71] : memref<32xf32, #tpu.memory_space<smem>>
    %617 = vector.broadcast %616 : f32 to vector<16x16xf32>
    %618 = arith.mulf %617, %615 : vector<16x16xf32>
    %619 = arith.addf %595, %618 : vector<16x16xf32>
    %c108 = arith.constant 108 : index
    %620 = memref.load %arg2[%c108] : memref<144xf32, #tpu.memory_space<smem>>
    %621 = vector.broadcast %620 : f32 to vector<16x16xf32>
    %622 = arith.mulf %621, %3 : vector<16x16xf32>
    %c109 = arith.constant 109 : index
    %623 = memref.load %arg2[%c109] : memref<144xf32, #tpu.memory_space<smem>>
    %624 = vector.broadcast %623 : f32 to vector<16x16xf32>
    %625 = arith.mulf %624, %4 : vector<16x16xf32>
    %626 = arith.addf %622, %625 : vector<16x16xf32>
    %c110 = arith.constant 110 : index
    %627 = memref.load %arg2[%c110] : memref<144xf32, #tpu.memory_space<smem>>
    %628 = vector.broadcast %627 : f32 to vector<16x16xf32>
    %629 = arith.mulf %628, %5 : vector<16x16xf32>
    %630 = arith.addf %626, %629 : vector<16x16xf32>
    %c111 = arith.constant 111 : index
    %631 = memref.load %arg2[%c111] : memref<144xf32, #tpu.memory_space<smem>>
    %632 = vector.broadcast %631 : f32 to vector<16x16xf32>
    %633 = arith.mulf %632, %6 : vector<16x16xf32>
    %634 = arith.addf %630, %633 : vector<16x16xf32>
    %c23_72 = arith.constant 23 : index
    %635 = memref.load %arg3[%c23_72] : memref<32xf32, #tpu.memory_space<smem>>
    %636 = vector.broadcast %635 : f32 to vector<16x16xf32>
    %637 = arith.addf %634, %636 : vector<16x16xf32>
    %cst_73 = arith.constant 0.000000e+00 : f32
    %638 = vector.broadcast %cst_73 : f32 to vector<16x16xf32>
    %639 = arith.maximumf %637, %638 : vector<16x16xf32>
    %c23_74 = arith.constant 23 : index
    %640 = memref.load %arg4[%c23_74] : memref<32xf32, #tpu.memory_space<smem>>
    %641 = vector.broadcast %640 : f32 to vector<16x16xf32>
    %642 = arith.mulf %641, %639 : vector<16x16xf32>
    %643 = arith.addf %619, %642 : vector<16x16xf32>
    %c112 = arith.constant 112 : index
    %644 = memref.load %arg2[%c112] : memref<144xf32, #tpu.memory_space<smem>>
    %645 = vector.broadcast %644 : f32 to vector<16x16xf32>
    %646 = arith.mulf %645, %3 : vector<16x16xf32>
    %c113 = arith.constant 113 : index
    %647 = memref.load %arg2[%c113] : memref<144xf32, #tpu.memory_space<smem>>
    %648 = vector.broadcast %647 : f32 to vector<16x16xf32>
    %649 = arith.mulf %648, %4 : vector<16x16xf32>
    %650 = arith.addf %646, %649 : vector<16x16xf32>
    %c114 = arith.constant 114 : index
    %651 = memref.load %arg2[%c114] : memref<144xf32, #tpu.memory_space<smem>>
    %652 = vector.broadcast %651 : f32 to vector<16x16xf32>
    %653 = arith.mulf %652, %5 : vector<16x16xf32>
    %654 = arith.addf %650, %653 : vector<16x16xf32>
    %c115 = arith.constant 115 : index
    %655 = memref.load %arg2[%c115] : memref<144xf32, #tpu.memory_space<smem>>
    %656 = vector.broadcast %655 : f32 to vector<16x16xf32>
    %657 = arith.mulf %656, %6 : vector<16x16xf32>
    %658 = arith.addf %654, %657 : vector<16x16xf32>
    %c24_75 = arith.constant 24 : index
    %659 = memref.load %arg3[%c24_75] : memref<32xf32, #tpu.memory_space<smem>>
    %660 = vector.broadcast %659 : f32 to vector<16x16xf32>
    %661 = arith.addf %658, %660 : vector<16x16xf32>
    %cst_76 = arith.constant 0.000000e+00 : f32
    %662 = vector.broadcast %cst_76 : f32 to vector<16x16xf32>
    %663 = arith.maximumf %661, %662 : vector<16x16xf32>
    %c24_77 = arith.constant 24 : index
    %664 = memref.load %arg4[%c24_77] : memref<32xf32, #tpu.memory_space<smem>>
    %665 = vector.broadcast %664 : f32 to vector<16x16xf32>
    %666 = arith.mulf %665, %663 : vector<16x16xf32>
    %667 = arith.addf %643, %666 : vector<16x16xf32>
    %c116 = arith.constant 116 : index
    %668 = memref.load %arg2[%c116] : memref<144xf32, #tpu.memory_space<smem>>
    %669 = vector.broadcast %668 : f32 to vector<16x16xf32>
    %670 = arith.mulf %669, %3 : vector<16x16xf32>
    %c117 = arith.constant 117 : index
    %671 = memref.load %arg2[%c117] : memref<144xf32, #tpu.memory_space<smem>>
    %672 = vector.broadcast %671 : f32 to vector<16x16xf32>
    %673 = arith.mulf %672, %4 : vector<16x16xf32>
    %674 = arith.addf %670, %673 : vector<16x16xf32>
    %c118 = arith.constant 118 : index
    %675 = memref.load %arg2[%c118] : memref<144xf32, #tpu.memory_space<smem>>
    %676 = vector.broadcast %675 : f32 to vector<16x16xf32>
    %677 = arith.mulf %676, %5 : vector<16x16xf32>
    %678 = arith.addf %674, %677 : vector<16x16xf32>
    %c119 = arith.constant 119 : index
    %679 = memref.load %arg2[%c119] : memref<144xf32, #tpu.memory_space<smem>>
    %680 = vector.broadcast %679 : f32 to vector<16x16xf32>
    %681 = arith.mulf %680, %6 : vector<16x16xf32>
    %682 = arith.addf %678, %681 : vector<16x16xf32>
    %c25_78 = arith.constant 25 : index
    %683 = memref.load %arg3[%c25_78] : memref<32xf32, #tpu.memory_space<smem>>
    %684 = vector.broadcast %683 : f32 to vector<16x16xf32>
    %685 = arith.addf %682, %684 : vector<16x16xf32>
    %cst_79 = arith.constant 0.000000e+00 : f32
    %686 = vector.broadcast %cst_79 : f32 to vector<16x16xf32>
    %687 = arith.maximumf %685, %686 : vector<16x16xf32>
    %c25_80 = arith.constant 25 : index
    %688 = memref.load %arg4[%c25_80] : memref<32xf32, #tpu.memory_space<smem>>
    %689 = vector.broadcast %688 : f32 to vector<16x16xf32>
    %690 = arith.mulf %689, %687 : vector<16x16xf32>
    %691 = arith.addf %667, %690 : vector<16x16xf32>
    %c120 = arith.constant 120 : index
    %692 = memref.load %arg2[%c120] : memref<144xf32, #tpu.memory_space<smem>>
    %693 = vector.broadcast %692 : f32 to vector<16x16xf32>
    %694 = arith.mulf %693, %3 : vector<16x16xf32>
    %c121 = arith.constant 121 : index
    %695 = memref.load %arg2[%c121] : memref<144xf32, #tpu.memory_space<smem>>
    %696 = vector.broadcast %695 : f32 to vector<16x16xf32>
    %697 = arith.mulf %696, %4 : vector<16x16xf32>
    %698 = arith.addf %694, %697 : vector<16x16xf32>
    %c122 = arith.constant 122 : index
    %699 = memref.load %arg2[%c122] : memref<144xf32, #tpu.memory_space<smem>>
    %700 = vector.broadcast %699 : f32 to vector<16x16xf32>
    %701 = arith.mulf %700, %5 : vector<16x16xf32>
    %702 = arith.addf %698, %701 : vector<16x16xf32>
    %c123 = arith.constant 123 : index
    %703 = memref.load %arg2[%c123] : memref<144xf32, #tpu.memory_space<smem>>
    %704 = vector.broadcast %703 : f32 to vector<16x16xf32>
    %705 = arith.mulf %704, %6 : vector<16x16xf32>
    %706 = arith.addf %702, %705 : vector<16x16xf32>
    %c26_81 = arith.constant 26 : index
    %707 = memref.load %arg3[%c26_81] : memref<32xf32, #tpu.memory_space<smem>>
    %708 = vector.broadcast %707 : f32 to vector<16x16xf32>
    %709 = arith.addf %706, %708 : vector<16x16xf32>
    %cst_82 = arith.constant 0.000000e+00 : f32
    %710 = vector.broadcast %cst_82 : f32 to vector<16x16xf32>
    %711 = arith.maximumf %709, %710 : vector<16x16xf32>
    %c26_83 = arith.constant 26 : index
    %712 = memref.load %arg4[%c26_83] : memref<32xf32, #tpu.memory_space<smem>>
    %713 = vector.broadcast %712 : f32 to vector<16x16xf32>
    %714 = arith.mulf %713, %711 : vector<16x16xf32>
    %715 = arith.addf %691, %714 : vector<16x16xf32>
    %c124 = arith.constant 124 : index
    %716 = memref.load %arg2[%c124] : memref<144xf32, #tpu.memory_space<smem>>
    %717 = vector.broadcast %716 : f32 to vector<16x16xf32>
    %718 = arith.mulf %717, %3 : vector<16x16xf32>
    %c125 = arith.constant 125 : index
    %719 = memref.load %arg2[%c125] : memref<144xf32, #tpu.memory_space<smem>>
    %720 = vector.broadcast %719 : f32 to vector<16x16xf32>
    %721 = arith.mulf %720, %4 : vector<16x16xf32>
    %722 = arith.addf %718, %721 : vector<16x16xf32>
    %c126 = arith.constant 126 : index
    %723 = memref.load %arg2[%c126] : memref<144xf32, #tpu.memory_space<smem>>
    %724 = vector.broadcast %723 : f32 to vector<16x16xf32>
    %725 = arith.mulf %724, %5 : vector<16x16xf32>
    %726 = arith.addf %722, %725 : vector<16x16xf32>
    %c127 = arith.constant 127 : index
    %727 = memref.load %arg2[%c127] : memref<144xf32, #tpu.memory_space<smem>>
    %728 = vector.broadcast %727 : f32 to vector<16x16xf32>
    %729 = arith.mulf %728, %6 : vector<16x16xf32>
    %730 = arith.addf %726, %729 : vector<16x16xf32>
    %c27_84 = arith.constant 27 : index
    %731 = memref.load %arg3[%c27_84] : memref<32xf32, #tpu.memory_space<smem>>
    %732 = vector.broadcast %731 : f32 to vector<16x16xf32>
    %733 = arith.addf %730, %732 : vector<16x16xf32>
    %cst_85 = arith.constant 0.000000e+00 : f32
    %734 = vector.broadcast %cst_85 : f32 to vector<16x16xf32>
    %735 = arith.maximumf %733, %734 : vector<16x16xf32>
    %c27_86 = arith.constant 27 : index
    %736 = memref.load %arg4[%c27_86] : memref<32xf32, #tpu.memory_space<smem>>
    %737 = vector.broadcast %736 : f32 to vector<16x16xf32>
    %738 = arith.mulf %737, %735 : vector<16x16xf32>
    %739 = arith.addf %715, %738 : vector<16x16xf32>
    %c128 = arith.constant 128 : index
    %740 = memref.load %arg2[%c128] : memref<144xf32, #tpu.memory_space<smem>>
    %741 = vector.broadcast %740 : f32 to vector<16x16xf32>
    %742 = arith.mulf %741, %3 : vector<16x16xf32>
    %c129 = arith.constant 129 : index
    %743 = memref.load %arg2[%c129] : memref<144xf32, #tpu.memory_space<smem>>
    %744 = vector.broadcast %743 : f32 to vector<16x16xf32>
    %745 = arith.mulf %744, %4 : vector<16x16xf32>
    %746 = arith.addf %742, %745 : vector<16x16xf32>
    %c130 = arith.constant 130 : index
    %747 = memref.load %arg2[%c130] : memref<144xf32, #tpu.memory_space<smem>>
    %748 = vector.broadcast %747 : f32 to vector<16x16xf32>
    %749 = arith.mulf %748, %5 : vector<16x16xf32>
    %750 = arith.addf %746, %749 : vector<16x16xf32>
    %c131 = arith.constant 131 : index
    %751 = memref.load %arg2[%c131] : memref<144xf32, #tpu.memory_space<smem>>
    %752 = vector.broadcast %751 : f32 to vector<16x16xf32>
    %753 = arith.mulf %752, %6 : vector<16x16xf32>
    %754 = arith.addf %750, %753 : vector<16x16xf32>
    %c28_87 = arith.constant 28 : index
    %755 = memref.load %arg3[%c28_87] : memref<32xf32, #tpu.memory_space<smem>>
    %756 = vector.broadcast %755 : f32 to vector<16x16xf32>
    %757 = arith.addf %754, %756 : vector<16x16xf32>
    %cst_88 = arith.constant 0.000000e+00 : f32
    %758 = vector.broadcast %cst_88 : f32 to vector<16x16xf32>
    %759 = arith.maximumf %757, %758 : vector<16x16xf32>
    %c28_89 = arith.constant 28 : index
    %760 = memref.load %arg4[%c28_89] : memref<32xf32, #tpu.memory_space<smem>>
    %761 = vector.broadcast %760 : f32 to vector<16x16xf32>
    %762 = arith.mulf %761, %759 : vector<16x16xf32>
    %763 = arith.addf %739, %762 : vector<16x16xf32>
    %c132 = arith.constant 132 : index
    %764 = memref.load %arg2[%c132] : memref<144xf32, #tpu.memory_space<smem>>
    %765 = vector.broadcast %764 : f32 to vector<16x16xf32>
    %766 = arith.mulf %765, %3 : vector<16x16xf32>
    %c133 = arith.constant 133 : index
    %767 = memref.load %arg2[%c133] : memref<144xf32, #tpu.memory_space<smem>>
    %768 = vector.broadcast %767 : f32 to vector<16x16xf32>
    %769 = arith.mulf %768, %4 : vector<16x16xf32>
    %770 = arith.addf %766, %769 : vector<16x16xf32>
    %c134 = arith.constant 134 : index
    %771 = memref.load %arg2[%c134] : memref<144xf32, #tpu.memory_space<smem>>
    %772 = vector.broadcast %771 : f32 to vector<16x16xf32>
    %773 = arith.mulf %772, %5 : vector<16x16xf32>
    %774 = arith.addf %770, %773 : vector<16x16xf32>
    %c135 = arith.constant 135 : index
    %775 = memref.load %arg2[%c135] : memref<144xf32, #tpu.memory_space<smem>>
    %776 = vector.broadcast %775 : f32 to vector<16x16xf32>
    %777 = arith.mulf %776, %6 : vector<16x16xf32>
    %778 = arith.addf %774, %777 : vector<16x16xf32>
    %c29_90 = arith.constant 29 : index
    %779 = memref.load %arg3[%c29_90] : memref<32xf32, #tpu.memory_space<smem>>
    %780 = vector.broadcast %779 : f32 to vector<16x16xf32>
    %781 = arith.addf %778, %780 : vector<16x16xf32>
    %cst_91 = arith.constant 0.000000e+00 : f32
    %782 = vector.broadcast %cst_91 : f32 to vector<16x16xf32>
    %783 = arith.maximumf %781, %782 : vector<16x16xf32>
    %c29_92 = arith.constant 29 : index
    %784 = memref.load %arg4[%c29_92] : memref<32xf32, #tpu.memory_space<smem>>
    %785 = vector.broadcast %784 : f32 to vector<16x16xf32>
    %786 = arith.mulf %785, %783 : vector<16x16xf32>
    %787 = arith.addf %763, %786 : vector<16x16xf32>
    %c136 = arith.constant 136 : index
    %788 = memref.load %arg2[%c136] : memref<144xf32, #tpu.memory_space<smem>>
    %789 = vector.broadcast %788 : f32 to vector<16x16xf32>
    %790 = arith.mulf %789, %3 : vector<16x16xf32>
    %c137 = arith.constant 137 : index
    %791 = memref.load %arg2[%c137] : memref<144xf32, #tpu.memory_space<smem>>
    %792 = vector.broadcast %791 : f32 to vector<16x16xf32>
    %793 = arith.mulf %792, %4 : vector<16x16xf32>
    %794 = arith.addf %790, %793 : vector<16x16xf32>
    %c138 = arith.constant 138 : index
    %795 = memref.load %arg2[%c138] : memref<144xf32, #tpu.memory_space<smem>>
    %796 = vector.broadcast %795 : f32 to vector<16x16xf32>
    %797 = arith.mulf %796, %5 : vector<16x16xf32>
    %798 = arith.addf %794, %797 : vector<16x16xf32>
    %c139 = arith.constant 139 : index
    %799 = memref.load %arg2[%c139] : memref<144xf32, #tpu.memory_space<smem>>
    %800 = vector.broadcast %799 : f32 to vector<16x16xf32>
    %801 = arith.mulf %800, %6 : vector<16x16xf32>
    %802 = arith.addf %798, %801 : vector<16x16xf32>
    %c30_93 = arith.constant 30 : index
    %803 = memref.load %arg3[%c30_93] : memref<32xf32, #tpu.memory_space<smem>>
    %804 = vector.broadcast %803 : f32 to vector<16x16xf32>
    %805 = arith.addf %802, %804 : vector<16x16xf32>
    %cst_94 = arith.constant 0.000000e+00 : f32
    %806 = vector.broadcast %cst_94 : f32 to vector<16x16xf32>
    %807 = arith.maximumf %805, %806 : vector<16x16xf32>
    %c30_95 = arith.constant 30 : index
    %808 = memref.load %arg4[%c30_95] : memref<32xf32, #tpu.memory_space<smem>>
    %809 = vector.broadcast %808 : f32 to vector<16x16xf32>
    %810 = arith.mulf %809, %807 : vector<16x16xf32>
    %811 = arith.addf %787, %810 : vector<16x16xf32>
    %c140 = arith.constant 140 : index
    %812 = memref.load %arg2[%c140] : memref<144xf32, #tpu.memory_space<smem>>
    %813 = vector.broadcast %812 : f32 to vector<16x16xf32>
    %814 = arith.mulf %813, %3 : vector<16x16xf32>
    %c141 = arith.constant 141 : index
    %815 = memref.load %arg2[%c141] : memref<144xf32, #tpu.memory_space<smem>>
    %816 = vector.broadcast %815 : f32 to vector<16x16xf32>
    %817 = arith.mulf %816, %4 : vector<16x16xf32>
    %818 = arith.addf %814, %817 : vector<16x16xf32>
    %c142 = arith.constant 142 : index
    %819 = memref.load %arg2[%c142] : memref<144xf32, #tpu.memory_space<smem>>
    %820 = vector.broadcast %819 : f32 to vector<16x16xf32>
    %821 = arith.mulf %820, %5 : vector<16x16xf32>
    %822 = arith.addf %818, %821 : vector<16x16xf32>
    %c143 = arith.constant 143 : index
    %823 = memref.load %arg2[%c143] : memref<144xf32, #tpu.memory_space<smem>>
    %824 = vector.broadcast %823 : f32 to vector<16x16xf32>
    %825 = arith.mulf %824, %6 : vector<16x16xf32>
    %826 = arith.addf %822, %825 : vector<16x16xf32>
    %c31_96 = arith.constant 31 : index
    %827 = memref.load %arg3[%c31_96] : memref<32xf32, #tpu.memory_space<smem>>
    %828 = vector.broadcast %827 : f32 to vector<16x16xf32>
    %829 = arith.addf %826, %828 : vector<16x16xf32>
    %cst_97 = arith.constant 0.000000e+00 : f32
    %830 = vector.broadcast %cst_97 : f32 to vector<16x16xf32>
    %831 = arith.maximumf %829, %830 : vector<16x16xf32>
    %c31_98 = arith.constant 31 : index
    %832 = memref.load %arg4[%c31_98] : memref<32xf32, #tpu.memory_space<smem>>
    %833 = vector.broadcast %832 : f32 to vector<16x16xf32>
    %834 = arith.mulf %833, %831 : vector<16x16xf32>
    %835 = arith.addf %811, %834 : vector<16x16xf32>
    %c0_99 = arith.constant 0 : index
    %c0_100 = arith.constant 0 : index
    %836 = vector.load %arg7[%c0_99, %c0_100] : memref<16x16xf32, #tpu.memory_space<vmem>>, vector<16x16xf32>
    %cst_101 = arith.constant dense<0.000000e+00> : vector<16x16xf32>
    %837 = tpu.matmul %836, %835, %cst_101 {dimension_numbers = #tpu.dot_dimension_numbers<[1], [0], [0], [1], [0, 0, 1, 1], [], []>} : vector<16x16xf32>, vector<16x16xf32>, vector<16x16xf32> -> vector<16x16xf32>
    %c0_102 = arith.constant 0 : index
    %c0_103 = arith.constant 0 : index
    %838 = vector.load %arg8[%c0_102, %c0_103] : memref<16x16xf32, #tpu.memory_space<vmem>>, vector<16x16xf32>
    %cst_104 = arith.constant dense<0.000000e+00> : vector<16x16xf32>
    %839 = tpu.matmul %837, %838, %cst_104 {dimension_numbers = #tpu.dot_dimension_numbers<[1], [0], [0], [1], [0, 0, 1, 1], [], []>} : vector<16x16xf32>, vector<16x16xf32>, vector<16x16xf32> -> vector<16x16xf32>
    %840 = arith.negf %839 : vector<16x16xf32>
    %841 = math.exp %840 : vector<16x16xf32>
    %cst_105 = arith.constant 1.000000e+00 : f32
    %842 = vector.broadcast %cst_105 : f32 to vector<16x16xf32>
    %843 = arith.addf %842, %841 : vector<16x16xf32>
    %844 = arith.divf %842, %843 : vector<16x16xf32>
    %c0_106 = arith.constant 0 : index
    %c0_107 = arith.constant 0 : index
    %845 = vector.load %arg5[%c0_106, %c0_107] : memref<32x16xf32, #tpu.memory_space<vmem>>, vector<32x16xf32>
    %cst_108 = arith.constant dense<0.000000e+00> : vector<32x16xf32>
    %846 = tpu.matmul %845, %835, %cst_108 {dimension_numbers = #tpu.dot_dimension_numbers<[1], [0], [0], [1], [0, 0, 1, 1], [], []>} : vector<32x16xf32>, vector<16x16xf32>, vector<32x16xf32> -> vector<32x16xf32>
    %c0_109 = arith.constant 0 : index
    %c0_110 = arith.constant 0 : index
    %847 = vector.load %arg6[%c0_109, %c0_110] : memref<16x32xf32, #tpu.memory_space<vmem>>, vector<16x32xf32>
    %cst_111 = arith.constant dense<0.000000e+00> : vector<32x32xf32>
    %848 = tpu.matmul %846, %847, %cst_111 {dimension_numbers = #tpu.dot_dimension_numbers<[1], [0], [0], [1], [0, 0, 1, 1], [], []>} : vector<32x16xf32>, vector<16x32xf32>, vector<32x32xf32> -> vector<32x32xf32>
    %c0_112 = arith.constant 0 : index
    %c0_113 = arith.constant 0 : index
    %c0_114 = arith.constant 0 : index
    %849 = vector.load %arg9[%c0_112, %c0_113, %c0_114] : memref<1x32x32xf32, #tpu.memory_space<vmem>>, vector<1x32x32xf32>
    %850 = vector.shape_cast %849 : vector<1x32x32xf32> to vector<32x32xf32>
    %851 = vector.shape_cast %848 : vector<32x32xf32> to vector<1x32x32xf32>
    tpu.vector_store %arg9[%c0_112, %c0_113, %c0_114], %851 {strides = array<i32>} : memref<1x32x32xf32, #tpu.memory_space<vmem>>, vector<1x32x32xf32>,
    %852 = arith.mulf %21, %844 : vector<16x16xf32>
    %853 = arith.addf %3, %852 : vector<16x16xf32>
    %c0_115 = arith.constant 0 : index
    %c0_116 = arith.constant 0 : index
    %c0_117 = arith.constant 0 : index
    %854 = vector.load %arg10[%c0_115, %c0_116, %c0_117] : memref<1x64x16xf32, #tpu.memory_space<vmem>>, vector<1x16x16xf32>
    %855 = vector.shape_cast %854 : vector<1x16x16xf32> to vector<16x16xf32>
    %856 = vector.shape_cast %853 : vector<16x16xf32> to vector<1x16x16xf32>
    tpu.vector_store %arg10[%c0_115, %c0_116, %c0_117], %856 {strides = array<i32>} : memref<1x64x16xf32, #tpu.memory_space<vmem>>, vector<1x16x16xf32>,
    %857 = arith.mulf %36, %844 : vector<16x16xf32>
    %858 = arith.addf %4, %857 : vector<16x16xf32>
    %c0_118 = arith.constant 0 : index
    %c16_119 = arith.constant 16 : index
    %c0_120 = arith.constant 0 : index
    %859 = vector.load %arg10[%c0_118, %c16_119, %c0_120] : memref<1x64x16xf32, #tpu.memory_space<vmem>>, vector<1x16x16xf32>
    %860 = vector.shape_cast %859 : vector<1x16x16xf32> to vector<16x16xf32>
    %861 = vector.shape_cast %858 : vector<16x16xf32> to vector<1x16x16xf32>
    tpu.vector_store %arg10[%c0_118, %c16_119, %c0_120], %861 {strides = array<i32>} : memref<1x64x16xf32, #tpu.memory_space<vmem>>, vector<1x16x16xf32>,
    %862 = arith.mulf %51, %844 : vector<16x16xf32>
    %863 = arith.addf %5, %862 : vector<16x16xf32>
    %c0_121 = arith.constant 0 : index
    %c32_122 = arith.constant 32 : index
    %c0_123 = arith.constant 0 : index
    %864 = vector.load %arg10[%c0_121, %c32_122, %c0_123] : memref<1x64x16xf32, #tpu.memory_space<vmem>>, vector<1x16x16xf32>
    %865 = vector.shape_cast %864 : vector<1x16x16xf32> to vector<16x16xf32>
    %866 = vector.shape_cast %863 : vector<16x16xf32> to vector<1x16x16xf32>
    tpu.vector_store %arg10[%c0_121, %c32_122, %c0_123], %866 {strides = array<i32>} : memref<1x64x16xf32, #tpu.memory_space<vmem>>, vector<1x16x16xf32>,
    %867 = arith.mulf %66, %844 : vector<16x16xf32>
    %868 = arith.addf %6, %867 : vector<16x16xf32>
    %c0_124 = arith.constant 0 : index
    %c48_125 = arith.constant 48 : index
    %c0_126 = arith.constant 0 : index
    %869 = vector.load %arg10[%c0_124, %c48_125, %c0_126] : memref<1x64x16xf32, #tpu.memory_space<vmem>>, vector<1x16x16xf32>
    %870 = vector.shape_cast %869 : vector<1x16x16xf32> to vector<16x16xf32>
    %871 = vector.shape_cast %868 : vector<16x16xf32> to vector<1x16x16xf32>
    tpu.vector_store %arg10[%c0_124, %c48_125, %c0_126], %871 {strides = array<i32>} : memref<1x64x16xf32, #tpu.memory_space<vmem>>, vector<1x16x16xf32>,
    return
  }
  func.func @transform_0(%arg0: i32) -> (i32, i32, i32) {
    %c0_i32 = arith.constant 0 : i32
    %c0_i32_0 = arith.constant 0 : i32
    %c0_i32_1 = arith.constant 0 : i32
    return %arg0, %c0_i32, %c0_i32_0 : i32, i32, i32
  }
  func.func @transform_1(%arg0: i32) -> i32 {
    %c0_i32 = arith.constant 0 : i32
    %c0_i32_0 = arith.constant 0 : i32
    return %c0_i32 : i32
  }
  func.func @transform_2(%arg0: i32) -> i32 {
    %c0_i32 = arith.constant 0 : i32
    %c0_i32_0 = arith.constant 0 : i32
    return %c0_i32 : i32
  }
  func.func @transform_3(%arg0: i32) -> i32 {
    %c0_i32 = arith.constant 0 : i32
    %c0_i32_0 = arith.constant 0 : i32
    return %c0_i32 : i32
  }
  func.func @transform_4(%arg0: i32) -> (i32, i32) {
    %c0_i32 = arith.constant 0 : i32
    %c0_i32_0 = arith.constant 0 : i32
    %c0_i32_1 = arith.constant 0 : i32
    return %c0_i32, %c0_i32_0 : i32, i32
  }
  func.func @transform_5(%arg0: i32) -> (i32, i32) {
    %c0_i32 = arith.constant 0 : i32
    %c0_i32_0 = arith.constant 0 : i32
    %c0_i32_1 = arith.constant 0 : i32
    return %c0_i32, %c0_i32_0 : i32, i32
  }
  func.func @transform_6(%arg0: i32) -> (i32, i32) {
    %c0_i32 = arith.constant 0 : i32
    %c0_i32_0 = arith.constant 0 : i32
    %c0_i32_1 = arith.constant 0 : i32
    return %c0_i32, %c0_i32_0 : i32, i32
  }
  func.func @transform_7(%arg0: i32) -> (i32, i32) {
    %c0_i32 = arith.constant 0 : i32
    %c0_i32_0 = arith.constant 0 : i32
    %c0_i32_1 = arith.constant 0 : i32
    return %c0_i32, %c0_i32_0 : i32, i32
  }
  func.func @transform_8(%arg0: i32) -> (i32, i32, i32) {
    %c0_i32 = arith.constant 0 : i32
    %c0_i32_0 = arith.constant 0 : i32
    %c0_i32_1 = arith.constant 0 : i32
    return %arg0, %c0_i32, %c0_i32_0 : i32, i32, i32
  }
  func.func @transform_9(%arg0: i32) -> (i32, i32, i32) {
    %c0_i32 = arith.constant 0 : i32
    %c0_i32_0 = arith.constant 0 : i32
    %c0_i32_1 = arith.constant 0 : i32
    return %arg0, %c0_i32, %c0_i32_0 : i32, i32, i32
  }
}

</mosaic_0001>

<llo_original>
// kernel: dsm_forward.1
$region0: #{dsm_forward.1}
  #allocation0 [shape = 'u32[]', space=smem, size = 0x4, offset = 0x4, fixed_abs, tag = 'smem constant byte address 0x4 - core index']
  #allocation1 [shape = 'u32[144,128]{1,0:T(1,128)}', space=vmem, size = 0x12000, scoped, tag = 'internal scratch']
  %s0 = inlined_call_operand.vmem [shape: bf16[2,64,16], index: 0, kind: input, shape index: {}]
  %s1 = inlined_call_operand.vmem [shape: f32[144], index: 1, kind: input, shape index: {}]
  %s2 = inlined_call_operand.vmem [shape: f32[32], index: 2, kind: input, shape index: {}]
  %s3 = inlined_call_operand.vmem [shape: f32[32], index: 3, kind: input, shape index: {}]
  %s4 = inlined_call_operand.vmem [shape: f32[32,16], index: 4, kind: input, shape index: {}]
  %s5 = inlined_call_operand.vmem [shape: f32[16,32], index: 5, kind: input, shape index: {}]
  %s6 = inlined_call_operand.vmem [shape: f32[16,16], index: 6, kind: input, shape index: {}, may-alias: {6,7}]
  %s7 = inlined_call_operand.vmem [shape: f32[16,16], index: 7, kind: input, shape index: {}, may-alias: {6,7}]
  %s8 = inlined_call_operand.hbm [shape: f32[2,32,32], index: 8, kind: output, shape index: {0}]
  %s9 = inlined_call_operand.hbm [shape: f32[2,64,16], index: 9, kind: output, shape index: {1}]
  %10 = xla_tuple %s8, %s9
  %s11 = sld [smem:[#allocation0]]
  $region85: #{dsm_forward.1} parent=0
    _
  %s13 = ssub.s32 1, %s11
  %s14 = scalar_select 0, %s13, %s11
  $region1: #{dsm_forward.1} parent=0
    #allocation2 [shape = 'u8[1024]{0}', space=smem, size = 0x400, scoped, tag = 'input window, operand 1, single buffered']
    #allocation3 [shape = 's32[2]{0}', space=sflag, size = 0x8, scoped, tag = 'scoped memory for dsm_forward.1']
    #allocation4 [shape = 's32[2]{0}', space=sflag, size = 0x8, scoped, tag = 'scoped memory for dsm_forward.1']
    #allocation5 [shape = 'u8[512]{0}', space=smem, size = 0x200, scoped, tag = 'input window, operand 2, single buffered']
    #allocation6 [shape = 's32[1]{0}', space=sflag, size = 0x4, scoped, tag = 'scoped memory for dsm_forward.1']
    #allocation7 [shape = 'u8[512]{0}', space=smem, size = 0x200, scoped, tag = 'input window, operand 3, single buffered']
    #allocation8 [shape = 'u8[32768]{0}', space=vmem, size = 0x8000, scoped, tag = 'output window, operand 0']
    #allocation9 [shape = 'u8[65536]{0}', space=vmem, size = 0x10000, scoped, tag = 'output window, operand 1']
    #allocation10 [shape = 's32[2]{0}', space=sflag, size = 0x8, scoped, tag = 'scoped memory for dsm_forward.1']
    %15 = vsyncpa [#allocation4], 0
    %16 = vsyncpa [#allocation6], 0
    %17 = vsyncpa [#allocation3], 0
    %s18 = scalar_lea.sflag [#allocation3], 1
    %19 = vsyncpa %s18, 0
    %20 = vsyncpa [#allocation10], 0
    %s21 = scalar_lea.sflag [#allocation10], 1
    %22 = vsyncpa %s21, 0
    loop: start=0, step=1, limit=4
    $region2: #{dsm_forward.1} parent=1 // loop_pre_header
      _
    $region3: #{dsm_forward.1} parent=1 // loop_header
      %s24 = sphi 0, %s28
      %p25 = scmp.ge.s32.totalorder %s24, 4
      %s34 = sphi 0, %s36
      %s37 = sphi 0, %s34
      %s38 = sphi 0, %s37
      %s54 = sphi 0, %s38
      %s58 = sphi 0, %s58
      %s60 = sphi 0, %s58
      %s61 = sphi 0, %s60
      %s75 = sphi 0, %s61
      %s79 = sphi 0, %s79
      %s81 = sphi 0, %s79
      %s82 = sphi 0, %s81
      %s96 = sphi 0, %s82
      %s100 = sphi 0, %s100
      %s102 = sphi 0, %s100
      %s103 = sphi 0, %s102
      %s117 = sphi 0, %s103
      %s121 = sphi 0, %s121
      %s123 = sphi 0, %s121
      %s124 = sphi 0, %s123
      %s138 = sphi 0, %s124
      %s142 = sphi 0, %s142
      %s144 = sphi 0, %s142
      %s145 = sphi 0, %s144
      %s159 = sphi 0, %s145
      %s163 = sphi 0, %s163
      %s165 = sphi 0, %s163
      %s166 = sphi 0, %s165
      %s180 = sphi 0, %s166
      %s184 = sphi 0, %s184
      %s186 = sphi 0, %s184
      %s187 = sphi 0, %s186
      %s201 = sphi 0, %s187
      %s207 = sphi 0, %s209
      %s210 = sphi 0, %s207
      %s211 = sphi 0, %s210
      %s227 = sphi 0, %s211
      %s233 = sphi 0, %s235
      %s236 = sphi 0, %s233
      %s237 = sphi 0, %s236
      %s253 = sphi 0, %s237
    $region4: #{dsm_forward.1} parent=1 // loop_header_branch
      %27 = sbr.rel (%p25) target = $region8
    $region5: #{dsm_forward.1} parent=1 // loop_body
      %s29 = ssub.s32 %s24, 1
      %s30 = ssub.s32 %s24, 2
      %s31 = sadd.s32 %s24, 1
      %s32 = ssub.s32 %s24, %s31
      %p33 = scmp.eq.s32.totalorder %s32, 0
      %s35 = sadd.s32 %s34, 1
      %s36 = scalar_select %p33, %s34, %s35
      %p39 = pneg %p33
      %p40 = scmp.eq.s32.totalorder %s24, 1
      %p41 = por %p39, %p40
      %p42 = scmp.ne.s32.totalorder %s34, %s37
      %p43 = scmp.eq.s32.totalorder %s24, 0
      %p44 = por %p42, %p43
      %p45 = scmp.ne.s32.totalorder %s34, %s37
      %p46 = scmp.eq.s32.totalorder %s29, 1
      %p47 = por %p45, %p46
      %p48 = scmp.ne.s32.totalorder %s37, %s38
      %p49 = scmp.eq.s32.totalorder %s29, 0
      %p50 = por %p48, %p49
      %p51 = scmp.ne.s32.totalorder %s37, %s38
      %p52 = scmp.eq.s32.totalorder %s30, 1
      %p53 = por %p51, %p52
      %p55 = scmp.ne.s32.totalorder %s38, %s54
      %p56 = scmp.eq.s32.totalorder %s30, 0
      %p57 = por %p55, %p56
      %s59 = sadd.s32 %s58, 1
      %p62 = scmp.eq.s32.totalorder %s24, 1
      %p63 = scmp.ne.s32.totalorder %s58, %s60
      %p64 = scmp.eq.s32.totalorder %s24, 0
      %p65 = por %p63, %p64
      %p66 = scmp.ne.s32.totalorder %s58, %s60
      %p67 = scmp.eq.s32.totalorder %s29, 1
      %p68 = por %p66, %p67
      %p69 = scmp.ne.s32.totalorder %s60, %s61
      %p70 = scmp.eq.s32.totalorder %s29, 0
      %p71 = por %p69, %p70
      %p72 = scmp.ne.s32.totalorder %s60, %s61
      %p73 = scmp.eq.s32.totalorder %s30, 1
      %p74 = por %p72, %p73
      %p76 = scmp.ne.s32.totalorder %s61, %s75
      %p77 = scmp.eq.s32.totalorder %s30, 0
      %p78 = por %p76, %p77
      %s80 = sadd.s32 %s79, 1
      %p83 = scmp.eq.s32.totalorder %s24, 1
      %p84 = scmp.ne.s32.totalorder %s79, %s81
      %p85 = scmp.eq.s32.totalorder %s24, 0
      %p86 = por %p84, %p85
      %p87 = scmp.ne.s32.totalorder %s79, %s81
      %p88 = scmp.eq.s32.totalorder %s29, 1
      %p89 = por %p87, %p88
      %p90 = scmp.ne.s32.totalorder %s81, %s82
      %p91 = scmp.eq.s32.totalorder %s29, 0
      %p92 = por %p90, %p91
      %p93 = scmp.ne.s32.totalorder %s81, %s82
      %p94 = scmp.eq.s32.totalorder %s30, 1
      %p95 = por %p93, %p94
      %p97 = scmp.ne.s32.totalorder %s82, %s96
      %p98 = scmp.eq.s32.totalorder %s30, 0
      %p99 = por %p97, %p98
      %s101 = sadd.s32 %s100, 1
      %p104 = scmp.eq.s32.totalorder %s24, 1
      %p105 = scmp.ne.s32.totalorder %s100, %s102
      %p106 = scmp.eq.s32.totalorder %s24, 0
      %p107 = por %p105, %p106
      %p108 = scmp.ne.s32.totalorder %s100, %s102
      %p109 = scmp.eq.s32.totalorder %s29, 1
      %p110 = por %p108, %p109
      %p111 = scmp.ne.s32.totalorder %s102, %s103
      %p112 = scmp.eq.s32.totalorder %s29, 0
      %p113 = por %p111, %p112
      %p114 = scmp.ne.s32.totalorder %s102, %s103
      %p115 = scmp.eq.s32.totalorder %s30, 1
      %p116 = por %p114, %p115
      %p118 = scmp.ne.s32.totalorder %s103, %s117
      %p119 = scmp.eq.s32.totalorder %s30, 0
      %p120 = por %p118, %p119
      %s122 = sadd.s32 %s121, 1
      %p125 = scmp.eq.s32.totalorder %s24, 1
      %p126 = scmp.ne.s32.totalorder %s121, %s123
      %p127 = scmp.eq.s32.totalorder %s24, 0
      %p128 = por %p126, %p127
      %p129 = scmp.ne.s32.totalorder %s121, %s123
      %p130 = scmp.eq.s32.totalorder %s29, 1
      %p131 = por %p129, %p130
      %p132 = scmp.ne.s32.totalorder %s123, %s124
      %p133 = scmp.eq.s32.totalorder %s29, 0
      %p134 = por %p132, %p133
      %p135 = scmp.ne.s32.totalorder %s123, %s124
      %p136 = scmp.eq.s32.totalorder %s30, 1
      %p137 = por %p135, %p136
      %p139 = scmp.ne.s32.totalorder %s124, %s138
      %p140 = scmp.eq.s32.totalorder %s30, 0
      %p141 = por %p139, %p140
      %s143 = sadd.s32 %s142, 1
      %p146 = scmp.eq.s32.totalorder %s24, 1
      %p147 = scmp.ne.s32.totalorder %s142, %s144
      %p148 = scmp.eq.s32.totalorder %s24, 0
      %p149 = por %p147, %p148
      %p150 = scmp.ne.s32.totalorder %s142, %s144
      %p151 = scmp.eq.s32.totalorder %s29, 1
      %p152 = por %p150, %p151
      %p153 = scmp.ne.s32.totalorder %s144, %s145
      %p154 = scmp.eq.s32.totalorder %s29, 0
      %p155 = por %p153, %p154
      %p156 = scmp.ne.s32.totalorder %s144, %s145
      %p157 = scmp.eq.s32.totalorder %s30, 1
      %p158 = por %p156, %p157
      %p160 = scmp.ne.s32.totalorder %s145, %s159
      %p161 = scmp.eq.s32.totalorder %s30, 0
      %p162 = por %p160, %p161
      %s164 = sadd.s32 %s163, 1
      %p167 = scmp.eq.s32.totalorder %s24, 1
      %p168 = scmp.ne.s32.totalorder %s163, %s165
      %p169 = scmp.eq.s32.totalorder %s24, 0
      %p170 = por %p168, %p169
      %p171 = scmp.ne.s32.totalorder %s163, %s165
      %p172 = scmp.eq.s32.totalorder %s29, 1
      %p173 = por %p171, %p172
      %p174 = scmp.ne.s32.totalorder %s165, %s166
      %p175 = scmp.eq.s32.totalorder %s29, 0
      %p176 = por %p174, %p175
      %p177 = scmp.ne.s32.totalorder %s165, %s166
      %p178 = scmp.eq.s32.totalorder %s30, 1
      %p179 = por %p177, %p178
      %p181 = scmp.ne.s32.totalorder %s166, %s180
      %p182 = scmp.eq.s32.totalorder %s30, 0
      %p183 = por %p181, %p182
      %s185 = sadd.s32 %s184, 1
      %p188 = scmp.eq.s32.totalorder %s24, 1
      %p189 = scmp.ne.s32.totalorder %s184, %s186
      %p190 = scmp.eq.s32.totalorder %s24, 0
      %p191 = por %p189, %p190
      %p192 = scmp.ne.s32.totalorder %s184, %s186
      %p193 = scmp.eq.s32.totalorder %s29, 1
      %p194 = por %p192, %p193
      %p195 = scmp.ne.s32.totalorder %s186, %s187
      %p196 = scmp.eq.s32.totalorder %s29, 0
      %p197 = por %p195, %p196
      %p198 = scmp.ne.s32.totalorder %s186, %s187
      %p199 = scmp.eq.s32.totalorder %s30, 1
      %p200 = por %p198, %p199
      %p202 = scmp.ne.s32.totalorder %s187, %s201
      %p203 = scmp.eq.s32.totalorder %s30, 0
      %p204 = por %p202, %p203
      %s205 = ssub.s32 %s24, %s31
      %p206 = scmp.eq.s32.totalorder %s205, 0
      %s208 = sadd.s32 %s207, 1
      %s209 = scalar_select %p206, %s207, %s208
      %p212 = pneg %p206
      %p213 = scmp.eq.s32.totalorder %s24, 1
      %p214 = por %p212, %p213
      %p215 = scmp.ne.s32.totalorder %s207, %s210
      %p216 = scmp.eq.s32.totalorder %s24, 0
      %p217 = por %p215, %p216
      %p218 = scmp.ne.s32.totalorder %s207, %s210
      %p219 = scmp.eq.s32.totalorder %s29, 1
      %p220 = por %p218, %p219
      %p221 = scmp.ne.s32.totalorder %s210, %s211
      %p222 = scmp.eq.s32.totalorder %s29, 0
      %p223 = por %p221, %p222
      %p224 = scmp.ne.s32.totalorder %s210, %s211
      %p225 = scmp.eq.s32.totalorder %s30, 1
      %p226 = por %p224, %p225
      %p228 = scmp.ne.s32.totalorder %s211, %s227
      %p229 = scmp.eq.s32.totalorder %s30, 0
      %p230 = por %p228, %p229
      %s231 = ssub.s32 %s24, %s31
      %p232 = scmp.eq.s32.totalorder %s231, 0
      %s234 = sadd.s32 %s233, 1
      %s235 = scalar_select %p232, %s233, %s234
      %p238 = pneg %p232
      %p239 = scmp.eq.s32.totalorder %s24, 1
      %p240 = por %p238, %p239
      %p241 = scmp.ne.s32.totalorder %s233, %s236
      %p242 = scmp.eq.s32.totalorder %s24, 0
      %p243 = por %p241, %p242
      %p244 = scmp.ne.s32.totalorder %s233, %s236
      %p245 = scmp.eq.s32.totalorder %s29, 1
      %p246 = por %p244, %p245
      %p247 = scmp.ne.s32.totalorder %s236, %s237
      %p248 = scmp.eq.s32.totalorder %s29, 0
      %p249 = por %p247, %p248
      %p250 = scmp.ne.s32.totalorder %s236, %s237
      %p251 = scmp.eq.s32.totalorder %s30, 1
      %p252 = por %p250, %p251
      %p254 = scmp.ne.s32.totalorder %s237, %s253
      %p255 = scmp.eq.s32.totalorder %s30, 0
      %p256 = por %p254, %p255
      %p257 = scmp.le.s32.totalorder 1, %s24
      %p258 = scmp.lt.s32.totalorder %s24, 3
      %p259 = pnand %p257, %p258
      %p260 = pneg %p259
      // Predicated region
      $region9: #{dsm_forward.1} parent=5 // pred_check
        _
      $region10: #{dsm_forward.1} parent=5 // pred_check_branch
        %262 = sbr.rel (%p259) target = $region12
      $region11: #{dsm_forward.1} parent=5 // pred_region
        %s263 = ssub.s32 %s24, 1
        // Predicated region
        $region13: #{dsm_forward.1} parent=11 // pred_check
          %p264 = pneg %p71
        $region14: #{dsm_forward.1} parent=11 // pred_check_branch
          %266 = sbr.rel (%p264) target = $region16
        $region15: #{dsm_forward.1} parent=11 // pred_region
          %s268 = ssub.s32 32, 32
          %269 = vsyncadd [#allocation4], %s268
          %s271 = sshll.u32 %s1, 4
          %s272 = int_to_ptr.vmem [resolvable:$true] %s271
          %274 = dma.vmem_to_smem %s272, 32, [#allocation2], [#allocation4]
        $region16: #{dsm_forward.1} parent=11 // pred_fallthru
          _
        // Predicated region
        $region17: #{dsm_forward.1} parent=11 // pred_check
          %p275 = pneg %p92
        $region18: #{dsm_forward.1} parent=11 // pred_check_branch
          %277 = sbr.rel (%p275) target = $region20
        $region19: #{dsm_forward.1} parent=11 // pred_region
          %s279 = ssub.s32 16, 16
          %280 = vsyncadd [#allocation6], %s279
          %s282 = sshll.u32 %s2, 4
          %s283 = int_to_ptr.vmem [resolvable:$true] %s282
          %285 = dma.vmem_to_smem %s283, 16, [#allocation5], [#allocation6]
        $region20: #{dsm_forward.1} parent=11 // pred_fallthru
          _
        // Predicated region
        $region21: #{dsm_forward.1} parent=11 // pred_check
          %p286 = pneg %p113
        $region22: #{dsm_forward.1} parent=11 // pred_check_branch
          %288 = sbr.rel (%p286) target = $region24
        $region23: #{dsm_forward.1} parent=11 // pred_region
          %s290 = ssub.s32 16, 16
          %291 = vsyncadd [#allocation6], %s290
          %s293 = sshll.u32 %s3, 4
          %s294 = int_to_ptr.vmem [resolvable:$true] %s293
          %296 = dma.vmem_to_smem %s294, 16, [#allocation7], [#allocation6]
        $region24: #{dsm_forward.1} parent=11 // pred_fallthru
          _
        // Predicated region
        $region25: #{dsm_forward.1} parent=11 // pred_check
          %p297 = pneg %p134
        $region26: #{dsm_forward.1} parent=11 // pred_check_branch
          %299 = sbr.rel (%p297) target = $region28
        $region27: #{dsm_forward.1} parent=11 // pred_region
          _
        $region28: #{dsm_forward.1} parent=11 // pred_fallthru
          _
        // Predicated region
        $region29: #{dsm_forward.1} parent=11 // pred_check
          %p300 = pneg %p155
        $region30: #{dsm_forward.1} parent=11 // pred_check_branch
          %302 = sbr.rel (%p300) target = $region32
        $region31: #{dsm_forward.1} parent=11 // pred_region
          _
        $region32: #{dsm_forward.1} parent=11 // pred_fallthru
          _
        // Predicated region
        $region33: #{dsm_forward.1} parent=11 // pred_check
          %p303 = pneg %p176
        $region34: #{dsm_forward.1} parent=11 // pred_check_branch
          %305 = sbr.rel (%p303) target = $region36
        $region35: #{dsm_forward.1} parent=11 // pred_region
          _
        $region36: #{dsm_forward.1} parent=11 // pred_fallthru
          _
        // Predicated region
        $region37: #{dsm_forward.1} parent=11 // pred_check
          %p306 = pneg %p197
        $region38: #{dsm_forward.1} parent=11 // pred_check_branch
          %308 = sbr.rel (%p306) target = $region40
        $region39: #{dsm_forward.1} parent=11 // pred_region
          _
        $region40: #{dsm_forward.1} parent=11 // pred_fallthru
          _
      $region12: #{dsm_forward.1} parent=5 // pred_fallthru
        _
      %p309 = scmp.lt.s32.totalorder %s24, 2
      // Predicated region
      $region41: #{dsm_forward.1} parent=5 // pred_check
        %p310 = pneg %p309
      $region42: #{dsm_forward.1} parent=5 // pred_check_branch
        %312 = sbr.rel (%p310) target = $region44
      $region43: #{dsm_forward.1} parent=5 // pred_region
        // Predicated region
        $region45: #{dsm_forward.1} parent=43 // pred_check
          %p313 = pneg %p44
        $region46: #{dsm_forward.1} parent=43 // pred_check_branch
          %315 = sbr.rel (%p313) target = $region48
        $region47: #{dsm_forward.1} parent=43 // pred_region
          %p316 = scmp.lt.s32.totalorder %s24, 1
          %s317 = scalar_select %p316, %s24, 1
          %s318 = smul.addr %s317, 8
          %s319 = smul.addr %s318, 4
          %s320 = scalar_lea.vmem %s0, %s319
        $region48: #{dsm_forward.1} parent=43 // pred_fallthru
          _
      $region44: #{dsm_forward.1} parent=5 // pred_fallthru
        _
      %p321 = scmp.le.s32.totalorder 1, %s24
      %p322 = scmp.lt.s32.totalorder %s24, 3
      %p323 = pnand %p321, %p322
      %p324 = pneg %p323
      // Predicated region
      $region49: #{dsm_forward.1} parent=5 // pred_check
        _
      $region50: #{dsm_forward.1} parent=5 // pred_check_branch
        %326 = sbr.rel (%p323) target = $region52
      $region51: #{dsm_forward.1} parent=5 // pred_region
        %s327 = ssub.s32 %s24, 1
        // Predicated region
        $region53: #{dsm_forward.1} parent=51 // pred_check
          %p328 = pneg %p71
        $region54: #{dsm_forward.1} parent=51 // pred_check_branch
          %330 = sbr.rel (%p328) target = $region56
        $region55: #{dsm_forward.1} parent=51 // pred_region
          %331 = dma.done [#allocation4], 32
        $region56: #{dsm_forward.1} parent=51 // pred_fallthru
          _
        // Predicated region
        $region57: #{dsm_forward.1} parent=51 // pred_check
          %p332 = pneg %p92
        $region58: #{dsm_forward.1} parent=51 // pred_check_branch
          %334 = sbr.rel (%p332) target = $region60
        $region59: #{dsm_forward.1} parent=51 // pred_region
          %335 = dma.done [#allocation6], 16
        $region60: #{dsm_forward.1} parent=51 // pred_fallthru
          _
        // Predicated region
        $region61: #{dsm_forward.1} parent=51 // pred_check
          %p336 = pneg %p113
        $region62: #{dsm_forward.1} parent=51 // pred_check_branch
          %338 = sbr.rel (%p336) target = $region64
        $region63: #{dsm_forward.1} parent=51 // pred_region
          %339 = dma.done [#allocation6], 16
        $region64: #{dsm_forward.1} parent=51 // pred_fallthru
          _
        %340 = sfence
        %p341 = scmp.lt.s32.totalorder %s29, 1
        %s342 = scalar_select %p341, %s29, 1
        %s343 = smul.addr %s342, 8
        %s344 = smul.addr %s343, 4
        %s345 = scalar_lea.vmem %s0, %s344
        %p346 = pneg %p50
        %p347 = pneg %p47
        %p348 = pneg %p71
        %p349 = pneg %p68
        %p350 = pneg %p92
        %p351 = pneg %p89
        %p352 = pneg %p113
        %p353 = pneg %p110
        %p354 = pneg %p134
        %p355 = pneg %p131
        %p356 = pneg %p155
        %p357 = pneg %p152
        %p358 = pneg %p176
        %p359 = pneg %p173
        %p360 = pneg %p197
        %p361 = pneg %p194
        %p362 = pneg %p223
        %p363 = pneg %p220
        %s364 = sand.u32 %s210, 1
        %s365 = scalar_lea.sflag [#allocation3], %s364
        %s366 = sand.u32 %s210, 1
        %s367 = smul.addr %s366, 32
        %s368 = scalar_lea.vmem [#allocation8], %s367
        %p369 = pneg %p249
        %p370 = pneg %p246
        %s371 = sand.u32 %s236, 1
        %s372 = scalar_lea.sflag [#allocation10], %s371
        %s373 = sand.u32 %s236, 1
        %s374 = smul.addr %s373, 64
        %s375 = scalar_lea.vmem [#allocation9], %s374
        %p376 = scmp.lt.s32.totalorder %s29, 1
        %s377 = scalar_select %p376, %s29, 1
        %s378 = smul.addr %s377, 8
        %s379 = smul.addr %s378, 4
        %s380 = scalar_lea.vmem %s0, %s379
        %v381 = vld [vmem:[%s380] sm:$0xf]
        %v382 = vld [vmem:[%s380 + $0x4] sm:$0xf]
        %v383 = vld [vmem:[%s380 + $0x8] sm:$0xf]
        %v384 = vld [vmem:[%s380 + $0xc] sm:$0xf]
        %v385 = vld [vmem:[%s380 + $0x10] sm:$0xf]
        %v386 = vld [vmem:[%s380 + $0x14] sm:$0xf]
        %v387 = vld [vmem:[%s380 + $0x18] sm:$0xf]
        %v388 = vld [vmem:[%s380 + $0x1c] sm:$0xf]
        %v389 = vunpack.c.l.bf16 %v381
        %v390 = vunpack.c.l.bf16 %v382
        %v391 = vunpack.c.l.bf16 %v383
        %v392 = vunpack.c.l.bf16 %v384
        %v393 = vunpack.c.l.bf16 %v385
        %v394 = vunpack.c.l.bf16 %v386
        %v395 = vunpack.c.l.bf16 %v387
        %v396 = vunpack.c.l.bf16 %v388
        %s397 = sld [smem:[#allocation2]]
        %v398 = vstv %s397
        %v399 = vmul.f32 %v398, %v389
        %v400 = vmul.f32 %v398, %v390
        %s401 = sld [smem:[#allocation2 + $0x1]]
        %v402 = vstv %s401
        %v403 = vmul.f32 %v402, %v391
        %v404 = vmul.f32 %v402, %v392
        %v405 = vadd.f32 %v399, %v403
        %v406 = vadd.f32 %v400, %v404
        %s407 = sld [smem:[#allocation2 + $0x2]]
        %v408 = vstv %s407
        %v409 = vmul.f32 %v408, %v393
        %v410 = vmul.f32 %v408, %v394
        %v411 = vadd.f32 %v405, %v409
        %v412 = vadd.f32 %v406, %v410
        %s413 = sld [smem:[#allocation2 + $0x3]]
        %v414 = vstv %s413
        %v415 = vmul.f32 %v414, %v395
        %v416 = vmul.f32 %v414, %v396
        %v417 = vadd.f32 %v411, %v415
        %v418 = vadd.f32 %v412, %v416
        %s419 = sld [smem:[#allocation2 + $0x4]]
        %v420 = vstv %s419
        %v421 = vmul.f32 %v420, %v389
        %v422 = vmul.f32 %v420, %v390
        %s423 = sld [smem:[#allocation2 + $0x5]]
        %v424 = vstv %s423
        %v425 = vmul.f32 %v424, %v391
        %v426 = vmul.f32 %v424, %v392
        %v427 = vadd.f32 %v421, %v425
        %v428 = vadd.f32 %v422, %v426
        %s429 = sld [smem:[#allocation2 + $0x6]]
        %v430 = vstv %s429
        %v431 = vmul.f32 %v430, %v393
        %v432 = vmul.f32 %v430, %v394
        %v433 = vadd.f32 %v427, %v431
        %v434 = vadd.f32 %v428, %v432
        %s435 = sld [smem:[#allocation2 + $0x7]]
        %v436 = vstv %s435
        %v437 = vmul.f32 %v436, %v395
        %v438 = vmul.f32 %v436, %v396
        %v439 = vadd.f32 %v433, %v437
        %v440 = vadd.f32 %v434, %v438
        %s441 = sld [smem:[#allocation2 + $0x8]]
        %v442 = vstv %s441
        %v443 = vmul.f32 %v442, %v389
        %v444 = vmul.f32 %v442, %v390
        %s445 = sld [smem:[#allocation2 + $0x9]]
        %v446 = vstv %s445
        %v447 = vmul.f32 %v446, %v391
        %v448 = vmul.f32 %v446, %v392
        %v449 = vadd.f32 %v443, %v447
        %v450 = vadd.f32 %v444, %v448
        %s451 = sld [smem:[#allocation2 + $0xa]]
        %v452 = vstv %s451
        %v453 = vmul.f32 %v452, %v393
        %v454 = vmul.f32 %v452, %v394
        %v455 = vadd.f32 %v449, %v453
        %v456 = vadd.f32 %v450, %v454
        %s457 = sld [smem:[#allocation2 + $0xb]]
        %v458 = vstv %s457
        %v459 = vmul.f32 %v458, %v395
        %v460 = vmul.f32 %v458, %v396
        %v461 = vadd.f32 %v455, %v459
        %v462 = vadd.f32 %v456, %v460
        %s463 = sld [smem:[#allocation2 + $0xc]]
        %v464 = vstv %s463
        %v465 = vmul.f32 %v464, %v389
        %v466 = vmul.f32 %v464, %v390
        %s467 = sld [smem:[#allocation2 + $0xd]]
        %v468 = vstv %s467
        %v469 = vmul.f32 %v468, %v391
        %v470 = vmul.f32 %v468, %v392
        %v471 = vadd.f32 %v465, %v469
        %v472 = vadd.f32 %v466, %v470
        %s473 = sld [smem:[#allocation2 + $0xe]]
        %v474 = vstv %s473
        %v475 = vmul.f32 %v474, %v393
        %v476 = vmul.f32 %v474, %v394
        %v477 = vadd.f32 %v471, %v475
        %v478 = vadd.f32 %v472, %v476
        %s479 = sld [smem:[#allocation2 + $0xf]]
        %v480 = vstv %s479
        %v481 = vmul.f32 %v480, %v395
        %v482 = vmul.f32 %v480, %v396
        %v483 = vadd.f32 %v477, %v481
        %v484 = vadd.f32 %v478, %v482
        %s485 = sld [smem:[#allocation2 + $0x10]]
        %v486 = vstv %s485
        %v487 = vmul.f32 %v486, %v389
        %v488 = vmul.f32 %v486, %v390
        %s489 = sld [smem:[#allocation2 + $0x11]]
        %v490 = vstv %s489
        %v491 = vmul.f32 %v490, %v391
        %v492 = vmul.f32 %v490, %v392
        %v493 = vadd.f32 %v487, %v491
        %v494 = vadd.f32 %v488, %v492
        %s495 = sld [smem:[#allocation2 + $0x12]]
        %v496 = vstv %s495
        %v497 = vmul.f32 %v496, %v393
        %v498 = vmul.f32 %v496, %v394
        %v499 = vadd.f32 %v493, %v497
        %v500 = vadd.f32 %v494, %v498
        %s501 = sld [smem:[#allocation2 + $0x13]]
        %v502 = vstv %s501
        %v503 = vmul.f32 %v502, %v395
        %v504 = vmul.f32 %v502, %v396
        %v505 = vadd.f32 %v499, %v503
        %v506 = vadd.f32 %v500, %v504
        %s507 = sld [smem:[#allocation5]]
        %v508 = vstv %s507
        %v509 = vadd.f32 %v505, %v508
        %v510 = vadd.f32 %v506, %v508
        %v511 = vmax.f32 %v509, 0.0
        %v512 = vmax.f32 %v510, 0.0
        %s513 = sld [smem:[#allocation7]]
        %v514 = vstv %s513
        %v515 = vmul.f32 %v514, %v511
        %v516 = vmul.f32 %v514, %v512
        %v517 = vadd.f32 %v515, 0.0
        %v518 = vadd.f32 %v516, 0.0
        %s519 = sld [smem:[#allocation2 + $0x14]]
        %v520 = vstv %s519
        %v521 = vmul.f32 %v520, %v389
        %v522 = vmul.f32 %v520, %v390
        %s523 = sld [smem:[#allocation2 + $0x15]]
        %v524 = vstv %s523
        %v525 = vmul.f32 %v524, %v391
        %v526 = vmul.f32 %v524, %v392
        %v527 = vadd.f32 %v521, %v525
        %v528 = vadd.f32 %v522, %v526
        %s529 = sld [smem:[#allocation2 + $0x16]]
        %v530 = vstv %s529
        %v531 = vmul.f32 %v530, %v393
        %v532 = vmul.f32 %v530, %v394
        %v533 = vadd.f32 %v527, %v531
        %v534 = vadd.f32 %v528, %v532
        %s535 = sld [smem:[#allocation2 + $0x17]]
        %v536 = vstv %s535
        %v537 = vmul.f32 %v536, %v395
        %v538 = vmul.f32 %v536, %v396
        %v539 = vadd.f32 %v533, %v537
        %v540 = vadd.f32 %v534, %v538
        %s541 = sld [smem:[#allocation5 + $0x1]]
        %v542 = vstv %s541
        %v543 = vadd.f32 %v539, %v542
        %v544 = vadd.f32 %v540, %v542
        %v545 = vmax.f32 %v543, 0.0
        %v546 = vmax.f32 %v544, 0.0
        %s547 = sld [smem:[#allocation7 + $0x1]]
        %v548 = vstv %s547
        %v549 = vmul.f32 %v548, %v545
        %v550 = vmul.f32 %v548, %v546
        %v551 = vadd.f32 %v517, %v549
        %v552 = vadd.f32 %v518, %v550
        %s553 = sld [smem:[#allocation2 + $0x18]]
        %v554 = vstv %s553
        %v555 = vmul.f32 %v554, %v389
        %v556 = vmul.f32 %v554, %v390
        %s557 = sld [smem:[#allocation2 + $0x19]]
        %v558 = vstv %s557
        %v559 = vmul.f32 %v558, %v391
        %v560 = vmul.f32 %v558, %v392
        %v561 = vadd.f32 %v555, %v559
        %v562 = vadd.f32 %v556, %v560
        %s563 = sld [smem:[#allocation2 + $0x1a]]
        %v564 = vstv %s563
        %v565 = vmul.f32 %v564, %v393
        %v566 = vmul.f32 %v564, %v394
        %v567 = vadd.f32 %v561, %v565
        %v568 = vadd.f32 %v562, %v566
        %s569 = sld [smem:[#allocation2 + $0x1b]]
        %v570 = vstv %s569
        %v571 = vmul.f32 %v570, %v395
        %v572 = vmul.f32 %v570, %v396
        %v573 = vadd.f32 %v567, %v571
        %v574 = vadd.f32 %v568, %v572
        %s575 = sld [smem:[#allocation5 + $0x2]]
        %v576 = vstv %s575
        %v577 = vadd.f32 %v573, %v576
        %v578 = vadd.f32 %v574, %v576
        %v579 = vmax.f32 %v577, 0.0
        %v580 = vmax.f32 %v578, 0.0
        %s581 = sld [smem:[#allocation7 + $0x2]]
        %v582 = vstv %s581
        %v583 = vmul.f32 %v582, %v579
        %v584 = vmul.f32 %v582, %v580
        %v585 = vadd.f32 %v551, %v583
        %v586 = vadd.f32 %v552, %v584
        %s587 = sld [smem:[#allocation2 + $0x1c]]
        %v588 = vstv %s587
        %v589 = vmul.f32 %v588, %v389
        %v590 = vmul.f32 %v588, %v390
        %s591 = sld [smem:[#allocation2 + $0x1d]]
        %v592 = vstv %s591
        %v593 = vmul.f32 %v592, %v391
        %v594 = vmul.f32 %v592, %v392
        %v595 = vadd.f32 %v589, %v593
        %v596 = vadd.f32 %v590, %v594
        %s597 = sld [smem:[#allocation2 + $0x1e]]
        %v598 = vstv %s597
        %v599 = vmul.f32 %v598, %v393
        %v600 = vmul.f32 %v598, %v394
        %v601 = vadd.f32 %v595, %v599
        %v602 = vadd.f32 %v596, %v600
        %s603 = sld [smem:[#allocation2 + $0x1f]]
        %v604 = vstv %s603
        %v605 = vmul.f32 %v604, %v395
        %v606 = vmul.f32 %v604, %v396
        %v607 = vadd.f32 %v601, %v605
        %v608 = vadd.f32 %v602, %v606
        %s609 = sld [smem:[#allocation5 + $0x3]]
        %v610 = vstv %s609
        %v611 = vadd.f32 %v607, %v610
        %v612 = vadd.f32 %v608, %v610
        %v613 = vmax.f32 %v611, 0.0
        %v614 = vmax.f32 %v612, 0.0
        %s615 = sld [smem:[#allocation7 + $0x3]]
        %v616 = vstv %s615
        %v617 = vmul.f32 %v616, %v613
        %v618 = vmul.f32 %v616, %v614
        %v619 = vadd.f32 %v585, %v617
        %v620 = vadd.f32 %v586, %v618
        %s621 = sld [smem:[#allocation2 + $0x20]]
        %v622 = vstv %s621
        %v623 = vmul.f32 %v622, %v389
        %v624 = vmul.f32 %v622, %v390
        %s625 = sld [smem:[#allocation2 + $0x21]]
        %v626 = vstv %s625
        %v627 = vmul.f32 %v626, %v391
        %v628 = vmul.f32 %v626, %v392
        %v629 = vadd.f32 %v623, %v627
        %v630 = vadd.f32 %v624, %v628
        %s631 = sld [smem:[#allocation2 + $0x22]]
        %v632 = vstv %s631
        %v633 = vmul.f32 %v632, %v393
        %v634 = vmul.f32 %v632, %v394
        %v635 = vadd.f32 %v629, %v633
        %v636 = vadd.f32 %v630, %v634
        %s637 = sld [smem:[#allocation2 + $0x23]]
        %v638 = vstv %s637
        %v639 = vmul.f32 %v638, %v395
        %v640 = vmul.f32 %v638, %v396
        %v641 = vadd.f32 %v635, %v639
        %v642 = vadd.f32 %v636, %v640
        %s643 = sld [smem:[#allocation5 + $0x4]]
        %v644 = vstv %s643
        %v645 = vadd.f32 %v641, %v644
        %v646 = vadd.f32 %v642, %v644
        %v647 = vmax.f32 %v645, 0.0
        %v648 = vmax.f32 %v646, 0.0
        %s649 = sld [smem:[#allocation7 + $0x4]]
        %v650 = vstv %s649
        %v651 = vmul.f32 %v650, %v647
        %v652 = vmul.f32 %v650, %v648
        %v653 = vadd.f32 %v619, %v651
        %v654 = vadd.f32 %v620, %v652
        %s655 = sld [smem:[#allocation2 + $0x24]]
        %v656 = vstv %s655
        %v657 = vmul.f32 %v656, %v389
        %v658 = vmul.f32 %v656, %v390
        %s659 = sld [smem:[#allocation2 + $0x25]]
        %v660 = vstv %s659
        %v661 = vmul.f32 %v660, %v391
        %v662 = vmul.f32 %v660, %v392
        %v663 = vadd.f32 %v657, %v661
        %v664 = vadd.f32 %v658, %v662
        %s665 = sld [smem:[#allocation2 + $0x26]]
        %v666 = vstv %s665
        %v667 = vmul.f32 %v666, %v393
        %v668 = vmul.f32 %v666, %v394
        %v669 = vadd.f32 %v663, %v667
        %v670 = vadd.f32 %v664, %v668
        %s671 = sld [smem:[#allocation2 + $0x27]]
        %v672 = vstv %s671
        %v673 = vmul.f32 %v672, %v395
        %v674 = vmul.f32 %v672, %v396
        %v675 = vadd.f32 %v669, %v673
        %v676 = vadd.f32 %v670, %v674
        %s677 = sld [smem:[#allocation5 + $0x5]]
        %v678 = vstv %s677
        %v679 = vadd.f32 %v675, %v678
        %v680 = vadd.f32 %v676, %v678
        %v681 = vmax.f32 %v679, 0.0
        %v682 = vmax.f32 %v680, 0.0
        %s683 = sld [smem:[#allocation7 + $0x5]]
        %v684 = vstv %s683
        %v685 = vmul.f32 %v684, %v681
        %v686 = vmul.f32 %v684, %v682
        %v687 = vadd.f32 %v653, %v685
        %v688 = vadd.f32 %v654, %v686
        %s689 = sld [smem:[#allocation2 + $0x28]]
        %v690 = vstv %s689
        %v691 = vmul.f32 %v690, %v389
        %v692 = vmul.f32 %v690, %v390
        %s693 = sld [smem:[#allocation2 + $0x29]]
        %v694 = vstv %s693
        %v695 = vmul.f32 %v694, %v391
        %v696 = vmul.f32 %v694, %v392
        %v697 = vadd.f32 %v691, %v695
        %v698 = vadd.f32 %v692, %v696
        %s699 = sld [smem:[#allocation2 + $0x2a]]
        %v700 = vstv %s699
        %v701 = vmul.f32 %v700, %v393
        %v702 = vmul.f32 %v700, %v394
        %v703 = vadd.f32 %v697, %v701
        %v704 = vadd.f32 %v698, %v702
        %s705 = sld [smem:[#allocation2 + $0x2b]]
        %v706 = vstv %s705
        %v707 = vmul.f32 %v706, %v395
        %v708 = vmul.f32 %v706, %v396
        %v709 = vadd.f32 %v703, %v707
        %v710 = vadd.f32 %v704, %v708
        %s711 = sld [smem:[#allocation5 + $0x6]]
        %v712 = vstv %s711
        %v713 = vadd.f32 %v709, %v712
        %v714 = vadd.f32 %v710, %v712
        %v715 = vmax.f32 %v713, 0.0
        %v716 = vmax.f32 %v714, 0.0
        %s717 = sld [smem:[#allocation7 + $0x6]]
        %v718 = vstv %s717
        %v719 = vmul.f32 %v718, %v715
        %v720 = vmul.f32 %v718, %v716
        %v721 = vadd.f32 %v687, %v719
        %v722 = vadd.f32 %v688, %v720
        %s723 = sld [smem:[#allocation2 + $0x2c]]
        %v724 = vstv %s723
        %v725 = vmul.f32 %v724, %v389
        %v726 = vmul.f32 %v724, %v390
        %s727 = sld [smem:[#allocation2 + $0x2d]]
        %v728 = vstv %s727
        %v729 = vmul.f32 %v728, %v391
        %v730 = vmul.f32 %v728, %v392
        %v731 = vadd.f32 %v725, %v729
        %v732 = vadd.f32 %v726, %v730
        %s733 = sld [smem:[#allocation2 + $0x2e]]
        %v734 = vstv %s733
        %v735 = vmul.f32 %v734, %v393
        %v736 = vmul.f32 %v734, %v394
        %v737 = vadd.f32 %v731, %v735
        %v738 = vadd.f32 %v732, %v736
        %s739 = sld [smem:[#allocation2 + $0x2f]]
        %v740 = vstv %s739
        %v741 = vmul.f32 %v740, %v395
        %v742 = vmul.f32 %v740, %v396
        %v743 = vadd.f32 %v737, %v741
        %v744 = vadd.f32 %v738, %v742
        %s745 = sld [smem:[#allocation5 + $0x7]]
        %v746 = vstv %s745
        %v747 = vadd.f32 %v743, %v746
        %v748 = vadd.f32 %v744, %v746
        %v749 = vmax.f32 %v747, 0.0
        %v750 = vmax.f32 %v748, 0.0
        %s751 = sld [smem:[#allocation7 + $0x7]]
        %v752 = vstv %s751
        %v753 = vmul.f32 %v752, %v749
        %v754 = vmul.f32 %v752, %v750
        %v755 = vadd.f32 %v721, %v753
        %v756 = vadd.f32 %v722, %v754
        %s757 = sld [smem:[#allocation2 + $0x30]]
        %v758 = vstv %s757
        %v759 = vmul.f32 %v758, %v389
        %v760 = vmul.f32 %v758, %v390
        %s761 = sld [smem:[#allocation2 + $0x31]]
        %v762 = vstv %s761
        %v763 = vmul.f32 %v762, %v391
        %v764 = vmul.f32 %v762, %v392
        %v765 = vadd.f32 %v759, %v763
        %v766 = vadd.f32 %v760, %v764
        %s767 = sld [smem:[#allocation2 + $0x32]]
        %v768 = vstv %s767
        %v769 = vmul.f32 %v768, %v393
        %v770 = vmul.f32 %v768, %v394
        %v771 = vadd.f32 %v765, %v769
        %v772 = vadd.f32 %v766, %v770
        %s773 = sld [smem:[#allocation2 + $0x33]]
        %v774 = vstv %s773
        %v775 = vmul.f32 %v774, %v395
        %v776 = vmul.f32 %v774, %v396
        %v777 = vadd.f32 %v771, %v775
        %v778 = vadd.f32 %v772, %v776
        %s779 = sld [smem:[#allocation5 + $0x8]]
        %v780 = vstv %s779
        %v781 = vadd.f32 %v777, %v780
        %v782 = vadd.f32 %v778, %v780
        %v783 = vmax.f32 %v781, 0.0
        %v784 = vmax.f32 %v782, 0.0
        %s785 = sld [smem:[#allocation7 + $0x8]]
        %v786 = vstv %s785
        %v787 = vmul.f32 %v786, %v783
        %v788 = vmul.f32 %v786, %v784
        %v789 = vadd.f32 %v755, %v787
        %v790 = vadd.f32 %v756, %v788
        %s791 = sld [smem:[#allocation2 + $0x34]]
        %v792 = vstv %s791
        %v793 = vmul.f32 %v792, %v389
        %v794 = vmul.f32 %v792, %v390
        %s795 = sld [smem:[#allocation2 + $0x35]]
        %v796 = vstv %s795
        %v797 = vmul.f32 %v796, %v391
        %v798 = vmul.f32 %v796, %v392
        %v799 = vadd.f32 %v793, %v797
        %v800 = vadd.f32 %v794, %v798
        %s801 = sld [smem:[#allocation2 + $0x36]]
        %v802 = vstv %s801
        %v803 = vmul.f32 %v802, %v393
        %v804 = vmul.f32 %v802, %v394
        %v805 = vadd.f32 %v799, %v803
        %v806 = vadd.f32 %v800, %v804
        %s807 = sld [smem:[#allocation2 + $0x37]]
        %v808 = vstv %s807
        %v809 = vmul.f32 %v808, %v395
        %v810 = vmul.f32 %v808, %v396
        %v811 = vadd.f32 %v805, %v809
        %v812 = vadd.f32 %v806, %v810
        %s813 = sld [smem:[#allocation5 + $0x9]]
        %v814 = vstv %s813
        %v815 = vadd.f32 %v811, %v814
        %v816 = vadd.f32 %v812, %v814
        %v817 = vmax.f32 %v815, 0.0
        %v818 = vmax.f32 %v816, 0.0
        %s819 = sld [smem:[#allocation7 + $0x9]]
        %v820 = vstv %s819
        %v821 = vmul.f32 %v820, %v817
        %v822 = vmul.f32 %v820, %v818
        %v823 = vadd.f32 %v789, %v821
        %v824 = vadd.f32 %v790, %v822
        %s825 = sld [smem:[#allocation2 + $0x38]]
        %v826 = vstv %s825
        %v827 = vmul.f32 %v826, %v389
        %v828 = vmul.f32 %v826, %v390
        %s829 = sld [smem:[#allocation2 + $0x39]]
        %v830 = vstv %s829
        %v831 = vmul.f32 %v830, %v391
        %v832 = vmul.f32 %v830, %v392
        %v833 = vadd.f32 %v827, %v831
        %v834 = vadd.f32 %v828, %v832
        %s835 = sld [smem:[#allocation2 + $0x3a]]
        %v836 = vstv %s835
        %v837 = vmul.f32 %v836, %v393
        %v838 = vmul.f32 %v836, %v394
        %v839 = vadd.f32 %v833, %v837
        %v840 = vadd.f32 %v834, %v838
        %s841 = sld [smem:[#allocation2 + $0x3b]]
        %v842 = vstv %s841
        %v843 = vmul.f32 %v842, %v395
        %v844 = vmul.f32 %v842, %v396
        %v845 = vadd.f32 %v839, %v843
        %v846 = vadd.f32 %v840, %v844
        %s847 = sld [smem:[#allocation5 + $0xa]]
        %v848 = vstv %s847
        %v849 = vadd.f32 %v845, %v848
        %v850 = vadd.f32 %v846, %v848
        %v851 = vmax.f32 %v849, 0.0
        %v852 = vmax.f32 %v850, 0.0
        %s853 = sld [smem:[#allocation7 + $0xa]]
        %v854 = vstv %s853
        %v855 = vmul.f32 %v854, %v851
        %v856 = vmul.f32 %v854, %v852
        %v857 = vadd.f32 %v823, %v855
        %v858 = vadd.f32 %v824, %v856
        %s859 = sld [smem:[#allocation2 + $0x3c]]
        %v860 = vstv %s859
        %v861 = vmul.f32 %v860, %v389
        %v862 = vmul.f32 %v860, %v390
        %s863 = sld [smem:[#allocation2 + $0x3d]]
        %v864 = vstv %s863
        %v865 = vmul.f32 %v864, %v391
        %v866 = vmul.f32 %v864, %v392
        %v867 = vadd.f32 %v861, %v865
        %v868 = vadd.f32 %v862, %v866
        %s869 = sld [smem:[#allocation2 + $0x3e]]
        %v870 = vstv %s869
        %v871 = vmul.f32 %v870, %v393
        %v872 = vmul.f32 %v870, %v394
        %v873 = vadd.f32 %v867, %v871
        %v874 = vadd.f32 %v868, %v872
        %s875 = sld [smem:[#allocation2 + $0x3f]]
        %v876 = vstv %s875
        %v877 = vmul.f32 %v876, %v395
        %v878 = vmul.f32 %v876, %v396
        %v879 = vadd.f32 %v873, %v877
        %v880 = vadd.f32 %v874, %v878
        %s881 = sld [smem:[#allocation5 + $0xb]]
        %v882 = vstv %s881
        %v883 = vadd.f32 %v879, %v882
        %v884 = vadd.f32 %v880, %v882
        %v885 = vmax.f32 %v883, 0.0
        %v886 = vmax.f32 %v884, 0.0
        %s887 = sld [smem:[#allocation7 + $0xb]]
        %v888 = vstv %s887
        %v889 = vmul.f32 %v888, %v885
        %v890 = vmul.f32 %v888, %v886
        %v891 = vadd.f32 %v857, %v889
        %v892 = vadd.f32 %v858, %v890
        %s893 = sld [smem:[#allocation2 + $0x40]]
        %v894 = vstv %s893
        %v895 = vmul.f32 %v894, %v389
        %v896 = vmul.f32 %v894, %v390
        %s897 = sld [smem:[#allocation2 + $0x41]]
        %v898 = vstv %s897
        %v899 = vmul.f32 %v898, %v391
        %v900 = vmul.f32 %v898, %v392
        %v901 = vadd.f32 %v895, %v899
        %v902 = vadd.f32 %v896, %v900
        %s903 = sld [smem:[#allocation2 + $0x42]]
        %v904 = vstv %s903
        %v905 = vmul.f32 %v904, %v393
        %v906 = vmul.f32 %v904, %v394
        %v907 = vadd.f32 %v901, %v905
        %v908 = vadd.f32 %v902, %v906
        %s909 = sld [smem:[#allocation2 + $0x43]]
        %v910 = vstv %s909
        %v911 = vmul.f32 %v910, %v395
        %v912 = vmul.f32 %v910, %v396
        %v913 = vadd.f32 %v907, %v911
        %v914 = vadd.f32 %v908, %v912
        %s915 = sld [smem:[#allocation5 + $0xc]]
        %v916 = vstv %s915
        %v917 = vadd.f32 %v913, %v916
        %v918 = vadd.f32 %v914, %v916
        %v919 = vmax.f32 %v917, 0.0
        %v920 = vmax.f32 %v918, 0.0
        %s921 = sld [smem:[#allocation7 + $0xc]]
        %v922 = vstv %s921
        %v923 = vmul.f32 %v922, %v919
        %v924 = vmul.f32 %v922, %v920
        %v925 = vadd.f32 %v891, %v923
        %v926 = vadd.f32 %v892, %v924
        %s927 = sld [smem:[#allocation2 + $0x44]]
        %v928 = vstv %s927
        %v929 = vmul.f32 %v928, %v389
        %v930 = vmul.f32 %v928, %v390
        %s931 = sld [smem:[#allocation2 + $0x45]]
        %v932 = vstv %s931
        %v933 = vmul.f32 %v932, %v391
        %v934 = vmul.f32 %v932, %v392
        %v935 = vadd.f32 %v929, %v933
        %v936 = vadd.f32 %v930, %v934
        %s937 = sld [smem:[#allocation2 + $0x46]]
        %v938 = vstv %s937
        %v939 = vmul.f32 %v938, %v393
        %v940 = vmul.f32 %v938, %v394
        %v941 = vadd.f32 %v935, %v939
        %v942 = vadd.f32 %v936, %v940
        %s943 = sld [smem:[#allocation2 + $0x47]]
        %v944 = vstv %s943
        %v945 = vmul.f32 %v944, %v395
        %v946 = vmul.f32 %v944, %v396
        %v947 = vadd.f32 %v941, %v945
        %v948 = vadd.f32 %v942, %v946
        %s949 = sld [smem:[#allocation5 + $0xd]]
        %v950 = vstv %s949
        %v951 = vadd.f32 %v947, %v950
        %v952 = vadd.f32 %v948, %v950
        %v953 = vmax.f32 %v951, 0.0
        %v954 = vmax.f32 %v952, 0.0
        %s955 = sld [smem:[#allocation7 + $0xd]]
        %v956 = vstv %s955
        %v957 = vmul.f32 %v956, %v953
        %v958 = vmul.f32 %v956, %v954
        %v959 = vadd.f32 %v925, %v957
        %v960 = vadd.f32 %v926, %v958
        %s961 = sld [smem:[#allocation2 + $0x48]]
        %v962 = vstv %s961
        %v963 = vmul.f32 %v962, %v389
        %v964 = vmul.f32 %v962, %v390
        %s965 = sld [smem:[#allocation2 + $0x49]]
        %v966 = vstv %s965
        %v967 = vmul.f32 %v966, %v391
        %v968 = vmul.f32 %v966, %v392
        %v969 = vadd.f32 %v963, %v967
        %v970 = vadd.f32 %v964, %v968
        %s971 = sld [smem:[#allocation2 + $0x4a]]
        %v972 = vstv %s971
        %v973 = vmul.f32 %v972, %v393
        %v974 = vmul.f32 %v972, %v394
        %v975 = vadd.f32 %v969, %v973
        %v976 = vadd.f32 %v970, %v974
        %s977 = sld [smem:[#allocation2 + $0x4b]]
        %v978 = vstv %s977
        %v979 = vmul.f32 %v978, %v395
        %v980 = vmul.f32 %v978, %v396
        %v981 = vadd.f32 %v975, %v979
        %v982 = vadd.f32 %v976, %v980
        %s983 = sld [smem:[#allocation5 + $0xe]]
        %v984 = vstv %s983
        %v985 = vadd.f32 %v981, %v984
        %v986 = vadd.f32 %v982, %v984
        %v987 = vmax.f32 %v985, 0.0
        %v988 = vmax.f32 %v986, 0.0
        %s989 = sld [smem:[#allocation7 + $0xe]]
        %v990 = vstv %s989
        %v991 = vmul.f32 %v990, %v987
        %v992 = vmul.f32 %v990, %v988
        %v993 = vadd.f32 %v959, %v991
        %v994 = vadd.f32 %v960, %v992
        %s995 = sld [smem:[#allocation2 + $0x4c]]
        %v996 = vstv %s995
        %v997 = vmul.f32 %v996, %v389
        %v998 = vmul.f32 %v996, %v390
        %s999 = sld [smem:[#allocation2 + $0x4d]]
        %v1000 = vstv %s999
        %v1001 = vmul.f32 %v1000, %v391
        %v1002 = vmul.f32 %v1000, %v392
        %v1003 = vadd.f32 %v997, %v1001
        %v1004 = vadd.f32 %v998, %v1002
        %s1005 = sld [smem:[#allocation2 + $0x4e]]
        %v1006 = vstv %s1005
        %v1007 = vmul.f32 %v1006, %v393
        %v1008 = vmul.f32 %v1006, %v394
        %v1009 = vadd.f32 %v1003, %v1007
        %v1010 = vadd.f32 %v1004, %v1008
        %s1011 = sld [smem:[#allocation2 + $0x4f]]
        %v1012 = vstv %s1011
        %v1013 = vmul.f32 %v1012, %v395
        %v1014 = vmul.f32 %v1012, %v396
        %v1015 = vadd.f32 %v1009, %v1013
        %v1016 = vadd.f32 %v1010, %v1014
        %s1017 = sld [smem:[#allocation5 + $0xf]]
        %v1018 = vstv %s1017
        %v1019 = vadd.f32 %v1015, %v1018
        %v1020 = vadd.f32 %v1016, %v1018
        %v1021 = vmax.f32 %v1019, 0.0
        %v1022 = vmax.f32 %v1020, 0.0
        %s1023 = sld [smem:[#allocation7 + $0xf]]
        %v1024 = vstv %s1023
        %v1025 = vmul.f32 %v1024, %v1021
        %v1026 = vmul.f32 %v1024, %v1022
        %v1027 = vadd.f32 %v993, %v1025
        %v1028 = vadd.f32 %v994, %v1026
        %s1029 = sld [smem:[#allocation2 + $0x50]]
        %v1030 = vstv %s1029
        %v1031 = vmul.f32 %v1030, %v389
        %v1032 = vmul.f32 %v1030, %v390
        %s1033 = sld [smem:[#allocation2 + $0x51]]
        %v1034 = vstv %s1033
        %v1035 = vmul.f32 %v1034, %v391
        %v1036 = vmul.f32 %v1034, %v392
        %v1037 = vadd.f32 %v1031, %v1035
        %v1038 = vadd.f32 %v1032, %v1036
        %s1039 = sld [smem:[#allocation2 + $0x52]]
        %v1040 = vstv %s1039
        %v1041 = vmul.f32 %v1040, %v393
        %v1042 = vmul.f32 %v1040, %v394
        %v1043 = vadd.f32 %v1037, %v1041
        %v1044 = vadd.f32 %v1038, %v1042
        %s1045 = sld [smem:[#allocation2 + $0x53]]
        %v1046 = vstv %s1045
        %v1047 = vmul.f32 %v1046, %v395
        %v1048 = vmul.f32 %v1046, %v396
        %v1049 = vadd.f32 %v1043, %v1047
        %v1050 = vadd.f32 %v1044, %v1048
        %s1051 = sld [smem:[#allocation5 + $0x10]]
        %v1052 = vstv %s1051
        %v1053 = vadd.f32 %v1049, %v1052
        %v1054 = vadd.f32 %v1050, %v1052
        %v1055 = vmax.f32 %v1053, 0.0
        %v1056 = vmax.f32 %v1054, 0.0
        %s1057 = sld [smem:[#allocation7 + $0x10]]
        %v1058 = vstv %s1057
        %v1059 = vmul.f32 %v1058, %v1055
        %v1060 = vmul.f32 %v1058, %v1056
        %v1061 = vadd.f32 %v1027, %v1059
        %v1062 = vadd.f32 %v1028, %v1060
        %s1063 = sld [smem:[#allocation2 + $0x54]]
        %v1064 = vstv %s1063
        %v1065 = vmul.f32 %v1064, %v389
        %v1066 = vmul.f32 %v1064, %v390
        %s1067 = sld [smem:[#allocation2 + $0x55]]
        %v1068 = vstv %s1067
        %v1069 = vmul.f32 %v1068, %v391
        %v1070 = vmul.f32 %v1068, %v392
        %v1071 = vadd.f32 %v1065, %v1069
        %v1072 = vadd.f32 %v1066, %v1070
        %s1073 = sld [smem:[#allocation2 + $0x56]]
        %v1074 = vstv %s1073
        %v1075 = vmul.f32 %v1074, %v393
        %v1076 = vmul.f32 %v1074, %v394
        %v1077 = vadd.f32 %v1071, %v1075
        %v1078 = vadd.f32 %v1072, %v1076
        %s1079 = sld [smem:[#allocation2 + $0x57]]
        %v1080 = vstv %s1079
        %v1081 = vmul.f32 %v1080, %v395
        %v1082 = vmul.f32 %v1080, %v396
        %v1083 = vadd.f32 %v1077, %v1081
        %v1084 = vadd.f32 %v1078, %v1082
        %s1085 = sld [smem:[#allocation5 + $0x11]]
        %v1086 = vstv %s1085
        %v1087 = vadd.f32 %v1083, %v1086
        %v1088 = vadd.f32 %v1084, %v1086
        %v1089 = vmax.f32 %v1087, 0.0
        %v1090 = vmax.f32 %v1088, 0.0
        %s1091 = sld [smem:[#allocation7 + $0x11]]
        %v1092 = vstv %s1091
        %v1093 = vmul.f32 %v1092, %v1089
        %v1094 = vmul.f32 %v1092, %v1090
        %v1095 = vadd.f32 %v1061, %v1093
        %v1096 = vadd.f32 %v1062, %v1094
        %s1097 = sld [smem:[#allocation2 + $0x58]]
        %v1098 = vstv %s1097
        %v1099 = vmul.f32 %v1098, %v389
        %v1100 = vmul.f32 %v1098, %v390
        %s1101 = sld [smem:[#allocation2 + $0x59]]
        %v1102 = vstv %s1101
        %v1103 = vmul.f32 %v1102, %v391
        %v1104 = vmul.f32 %v1102, %v392
        %v1105 = vadd.f32 %v1099, %v1103
        %v1106 = vadd.f32 %v1100, %v1104
        %s1107 = sld [smem:[#allocation2 + $0x5a]]
        %v1108 = vstv %s1107
        %v1109 = vmul.f32 %v1108, %v393
        %v1110 = vmul.f32 %v1108, %v394
        %v1111 = vadd.f32 %v1105, %v1109
        %v1112 = vadd.f32 %v1106, %v1110
        %s1113 = sld [smem:[#allocation2 + $0x5b]]
        %v1114 = vstv %s1113
        %v1115 = vmul.f32 %v1114, %v395
        %v1116 = vmul.f32 %v1114, %v396
        %v1117 = vadd.f32 %v1111, %v1115
        %v1118 = vadd.f32 %v1112, %v1116
        %s1119 = sld [smem:[#allocation5 + $0x12]]
        %v1120 = vstv %s1119
        %v1121 = vadd.f32 %v1117, %v1120
        %v1122 = vadd.f32 %v1118, %v1120
        %v1123 = vmax.f32 %v1121, 0.0
        %v1124 = vmax.f32 %v1122, 0.0
        %s1125 = sld [smem:[#allocation7 + $0x12]]
        %v1126 = vstv %s1125
        %v1127 = vmul.f32 %v1126, %v1123
        %v1128 = vmul.f32 %v1126, %v1124
        %v1129 = vadd.f32 %v1095, %v1127
        %v1130 = vadd.f32 %v1096, %v1128
        %s1131 = sld [smem:[#allocation2 + $0x5c]]
        %v1132 = vstv %s1131
        %v1133 = vmul.f32 %v1132, %v389
        %v1134 = vmul.f32 %v1132, %v390
        %s1135 = sld [smem:[#allocation2 + $0x5d]]
        %v1136 = vstv %s1135
        %v1137 = vmul.f32 %v1136, %v391
        %v1138 = vmul.f32 %v1136, %v392
        %v1139 = vadd.f32 %v1133, %v1137
        %v1140 = vadd.f32 %v1134, %v1138
        %s1141 = sld [smem:[#allocation2 + $0x5e]]
        %v1142 = vstv %s1141
        %v1143 = vmul.f32 %v1142, %v393
        %v1144 = vmul.f32 %v1142, %v394
        %v1145 = vadd.f32 %v1139, %v1143
        %v1146 = vadd.f32 %v1140, %v1144
        %s1147 = sld [smem:[#allocation2 + $0x5f]]
        %v1148 = vstv %s1147
        %v1149 = vmul.f32 %v1148, %v395
        %v1150 = vmul.f32 %v1148, %v396
        %v1151 = vadd.f32 %v1145, %v1149
        %v1152 = vadd.f32 %v1146, %v1150
        %s1153 = sld [smem:[#allocation5 + $0x13]]
        %v1154 = vstv %s1153
        %v1155 = vadd.f32 %v1151, %v1154
        %v1156 = vadd.f32 %v1152, %v1154
        %v1157 = vmax.f32 %v1155, 0.0
        %v1158 = vmax.f32 %v1156, 0.0
        %s1159 = sld [smem:[#allocation7 + $0x13]]
        %v1160 = vstv %s1159
        %v1161 = vmul.f32 %v1160, %v1157
        %v1162 = vmul.f32 %v1160, %v1158
        %v1163 = vadd.f32 %v1129, %v1161
        %v1164 = vadd.f32 %v1130, %v1162
        %s1165 = sld [smem:[#allocation2 + $0x60]]
        %v1166 = vstv %s1165
        %v1167 = vmul.f32 %v1166, %v389
        %v1168 = vmul.f32 %v1166, %v390
        %s1169 = sld [smem:[#allocation2 + $0x61]]
        %v1170 = vstv %s1169
        %v1171 = vmul.f32 %v1170, %v391
        %v1172 = vmul.f32 %v1170, %v392
        %v1173 = vadd.f32 %v1167, %v1171
        %v1174 = vadd.f32 %v1168, %v1172
        %s1175 = sld [smem:[#allocation2 + $0x62]]
        %v1176 = vstv %s1175
        %v1177 = vmul.f32 %v1176, %v393
        %v1178 = vmul.f32 %v1176, %v394
        %v1179 = vadd.f32 %v1173, %v1177
        %v1180 = vadd.f32 %v1174, %v1178
        %s1181 = sld [smem:[#allocation2 + $0x63]]
        %v1182 = vstv %s1181
        %v1183 = vmul.f32 %v1182, %v395
        %v1184 = vmul.f32 %v1182, %v396
        %v1185 = vadd.f32 %v1179, %v1183
        %v1186 = vadd.f32 %v1180, %v1184
        %s1187 = sld [smem:[#allocation5 + $0x14]]
        %v1188 = vstv %s1187
        %v1189 = vadd.f32 %v1185, %v1188
        %v1190 = vadd.f32 %v1186, %v1188
        %v1191 = vmax.f32 %v1189, 0.0
        %v1192 = vmax.f32 %v1190, 0.0
        %s1193 = sld [smem:[#allocation7 + $0x14]]
        %v1194 = vstv %s1193
        %v1195 = vmul.f32 %v1194, %v1191
        %v1196 = vmul.f32 %v1194, %v1192
        %v1197 = vadd.f32 %v1163, %v1195
        %v1198 = vadd.f32 %v1164, %v1196
        %s1199 = sld [smem:[#allocation2 + $0x64]]
        %v1200 = vstv %s1199
        %v1201 = vmul.f32 %v1200, %v389
        %v1202 = vmul.f32 %v1200, %v390
        %s1203 = sld [smem:[#allocation2 + $0x65]]
        %v1204 = vstv %s1203
        %v1205 = vmul.f32 %v1204, %v391
        %v1206 = vmul.f32 %v1204, %v392
        %v1207 = vadd.f32 %v1201, %v1205
        %v1208 = vadd.f32 %v1202, %v1206
        %s1209 = sld [smem:[#allocation2 + $0x66]]
        %v1210 = vstv %s1209
        %v1211 = vmul.f32 %v1210, %v393
        %v1212 = vmul.f32 %v1210, %v394
        %v1213 = vadd.f32 %v1207, %v1211
        %v1214 = vadd.f32 %v1208, %v1212
        %s1215 = sld [smem:[#allocation2 + $0x67]]
        %v1216 = vstv %s1215
        %v1217 = vmul.f32 %v1216, %v395
        %v1218 = vmul.f32 %v1216, %v396
        %v1219 = vadd.f32 %v1213, %v1217
        %v1220 = vadd.f32 %v1214, %v1218
        %s1221 = sld [smem:[#allocation5 + $0x15]]
        %v1222 = vstv %s1221
        %v1223 = vadd.f32 %v1219, %v1222
        %v1224 = vadd.f32 %v1220, %v1222
        %v1225 = vmax.f32 %v1223, 0.0
        %v1226 = vmax.f32 %v1224, 0.0
        %s1227 = sld [smem:[#allocation7 + $0x15]]
        %v1228 = vstv %s1227
        %v1229 = vmul.f32 %v1228, %v1225
        %v1230 = vmul.f32 %v1228, %v1226
        %v1231 = vadd.f32 %v1197, %v1229
        %v1232 = vadd.f32 %v1198, %v1230
        %s1233 = sld [smem:[#allocation2 + $0x68]]
        %v1234 = vstv %s1233
        %v1235 = vmul.f32 %v1234, %v389
        %v1236 = vmul.f32 %v1234, %v390
        %s1237 = sld [smem:[#allocation2 + $0x69]]
        %v1238 = vstv %s1237
        %v1239 = vmul.f32 %v1238, %v391
        %v1240 = vmul.f32 %v1238, %v392
        %v1241 = vadd.f32 %v1235, %v1239
        %v1242 = vadd.f32 %v1236, %v1240
        %s1243 = sld [smem:[#allocation2 + $0x6a]]
        %v1244 = vstv %s1243
        %v1245 = vmul.f32 %v1244, %v393
        %v1246 = vmul.f32 %v1244, %v394
        %v1247 = vadd.f32 %v1241, %v1245
        %v1248 = vadd.f32 %v1242, %v1246
        %s1249 = sld [smem:[#allocation2 + $0x6b]]
        %v1250 = vstv %s1249
        %v1251 = vmul.f32 %v1250, %v395
        %v1252 = vmul.f32 %v1250, %v396
        %v1253 = vadd.f32 %v1247, %v1251
        %v1254 = vadd.f32 %v1248, %v1252
        %s1255 = sld [smem:[#allocation5 + $0x16]]
        %v1256 = vstv %s1255
        %v1257 = vadd.f32 %v1253, %v1256
        %v1258 = vadd.f32 %v1254, %v1256
        %v1259 = vmax.f32 %v1257, 0.0
        %v1260 = vmax.f32 %v1258, 0.0
        %s1261 = sld [smem:[#allocation7 + $0x16]]
        %v1262 = vstv %s1261
        %v1263 = vmul.f32 %v1262, %v1259
        %v1264 = vmul.f32 %v1262, %v1260
        %v1265 = vadd.f32 %v1231, %v1263
        %v1266 = vadd.f32 %v1232, %v1264
        %s1267 = sld [smem:[#allocation2 + $0x6c]]
        %v1268 = vstv %s1267
        %v1269 = vmul.f32 %v1268, %v389
        %v1270 = vmul.f32 %v1268, %v390
        %s1271 = sld [smem:[#allocation2 + $0x6d]]
        %v1272 = vstv %s1271
        %v1273 = vmul.f32 %v1272, %v391
        %v1274 = vmul.f32 %v1272, %v392
        %v1275 = vadd.f32 %v1269, %v1273
        %v1276 = vadd.f32 %v1270, %v1274
        %s1277 = sld [smem:[#allocation2 + $0x6e]]
        %v1278 = vstv %s1277
        %v1279 = vmul.f32 %v1278, %v393
        %v1280 = vmul.f32 %v1278, %v394
        %v1281 = vadd.f32 %v1275, %v1279
        %v1282 = vadd.f32 %v1276, %v1280
        %s1283 = sld [smem:[#allocation2 + $0x6f]]
        %v1284 = vstv %s1283
        %v1285 = vmul.f32 %v1284, %v395
        %v1286 = vmul.f32 %v1284, %v396
        %v1287 = vadd.f32 %v1281, %v1285
        %v1288 = vadd.f32 %v1282, %v1286
        %s1289 = sld [smem:[#allocation5 + $0x17]]
        %v1290 = vstv %s1289
        %v1291 = vadd.f32 %v1287, %v1290
        %v1292 = vadd.f32 %v1288, %v1290
        %v1293 = vmax.f32 %v1291, 0.0
        %v1294 = vmax.f32 %v1292, 0.0
        %s1295 = sld [smem:[#allocation7 + $0x17]]
        %v1296 = vstv %s1295
        %v1297 = vmul.f32 %v1296, %v1293
        %v1298 = vmul.f32 %v1296, %v1294
        %v1299 = vadd.f32 %v1265, %v1297
        %v1300 = vadd.f32 %v1266, %v1298
        %s1301 = sld [smem:[#allocation2 + $0x70]]
        %v1302 = vstv %s1301
        %v1303 = vmul.f32 %v1302, %v389
        %v1304 = vmul.f32 %v1302, %v390
        %s1305 = sld [smem:[#allocation2 + $0x71]]
        %v1306 = vstv %s1305
        %v1307 = vmul.f32 %v1306, %v391
        %v1308 = vmul.f32 %v1306, %v392
        %v1309 = vadd.f32 %v1303, %v1307
        %v1310 = vadd.f32 %v1304, %v1308
        %s1311 = sld [smem:[#allocation2 + $0x72]]
        %v1312 = vstv %s1311
        %v1313 = vmul.f32 %v1312, %v393
        %v1314 = vmul.f32 %v1312, %v394
        %v1315 = vadd.f32 %v1309, %v1313
        %v1316 = vadd.f32 %v1310, %v1314
        %s1317 = sld [smem:[#allocation2 + $0x73]]
        %v1318 = vstv %s1317
        %v1319 = vmul.f32 %v1318, %v395
        %v1320 = vmul.f32 %v1318, %v396
        %v1321 = vadd.f32 %v1315, %v1319
        %v1322 = vadd.f32 %v1316, %v1320
        %s1323 = sld [smem:[#allocation5 + $0x18]]
        %v1324 = vstv %s1323
        %v1325 = vadd.f32 %v1321, %v1324
        %v1326 = vadd.f32 %v1322, %v1324
        %v1327 = vmax.f32 %v1325, 0.0
        %v1328 = vmax.f32 %v1326, 0.0
        %s1329 = sld [smem:[#allocation7 + $0x18]]
        %v1330 = vstv %s1329
        %v1331 = vmul.f32 %v1330, %v1327
        %v1332 = vmul.f32 %v1330, %v1328
        %v1333 = vadd.f32 %v1299, %v1331
        %v1334 = vadd.f32 %v1300, %v1332
        %s1335 = sld [smem:[#allocation2 + $0x74]]
        %v1336 = vstv %s1335
        %v1337 = vmul.f32 %v1336, %v389
        %v1338 = vmul.f32 %v1336, %v390
        %s1339 = sld [smem:[#allocation2 + $0x75]]
        %v1340 = vstv %s1339
        %v1341 = vmul.f32 %v1340, %v391
        %v1342 = vmul.f32 %v1340, %v392
        %v1343 = vadd.f32 %v1337, %v1341
        %v1344 = vadd.f32 %v1338, %v1342
        %s1345 = sld [smem:[#allocation2 + $0x76]]
        %v1346 = vstv %s1345
        %v1347 = vmul.f32 %v1346, %v393
        %v1348 = vmul.f32 %v1346, %v394
        %v1349 = vadd.f32 %v1343, %v1347
        %v1350 = vadd.f32 %v1344, %v1348
        %s1351 = sld [smem:[#allocation2 + $0x77]]
        %v1352 = vstv %s1351
        %v1353 = vmul.f32 %v1352, %v395
        %v1354 = vmul.f32 %v1352, %v396
        %v1355 = vadd.f32 %v1349, %v1353
        %v1356 = vadd.f32 %v1350, %v1354
        %s1357 = sld [smem:[#allocation5 + $0x19]]
        %v1358 = vstv %s1357
        %v1359 = vadd.f32 %v1355, %v1358
        %v1360 = vadd.f32 %v1356, %v1358
        %v1361 = vmax.f32 %v1359, 0.0
        %v1362 = vmax.f32 %v1360, 0.0
        %s1363 = sld [smem:[#allocation7 + $0x19]]
        %v1364 = vstv %s1363
        %v1365 = vmul.f32 %v1364, %v1361
        %v1366 = vmul.f32 %v1364, %v1362
        %v1367 = vadd.f32 %v1333, %v1365
        %v1368 = vadd.f32 %v1334, %v1366
        %s1369 = sld [smem:[#allocation2 + $0x78]]
        %v1370 = vstv %s1369
        %v1371 = vmul.f32 %v1370, %v389
        %v1372 = vmul.f32 %v1370, %v390
        %s1373 = sld [smem:[#allocation2 + $0x79]]
        %v1374 = vstv %s1373
        %v1375 = vmul.f32 %v1374, %v391
        %v1376 = vmul.f32 %v1374, %v392
        %v1377 = vadd.f32 %v1371, %v1375
        %v1378 = vadd.f32 %v1372, %v1376
        %s1379 = sld [smem:[#allocation2 + $0x7a]]
        %v1380 = vstv %s1379
        %v1381 = vmul.f32 %v1380, %v393
        %v1382 = vmul.f32 %v1380, %v394
        %v1383 = vadd.f32 %v1377, %v1381
        %v1384 = vadd.f32 %v1378, %v1382
        %s1385 = sld [smem:[#allocation2 + $0x7b]]
        %v1386 = vstv %s1385
        %v1387 = vmul.f32 %v1386, %v395
        %v1388 = vmul.f32 %v1386, %v396
        %v1389 = vadd.f32 %v1383, %v1387
        %v1390 = vadd.f32 %v1384, %v1388
        %s1391 = sld [smem:[#allocation5 + $0x1a]]
        %v1392 = vstv %s1391
        %v1393 = vadd.f32 %v1389, %v1392
        %v1394 = vadd.f32 %v1390, %v1392
        %v1395 = vmax.f32 %v1393, 0.0
        %v1396 = vmax.f32 %v1394, 0.0
        %s1397 = sld [smem:[#allocation7 + $0x1a]]
        %v1398 = vstv %s1397
        %v1399 = vmul.f32 %v1398, %v1395
        %v1400 = vmul.f32 %v1398, %v1396
        %v1401 = vadd.f32 %v1367, %v1399
        %v1402 = vadd.f32 %v1368, %v1400
        %s1403 = sld [smem:[#allocation2 + $0x7c]]
        %v1404 = vstv %s1403
        %v1405 = vmul.f32 %v1404, %v389
        %v1406 = vmul.f32 %v1404, %v390
        %s1407 = sld [smem:[#allocation2 + $0x7d]]
        %v1408 = vstv %s1407
        %v1409 = vmul.f32 %v1408, %v391
        %v1410 = vmul.f32 %v1408, %v392
        %v1411 = vadd.f32 %v1405, %v1409
        %v1412 = vadd.f32 %v1406, %v1410
        %s1413 = sld [smem:[#allocation2 + $0x7e]]
        %v1414 = vstv %s1413
        %v1415 = vmul.f32 %v1414, %v393
        %v1416 = vmul.f32 %v1414, %v394
        %v1417 = vadd.f32 %v1411, %v1415
        %v1418 = vadd.f32 %v1412, %v1416
        %s1419 = sld [smem:[#allocation2 + $0x7f]]
        %v1420 = vstv %s1419
        %v1421 = vmul.f32 %v1420, %v395
        %v1422 = vmul.f32 %v1420, %v396
        %v1423 = vadd.f32 %v1417, %v1421
        %v1424 = vadd.f32 %v1418, %v1422
        %s1425 = sld [smem:[#allocation5 + $0x1b]]
        %v1426 = vstv %s1425
        %v1427 = vadd.f32 %v1423, %v1426
        %v1428 = vadd.f32 %v1424, %v1426
        %v1429 = vmax.f32 %v1427, 0.0
        %v1430 = vmax.f32 %v1428, 0.0
        %s1431 = sld [smem:[#allocation7 + $0x1b]]
        %v1432 = vstv %s1431
        %v1433 = vmul.f32 %v1432, %v1429
        %v1434 = vmul.f32 %v1432, %v1430
        %v1435 = vadd.f32 %v1401, %v1433
        %v1436 = vadd.f32 %v1402, %v1434
        %s1437 = sld [smem:[#allocation2 + $0x80]]
        %v1438 = vstv %s1437
        %v1439 = vmul.f32 %v1438, %v389
        %v1440 = vmul.f32 %v1438, %v390
        %s1441 = sld [smem:[#allocation2 + $0x81]]
        %v1442 = vstv %s1441
        %v1443 = vmul.f32 %v1442, %v391
        %v1444 = vmul.f32 %v1442, %v392
        %v1445 = vadd.f32 %v1439, %v1443
        %v1446 = vadd.f32 %v1440, %v1444
        %s1447 = sld [smem:[#allocation2 + $0x82]]
        %v1448 = vstv %s1447
        %v1449 = vmul.f32 %v1448, %v393
        %v1450 = vmul.f32 %v1448, %v394
        %v1451 = vadd.f32 %v1445, %v1449
        %v1452 = vadd.f32 %v1446, %v1450
        %s1453 = sld [smem:[#allocation2 + $0x83]]
        %v1454 = vstv %s1453
        %v1455 = vmul.f32 %v1454, %v395
        %v1456 = vmul.f32 %v1454, %v396
        %v1457 = vadd.f32 %v1451, %v1455
        %v1458 = vadd.f32 %v1452, %v1456
        %s1459 = sld [smem:[#allocation5 + $0x1c]]
        %v1460 = vstv %s1459
        %v1461 = vadd.f32 %v1457, %v1460
        %v1462 = vadd.f32 %v1458, %v1460
        %v1463 = vmax.f32 %v1461, 0.0
        %v1464 = vmax.f32 %v1462, 0.0
        %s1465 = sld [smem:[#allocation7 + $0x1c]]
        %v1466 = vstv %s1465
        %v1467 = vmul.f32 %v1466, %v1463
        %v1468 = vmul.f32 %v1466, %v1464
        %v1469 = vadd.f32 %v1435, %v1467
        %v1470 = vadd.f32 %v1436, %v1468
        %s1471 = sld [smem:[#allocation2 + $0x84]]
        %v1472 = vstv %s1471
        %v1473 = vmul.f32 %v1472, %v389
        %v1474 = vmul.f32 %v1472, %v390
        %s1475 = sld [smem:[#allocation2 + $0x85]]
        %v1476 = vstv %s1475
        %v1477 = vmul.f32 %v1476, %v391
        %v1478 = vmul.f32 %v1476, %v392
        %v1479 = vadd.f32 %v1473, %v1477
        %v1480 = vadd.f32 %v1474, %v1478
        %s1481 = sld [smem:[#allocation2 + $0x86]]
        %v1482 = vstv %s1481
        %v1483 = vmul.f32 %v1482, %v393
        %v1484 = vmul.f32 %v1482, %v394
        %v1485 = vadd.f32 %v1479, %v1483
        %v1486 = vadd.f32 %v1480, %v1484
        %s1487 = sld [smem:[#allocation2 + $0x87]]
        %v1488 = vstv %s1487
        %v1489 = vmul.f32 %v1488, %v395
        %v1490 = vmul.f32 %v1488, %v396
        %v1491 = vadd.f32 %v1485, %v1489
        %v1492 = vadd.f32 %v1486, %v1490
        %s1493 = sld [smem:[#allocation5 + $0x1d]]
        %v1494 = vstv %s1493
        %v1495 = vadd.f32 %v1491, %v1494
        %v1496 = vadd.f32 %v1492, %v1494
        %v1497 = vmax.f32 %v1495, 0.0
        %v1498 = vmax.f32 %v1496, 0.0
        %s1499 = sld [smem:[#allocation7 + $0x1d]]
        %v1500 = vstv %s1499
        %v1501 = vmul.f32 %v1500, %v1497
        %v1502 = vmul.f32 %v1500, %v1498
        %v1503 = vadd.f32 %v1469, %v1501
        %v1504 = vadd.f32 %v1470, %v1502
        %s1505 = sld [smem:[#allocation2 + $0x88]]
        %v1506 = vstv %s1505
        %v1507 = vmul.f32 %v1506, %v389
        %v1508 = vmul.f32 %v1506, %v390
        %s1509 = sld [smem:[#allocation2 + $0x89]]
        %v1510 = vstv %s1509
        %v1511 = vmul.f32 %v1510, %v391
        %v1512 = vmul.f32 %v1510, %v392
        %v1513 = vadd.f32 %v1507, %v1511
        %v1514 = vadd.f32 %v1508, %v1512
        %s1515 = sld [smem:[#allocation2 + $0x8a]]
        %v1516 = vstv %s1515
        %v1517 = vmul.f32 %v1516, %v393
        %v1518 = vmul.f32 %v1516, %v394
        %v1519 = vadd.f32 %v1513, %v1517
        %v1520 = vadd.f32 %v1514, %v1518
        %s1521 = sld [smem:[#allocation2 + $0x8b]]
        %v1522 = vstv %s1521
        %v1523 = vmul.f32 %v1522, %v395
        %v1524 = vmul.f32 %v1522, %v396
        %v1525 = vadd.f32 %v1519, %v1523
        %v1526 = vadd.f32 %v1520, %v1524
        %s1527 = sld [smem:[#allocation5 + $0x1e]]
        %v1528 = vstv %s1527
        %v1529 = vadd.f32 %v1525, %v1528
        %v1530 = vadd.f32 %v1526, %v1528
        %v1531 = vmax.f32 %v1529, 0.0
        %v1532 = vmax.f32 %v1530, 0.0
        %s1533 = sld [smem:[#allocation7 + $0x1e]]
        %v1534 = vstv %s1533
        %v1535 = vmul.f32 %v1534, %v1531
        %v1536 = vmul.f32 %v1534, %v1532
        %v1537 = vadd.f32 %v1503, %v1535
        %v1538 = vadd.f32 %v1504, %v1536
        %s1539 = sld [smem:[#allocation2 + $0x8c]]
        %v1540 = vstv %s1539
        %v1541 = vmul.f32 %v1540, %v389
        %v1542 = vmul.f32 %v1540, %v390
        %s1543 = sld [smem:[#allocation2 + $0x8d]]
        %v1544 = vstv %s1543
        %v1545 = vmul.f32 %v1544, %v391
        %v1546 = vmul.f32 %v1544, %v392
        %v1547 = vadd.f32 %v1541, %v1545
        %v1548 = vadd.f32 %v1542, %v1546
        %s1549 = sld [smem:[#allocation2 + $0x8e]]
        %v1550 = vstv %s1549
        %v1551 = vmul.f32 %v1550, %v393
        %v1552 = vmul.f32 %v1550, %v394
        %v1553 = vadd.f32 %v1547, %v1551
        %v1554 = vadd.f32 %v1548, %v1552
        %s1555 = sld [smem:[#allocation2 + $0x8f]]
        %v1556 = vstv %s1555
        %v1557 = vmul.f32 %v1556, %v395
        %v1558 = vmul.f32 %v1556, %v396
        %v1559 = vadd.f32 %v1553, %v1557
        %v1560 = vadd.f32 %v1554, %v1558
        %s1561 = sld [smem:[#allocation5 + $0x1f]]
        %v1562 = vstv %s1561
        %v1563 = vadd.f32 %v1559, %v1562
        %v1564 = vadd.f32 %v1560, %v1562
        %v1565 = vmax.f32 %v1563, 0.0
        %v1566 = vmax.f32 %v1564, 0.0
        %s1567 = sld [smem:[#allocation7 + $0x1f]]
        %v1568 = vstv %s1567
        %v1569 = vmul.f32 %v1568, %v1565
        %v1570 = vmul.f32 %v1568, %v1566
        %v1571 = vadd.f32 %v1537, %v1569
        %v1572 = vadd.f32 %v1538, %v1570
        %v1573 = vld [vmem:[%s6] sm:$0xff]
        %v1574 = vld [vmem:[%s6 + $0x8] sm:$0xff]
        %vm1575 = vcmask 130048
        %v1577 = vsel %vm1575, %v1573, 0
        %v1580 = vsel %vm1575, %v1574, 0
        %1582 = vmatprep.subr.mxu0 0.0
        %1583 = vmatpush1.msra.mxu0 %v1571
        %1584 = vmatprep.subr.mxu0 0.0
        %1585 = vmatpush1.msra.mxu0 %v1572
        %1586 = vmatprep.subr.mxu0 0.0
        %1587 = vmatpush1.msra.mxu0 0.0
        %1588 = vmatprep.subr.mxu0 0.0
        %1589 = vmatpush1.msra.mxu0 0.0
        %1590 = vmatprep.subr.mxu0 0.0
        %1591 = vmatpush1.msra.mxu0 0.0
        %1592 = vmatprep.subr.mxu0 0.0
        %1593 = vmatpush1.msra.mxu0 0.0
        %1594 = vmatprep.subr.mxu0 0.0
        %1595 = vmatpush1.msra.mxu0 0.0
        %1596 = vmatprep.subr.mxu0 0.0
        %1597 = vmatpush1.msra.mxu0 0.0
        %1598 = vmatprep.subr.mxu0 0.0
        %1599 = vmatpush1.msra.mxu0 0.0
        %1600 = vmatprep.subr.mxu0 0.0
        %1601 = vmatpush1.msra.mxu0 0.0
        %1602 = vmatprep.subr.mxu0 0.0
        %1603 = vmatpush1.msra.mxu0 0.0
        %1604 = vmatprep.subr.mxu0 0.0
        %1605 = vmatpush1.msra.mxu0 0.0
        %1606 = vmatprep.subr.mxu0 0.0
        %1607 = vmatpush1.msra.mxu0 0.0
        %1608 = vmatprep.subr.mxu0 0.0
        %1609 = vmatpush1.msra.mxu0 0.0
        %1610 = vmatprep.subr.mxu0 0.0
        %1611 = vmatpush1.msra.mxu0 0.0
        %1612 = vmatprep.subr.mxu0 0.0
        %1613 = vmatpush1.msra.mxu0 0.0
        %1614 = vmatprep.subr.mxu0 0.0
        %1615 = vmatpush1.msra.mxu0 0.0
        %1616 = vmatprep.subr.mxu0 0.0
        %1617 = vmatpush1.msra.mxu0 0.0
        %1618 = vmatprep.subr.mxu0 0.0
        %1619 = vmatpush1.msra.mxu0 0.0
        %1620 = vmatprep.subr.mxu0 0.0
        %1621 = vmatpush1.msra.mxu0 0.0
        %1622 = vmatprep.subr.mxu0 0.0
        %1623 = vmatpush1.msra.mxu0 0.0
        %1624 = vmatprep.subr.mxu0 0.0
        %1625 = vmatpush1.msra.mxu0 0.0
        %1626 = vmatprep.subr.mxu0 0.0
        %1627 = vmatpush1.msra.mxu0 0.0
        %1628 = vmatprep.subr.mxu0 0.0
        %1629 = vmatpush1.msra.mxu0 0.0
        %1630 = vmatprep.subr.mxu0 0.0
        %1631 = vmatpush1.msra.mxu0 0.0
        %1632 = vmatprep.subr.mxu0 0.0
        %1633 = vmatpush1.msra.mxu0 0.0
        %1634 = vmatprep.subr.mxu0 0.0
        %1635 = vmatpush1.msra.mxu0 0.0
        %1636 = vmatprep.subr.mxu0 0.0
        %1637 = vmatpush1.msra.mxu0 0.0
        %1638 = vmatprep.subr.mxu0 0.0
        %1639 = vmatpush1.msra.mxu0 0.0
        %1640 = vmatprep.subr.mxu0 0.0
        %1641 = vmatpush1.msra.mxu0 0.0
        %1642 = vmatprep.subr.mxu0 0.0
        %1643 = vmatpush1.msra.mxu0 0.0
        %1644 = vmatprep.subr.mxu0 0.0
        %1645 = vmatpush1.msra.mxu0 0.0
        %1646 = vmatprep.mubr.f32.mxu0 0.0
        %1647 = vmatmul.mubr.f32.gmra.mrb[0].mxu0 %v1577
        %v1648 = vpop.f32.mrb[0].mxu0
        %v1649 = vadd.f32 0.0, %v1648
        %v1650 = vpop.f32.mrb[0].mxu0
        %1651 = vmatprep.mubr.f32.mxu0 0.0
        %1652 = vmatmul.mubr.f32.gmra.mrb[0].mxu0 %v1580
        %v1653 = vpop.f32.mrb[0].mxu0
        %v1654 = vadd.f32 0.0, %v1653
        %v1655 = vpop.f32.mrb[0].mxu0
        %1656 = vdwg.mxu0
        %v1657 = vld [vmem:[%s7] sm:$0xff]
        %v1658 = vld [vmem:[%s7 + $0x8] sm:$0xff]
        %v1660 = vsel %vm1575, %v1649, 0
        %v1663 = vsel %vm1575, %v1654, 0
        %1665 = vmatprep.subr.mxu0 0.0
        %1666 = vmatpush1.msra.mxu0 %v1657
        %1667 = vmatprep.subr.mxu0 0.0
        %1668 = vmatpush1.msra.mxu0 %v1658
        %1669 = vmatprep.subr.mxu0 0.0
        %1670 = vmatpush1.msra.mxu0 0.0
        %1671 = vmatprep.subr.mxu0 0.0
        %1672 = vmatpush1.msra.mxu0 0.0
        %1673 = vmatprep.subr.mxu0 0.0
        %1674 = vmatpush1.msra.mxu0 0.0
        %1675 = vmatprep.subr.mxu0 0.0
        %1676 = vmatpush1.msra.mxu0 0.0
        %1677 = vmatprep.subr.mxu0 0.0
        %1678 = vmatpush1.msra.mxu0 0.0
        %1679 = vmatprep.subr.mxu0 0.0
        %1680 = vmatpush1.msra.mxu0 0.0
        %1681 = vmatprep.subr.mxu0 0.0
        %1682 = vmatpush1.msra.mxu0 0.0
        %1683 = vmatprep.subr.mxu0 0.0
        %1684 = vmatpush1.msra.mxu0 0.0
        %1685 = vmatprep.subr.mxu0 0.0
        %1686 = vmatpush1.msra.mxu0 0.0
        %1687 = vmatprep.subr.mxu0 0.0
        %1688 = vmatpush1.msra.mxu0 0.0
        %1689 = vmatprep.subr.mxu0 0.0
        %1690 = vmatpush1.msra.mxu0 0.0
        %1691 = vmatprep.subr.mxu0 0.0
        %1692 = vmatpush1.msra.mxu0 0.0
        %1693 = vmatprep.subr.mxu0 0.0
        %1694 = vmatpush1.msra.mxu0 0.0
        %1695 = vmatprep.subr.mxu0 0.0
        %1696 = vmatpush1.msra.mxu0 0.0
        %1697 = vmatprep.subr.mxu0 0.0
        %1698 = vmatpush1.msra.mxu0 0.0
        %1699 = vmatprep.subr.mxu0 0.0
        %1700 = vmatpush1.msra.mxu0 0.0
        %1701 = vmatprep.subr.mxu0 0.0
        %1702 = vmatpush1.msra.mxu0 0.0
        %1703 = vmatprep.subr.mxu0 0.0
        %1704 = vmatpush1.msra.mxu0 0.0
        %1705 = vmatprep.subr.mxu0 0.0
        %1706 = vmatpush1.msra.mxu0 0.0
        %1707 = vmatprep.subr.mxu0 0.0
        %1708 = vmatpush1.msra.mxu0 0.0
        %1709 = vmatprep.subr.mxu0 0.0
        %1710 = vmatpush1.msra.mxu0 0.0
        %1711 = vmatprep.subr.mxu0 0.0
        %1712 = vmatpush1.msra.mxu0 0.0
        %1713 = vmatprep.subr.mxu0 0.0
        %1714 = vmatpush1.msra.mxu0 0.0
        %1715 = vmatprep.subr.mxu0 0.0
        %1716 = vmatpush1.msra.mxu0 0.0
        %1717 = vmatprep.subr.mxu0 0.0
        %1718 = vmatpush1.msra.mxu0 0.0
        %1719 = vmatprep.subr.mxu0 0.0
        %1720 = vmatpush1.msra.mxu0 0.0
        %1721 = vmatprep.subr.mxu0 0.0
        %1722 = vmatpush1.msra.mxu0 0.0
        %1723 = vmatprep.subr.mxu0 0.0
        %1724 = vmatpush1.msra.mxu0 0.0
        %1725 = vmatprep.subr.mxu0 0.0
        %1726 = vmatpush1.msra.mxu0 0.0
        %1727 = vmatprep.subr.mxu0 0.0
        %1728 = vmatpush1.msra.mxu0 0.0
        %1729 = vmatprep.mubr.f32.mxu0 0.0
        %1730 = vmatmul.mubr.f32.gmra.mrb[0].mxu0 %v1660
        %v1731 = vpop.f32.mrb[0].mxu0
        %v1732 = vadd.f32 0.0, %v1731
        %v1733 = vpop.f32.mrb[0].mxu0
        %1734 = vmatprep.mubr.f32.mxu0 0.0
        %1735 = vmatmul.mubr.f32.gmra.mrb[0].mxu0 %v1663
        %v1736 = vpop.f32.mrb[0].mxu0
        %v1737 = vadd.f32 0.0, %v1736
        %v1738 = vpop.f32.mrb[0].mxu0
        %1739 = vdwg.mxu0
        %v1740 = vxor.u32 %v1732, 2147483648
        %v1741 = vxor.u32 %v1737, 2147483648
        %v1742 = vmul.f32 %v1740, 1.442695
        %v1743 = vpow.pop %v1742
        %v1744 = vmul.f32 %v1741, 1.442695
        %v1745 = vpow.pop %v1744
        %v1746 = vadd.f32 %v1743, 1.0
        %v1747 = vadd.f32 %v1745, 1.0
        %v1748 = vrcp.pop %v1746
        %v1749 = vmul.f32 1.0, %v1748
        %v1750 = vrcp.pop %v1747
        %v1751 = vmul.f32 1.0, %v1750
        %v1752 = vld [vmem:[%s4] sm:$0xff]
        %v1753 = vld [vmem:[%s4 + $0x8] sm:$0xff]
        %v1754 = vld [vmem:[%s4 + $0x10] sm:$0xff]
        %v1755 = vld [vmem:[%s4 + $0x18] sm:$0xff]
        %v1757 = vsel %vm1575, %v1752, 0
        %v1760 = vsel %vm1575, %v1753, 0
        %v1763 = vsel %vm1575, %v1754, 0
        %v1766 = vsel %vm1575, %v1755, 0
        %1768 = vmatprep.subr.mxu0 0.0
        %1769 = vmatpush1.msra.mxu0 %v1571
        %1770 = vmatprep.subr.mxu0 0.0
        %1771 = vmatpush1.msra.mxu0 %v1572
        %1772 = vmatprep.subr.mxu0 0.0
        %1773 = vmatpush1.msra.mxu0 0.0
        %1774 = vmatprep.subr.mxu0 0.0
        %1775 = vmatpush1.msra.mxu0 0.0
        %1776 = vmatprep.subr.mxu0 0.0
        %1777 = vmatpush1.msra.mxu0 0.0
        %1778 = vmatprep.subr.mxu0 0.0
        %1779 = vmatpush1.msra.mxu0 0.0
        %1780 = vmatprep.subr.mxu0 0.0
        %1781 = vmatpush1.msra.mxu0 0.0
        %1782 = vmatprep.subr.mxu0 0.0
        %1783 = vmatpush1.msra.mxu0 0.0
        %1784 = vmatprep.subr.mxu0 0.0
        %1785 = vmatpush1.msra.mxu0 0.0
        %1786 = vmatprep.subr.mxu0 0.0
        %1787 = vmatpush1.msra.mxu0 0.0
        %1788 = vmatprep.subr.mxu0 0.0
        %1789 = vmatpush1.msra.mxu0 0.0
        %1790 = vmatprep.subr.mxu0 0.0
        %1791 = vmatpush1.msra.mxu0 0.0
        %1792 = vmatprep.subr.mxu0 0.0
        %1793 = vmatpush1.msra.mxu0 0.0
        %1794 = vmatprep.subr.mxu0 0.0
        %1795 = vmatpush1.msra.mxu0 0.0
        %1796 = vmatprep.subr.mxu0 0.0
        %1797 = vmatpush1.msra.mxu0 0.0
        %1798 = vmatprep.subr.mxu0 0.0
        %1799 = vmatpush1.msra.mxu0 0.0
        %1800 = vmatprep.subr.mxu0 0.0
        %1801 = vmatpush1.msra.mxu0 0.0
        %1802 = vmatprep.subr.mxu0 0.0
        %1803 = vmatpush1.msra.mxu0 0.0
        %1804 = vmatprep.subr.mxu0 0.0
        %1805 = vmatpush1.msra.mxu0 0.0
        %1806 = vmatprep.subr.mxu0 0.0
        %1807 = vmatpush1.msra.mxu0 0.0
        %1808 = vmatprep.subr.mxu0 0.0
        %1809 = vmatpush1.msra.mxu0 0.0
        %1810 = vmatprep.subr.mxu0 0.0
        %1811 = vmatpush1.msra.mxu0 0.0
        %1812 = vmatprep.subr.mxu0 0.0
        %1813 = vmatpush1.msra.mxu0 0.0
        %1814 = vmatprep.subr.mxu0 0.0
        %1815 = vmatpush1.msra.mxu0 0.0
        %1816 = vmatprep.subr.mxu0 0.0
        %1817 = vmatpush1.msra.mxu0 0.0
        %1818 = vmatprep.subr.mxu0 0.0
        %1819 = vmatpush1.msra.mxu0 0.0
        %1820 = vmatprep.subr.mxu0 0.0
        %1821 = vmatpush1.msra.mxu0 0.0
        %1822 = vmatprep.subr.mxu0 0.0
        %1823 = vmatpush1.msra.mxu0 0.0
        %1824 = vmatprep.subr.mxu0 0.0
        %1825 = vmatpush1.msra.mxu0 0.0
        %1826 = vmatprep.subr.mxu0 0.0
        %1827 = vmatpush1.msra.mxu0 0.0
        %1828 = vmatprep.subr.mxu0 0.0
        %1829 = vmatpush1.msra.mxu0 0.0
        %1830 = vmatprep.subr.mxu0 0.0
        %1831 = vmatpush1.msra.mxu0 0.0
        %1832 = vmatprep.mubr.f32.mxu0 0.0
        %1833 = vmatmul.mubr.f32.gmra.mrb[0].mxu0 %v1757
        %v1834 = vpop.f32.mrb[0].mxu0
        %v1835 = vadd.f32 0.0, %v1834
        %v1836 = vpop.f32.mrb[0].mxu0
        %1837 = vmatprep.mubr.f32.mxu0 0.0
        %1838 = vmatmul.mubr.f32.gmra.mrb[0].mxu0 %v1760
        %v1839 = vpop.f32.mrb[0].mxu0
        %v1840 = vadd.f32 0.0, %v1839
        %v1841 = vpop.f32.mrb[0].mxu0
        %1842 = vmatprep.mubr.f32.mxu0 0.0
        %1843 = vmatmul.mubr.f32.gmra.mrb[0].mxu0 %v1763
        %v1844 = vpop.f32.mrb[0].mxu0
        %v1845 = vadd.f32 0.0, %v1844
        %v1846 = vpop.f32.mrb[0].mxu0
        %1847 = vmatprep.mubr.f32.mxu0 0.0
        %1848 = vmatmul.mubr.f32.gmra.mrb[0].mxu0 %v1766
        %v1849 = vpop.f32.mrb[0].mxu0
        %v1850 = vadd.f32 0.0, %v1849
        %v1851 = vpop.f32.mrb[0].mxu0
        %1852 = vdwg.mxu0
        %v1853 = vld [vmem:[%s5] sm:$0xff]
        %v1854 = vld [vmem:[%s5 + $0x8] sm:$0xff]
        %v1856 = vsel %vm1575, %v1835, 0
        %v1859 = vsel %vm1575, %v1840, 0
        %v1862 = vsel %vm1575, %v1845, 0
        %v1865 = vsel %vm1575, %v1850, 0
        %1867 = vmatprep.subr.mxu0 0.0
        %1868 = vmatpush1.msra.mxu0 %v1853
        %1869 = vmatprep.subr.mxu0 0.0
        %1870 = vmatpush1.msra.mxu0 %v1854
        %1871 = vmatprep.subr.mxu0 0.0
        %1872 = vmatpush1.msra.mxu0 0.0
        %1873 = vmatprep.subr.mxu0 0.0
        %1874 = vmatpush1.msra.mxu0 0.0
        %1875 = vmatprep.subr.mxu0 0.0
        %1876 = vmatpush1.msra.mxu0 0.0
        %1877 = vmatprep.subr.mxu0 0.0
        %1878 = vmatpush1.msra.mxu0 0.0
        %1879 = vmatprep.subr.mxu0 0.0
        %1880 = vmatpush1.msra.mxu0 0.0
        %1881 = vmatprep.subr.mxu0 0.0
        %1882 = vmatpush1.msra.mxu0 0.0
        %1883 = vmatprep.subr.mxu0 0.0
        %1884 = vmatpush1.msra.mxu0 0.0
        %1885 = vmatprep.subr.mxu0 0.0
        %1886 = vmatpush1.msra.mxu0 0.0
        %1887 = vmatprep.subr.mxu0 0.0
        %1888 = vmatpush1.msra.mxu0 0.0
        %1889 = vmatprep.subr.mxu0 0.0
        %1890 = vmatpush1.msra.mxu0 0.0
        %1891 = vmatprep.subr.mxu0 0.0
        %1892 = vmatpush1.msra.mxu0 0.0
        %1893 = vmatprep.subr.mxu0 0.0
        %1894 = vmatpush1.msra.mxu0 0.0
        %1895 = vmatprep.subr.mxu0 0.0
        %1896 = vmatpush1.msra.mxu0 0.0
        %1897 = vmatprep.subr.mxu0 0.0
        %1898 = vmatpush1.msra.mxu0 0.0
        %1899 = vmatprep.subr.mxu0 0.0
        %1900 = vmatpush1.msra.mxu0 0.0
        %1901 = vmatprep.subr.mxu0 0.0
        %1902 = vmatpush1.msra.mxu0 0.0
        %1903 = vmatprep.subr.mxu0 0.0
        %1904 = vmatpush1.msra.mxu0 0.0
        %1905 = vmatprep.subr.mxu0 0.0
        %1906 = vmatpush1.msra.mxu0 0.0
        %1907 = vmatprep.subr.mxu0 0.0
        %1908 = vmatpush1.msra.mxu0 0.0
        %1909 = vmatprep.subr.mxu0 0.0
        %1910 = vmatpush1.msra.mxu0 0.0
        %1911 = vmatprep.subr.mxu0 0.0
        %1912 = vmatpush1.msra.mxu0 0.0
        %1913 = vmatprep.subr.mxu0 0.0
        %1914 = vmatpush1.msra.mxu0 0.0
        %1915 = vmatprep.subr.mxu0 0.0
        %1916 = vmatpush1.msra.mxu0 0.0
        %1917 = vmatprep.subr.mxu0 0.0
        %1918 = vmatpush1.msra.mxu0 0.0
        %1919 = vmatprep.subr.mxu0 0.0
        %1920 = vmatpush1.msra.mxu0 0.0
        %1921 = vmatprep.subr.mxu0 0.0
        %1922 = vmatpush1.msra.mxu0 0.0
        %1923 = vmatprep.subr.mxu0 0.0
        %1924 = vmatpush1.msra.mxu0 0.0
        %1925 = vmatprep.subr.mxu0 0.0
        %1926 = vmatpush1.msra.mxu0 0.0
        %1927 = vmatprep.subr.mxu0 0.0
        %1928 = vmatpush1.msra.mxu0 0.0
        %1929 = vmatprep.subr.mxu0 0.0
        %1930 = vmatpush1.msra.mxu0 0.0
        %1931 = vmatprep.mubr.f32.mxu0 0.0
        %1932 = vmatmul.mubr.f32.gmra.mrb[0].mxu0 %v1856
        %v1933 = vpop.f32.mrb[0].mxu0
        %v1934 = vadd.f32 0.0, %v1933
        %v1935 = vpop.f32.mrb[0].mxu0
        %1936 = vmatprep.mubr.f32.mxu0 0.0
        %1937 = vmatmul.mubr.f32.gmra.mrb[0].mxu0 %v1859
        %v1938 = vpop.f32.mrb[0].mxu0
        %v1939 = vadd.f32 0.0, %v1938
        %v1940 = vpop.f32.mrb[0].mxu0
        %1941 = vmatprep.mubr.f32.mxu0 0.0
        %1942 = vmatmul.mubr.f32.gmra.mrb[0].mxu0 %v1862
        %v1943 = vpop.f32.mrb[0].mxu0
        %v1944 = vadd.f32 0.0, %v1943
        %v1945 = vpop.f32.mrb[0].mxu0
        %1946 = vmatprep.mubr.f32.mxu0 0.0
        %1947 = vmatmul.mubr.f32.gmra.mrb[0].mxu0 %v1865
        %v1948 = vpop.f32.mrb[0].mxu0
        %v1949 = vadd.f32 0.0, %v1948
        %v1950 = vpop.f32.mrb[0].mxu0
        %1951 = vdwg.mxu0
        %vm1952 = vcmask 261120
        %1953 = vst.msk [vmem:[%s368] sm:$0xff] %vm1952, %v1934
        %1954 = vst.msk [vmem:[%s368 + $0x8] sm:$0xff] %vm1952, %v1939
        %1955 = vst.msk [vmem:[%s368 + $0x10] sm:$0xff] %vm1952, %v1944
        %1956 = vst.msk [vmem:[%s368 + $0x18] sm:$0xff] %vm1952, %v1949
        %v1957 = vmul.f32 %v417, %v1749
        %v1958 = vmul.f32 %v418, %v1751
        %v1959 = vadd.f32 %v389, %v1957
        %v1960 = vadd.f32 %v390, %v1958
        %1961 = vst.msk [vmem:[%s375] sm:$0xff] %vm1575, %v1959
        %1962 = vst.msk [vmem:[%s375 + $0x8] sm:$0xff] %vm1575, %v1960
        %v1963 = vmul.f32 %v439, %v1749
        %v1964 = vmul.f32 %v440, %v1751
        %v1965 = vadd.f32 %v391, %v1963
        %v1966 = vadd.f32 %v392, %v1964
        %1967 = vst.msk [vmem:[%s375 + $0x10] sm:$0xff] %vm1575, %v1965
        %1968 = vst.msk [vmem:[%s375 + $0x18] sm:$0xff] %vm1575, %v1966
        %v1969 = vmul.f32 %v461, %v1749
        %v1970 = vmul.f32 %v462, %v1751
        %v1971 = vadd.f32 %v393, %v1969
        %v1972 = vadd.f32 %v394, %v1970
        %1973 = vst.msk [vmem:[%s375 + $0x20] sm:$0xff] %vm1575, %v1971
        %1974 = vst.msk [vmem:[%s375 + $0x28] sm:$0xff] %vm1575, %v1972
        %v1975 = vmul.f32 %v483, %v1749
        %v1976 = vmul.f32 %v484, %v1751
        %v1977 = vadd.f32 %v395, %v1975
        %v1978 = vadd.f32 %v396, %v1976
        %1979 = vst.msk [vmem:[%s375 + $0x30] sm:$0xff] %vm1575, %v1977
        %1980 = vst.msk [vmem:[%s375 + $0x38] sm:$0xff] %vm1575, %v1978
        %s1981 = sand.u32 %s210, 1
        %s1982 = scalar_lea.sflag [#allocation3], %s1981
        %s1983 = sand.u32 %s210, 1
        %s1984 = smul.addr %s1983, 32
        %s1985 = scalar_lea.vmem [#allocation8], %s1984
        %s1986 = sand.u32 %s236, 1
        %s1987 = scalar_lea.sflag [#allocation10], %s1986
        %s1988 = sand.u32 %s236, 1
        %s1989 = smul.addr %s1988, 64
        %s1990 = scalar_lea.vmem [#allocation9], %s1989
        // Predicated region
        $region65: #{dsm_forward.1} parent=51 // pred_check
          %p1991 = pneg %p220
        $region66: #{dsm_forward.1} parent=51 // pred_check_branch
          %1993 = sbr.rel (%p1991) target = $region68
        $region67: #{dsm_forward.1} parent=51 // pred_region
          %s1995 = ssub.s32 512, 512
          %1996 = vsyncadd %s1982, %s1995
          %s1997 = smul.addr %s29, 4
          %s1998 = smul.addr %s1997, 128
          %s1999 = scalar_lea.hbm %s8, %s1998
          %s2000 = sshll.u32 %s1985, 4
          %s2001 = int_to_ptr.vmem [resolvable:$true] %s2000
          %2006 = dma.vmem_to_hbm [thread:$0]  %s2001, 512, %s1999, %s1982, 128, 128, 8
        $region68: #{dsm_forward.1} parent=51 // pred_fallthru
          _
        // Predicated region
        $region69: #{dsm_forward.1} parent=51 // pred_check
          %p2007 = pneg %p246
        $region70: #{dsm_forward.1} parent=51 // pred_check_branch
          %2009 = sbr.rel (%p2007) target = $region72
        $region71: #{dsm_forward.1} parent=51 // pred_region
          %s2011 = ssub.s32 1024, 1024
          %2012 = vsyncadd %s1987, %s2011
          %s2013 = smul.addr %s29, 8
          %s2014 = smul.addr %s2013, 128
          %s2015 = scalar_lea.hbm %s9, %s2014
          %s2016 = sshll.u32 %s1990, 4
          %s2017 = int_to_ptr.vmem [resolvable:$true] %s2016
          %2022 = dma.vmem_to_hbm [thread:$0]  %s2017, 1024, %s2015, %s1987, 128, 128, 8
        $region72: #{dsm_forward.1} parent=51 // pred_fallthru
          _
      $region52: #{dsm_forward.1} parent=5 // pred_fallthru
        _
      %p2023 = scmp.le.s32.totalorder 2, %s24
      // Predicated region
      $region73: #{dsm_forward.1} parent=5 // pred_check
        %p2024 = pneg %p2023
      $region74: #{dsm_forward.1} parent=5 // pred_check_branch
        %2026 = sbr.rel (%p2024) target = $region76
      $region75: #{dsm_forward.1} parent=5 // pred_region
        %s2027 = ssub.s32 %s24, 2
        // Predicated region
        $region77: #{dsm_forward.1} parent=75 // pred_check
          %p2028 = pneg %p226
        $region78: #{dsm_forward.1} parent=75 // pred_check_branch
          %2030 = sbr.rel (%p2028) target = $region80
        $region79: #{dsm_forward.1} parent=75 // pred_region
          %s2031 = sand.u32 %s211, 1
          %s2032 = scalar_lea.sflag [#allocation3], %s2031
          %s2033 = sand.u32 %s211, 1
          %s2034 = smul.addr %s2033, 32
          %s2035 = scalar_lea.vmem [#allocation8], %s2034
          %2036 = dma.done %s2032, 512
        $region80: #{dsm_forward.1} parent=75 // pred_fallthru
          _
        // Predicated region
        $region81: #{dsm_forward.1} parent=75 // pred_check
          %p2037 = pneg %p252
        $region82: #{dsm_forward.1} parent=75 // pred_check_branch
          %2039 = sbr.rel (%p2037) target = $region84
        $region83: #{dsm_forward.1} parent=75 // pred_region
          %s2040 = sand.u32 %s237, 1
          %s2041 = scalar_lea.sflag [#allocation10], %s2040
          %s2042 = sand.u32 %s237, 1
          %s2043 = smul.addr %s2042, 64
          %s2044 = scalar_lea.vmem [#allocation9], %s2043
          %2045 = dma.done %s2041, 1024
        $region84: #{dsm_forward.1} parent=75 // pred_fallthru
          _
      $region76: #{dsm_forward.1} parent=5 // pred_fallthru
        _
    $region6: #{dsm_forward.1} parent=1 // loop_footer
      %s28 = sadd.s32 1, %s24
    $region7: #{dsm_forward.1} parent=1 // loop_footer_branch
      %23 = sbr.rel target = $region3
    $region8: #{dsm_forward.1} parent=1 // loop_exit
      _
    %2046 = vsyncpa [#allocation3], 1
    %s2047 = scalar_lea.sflag [#allocation3], 1
    %2048 = vsyncpa %s2047, 1
    %2049 = vsyncpa [#allocation10], 1
    %s2050 = scalar_lea.sflag [#allocation10], 1
    %2051 = vsyncpa %s2050, 1
    %2052 = vsyncpa [#allocation4], 1
    %s2053 = scalar_lea.sflag [#allocation4], 1
    %2054 = vsyncpa %s2053, 1
    %2055 = vsyncpa [#allocation6], 1

</llo_original>
